<compile_context>
chip_gen: v7x
topology: tpu7x:2x2x1
jax: 0.10.0
libtpu: 0.0.40
codegen_flags: <defaults>
</compile_context>

<pallas_src>
import functools
import math

import jax
import jax.numpy as jnp
from jax.experimental import pallas as pl
from jax.experimental.pallas import tpu as pltpu


# ----------------------------- positional embedding -----------------------------
def pos_sinusoid_embedding(seq_len, d_model):
    pos = jnp.arange(seq_len, dtype=jnp.float32)[:, None]          # (L, 1)
    i = jnp.arange(d_model)[None, :]                                # (1, D)
    angle = pos / jnp.power(1e4, (2.0 * (i // 2)) / d_model)
    emb = jnp.where(i % 2 == 0, jnp.sin(angle), jnp.cos(angle))
    return emb.astype(jnp.float32)                                  # (L, D)


# ----------------------------- shared math -----------------------------
def _layer_norm(x, g, b, eps=1e-5):
    mu = jnp.mean(x, axis=-1, keepdims=True)
    var = jnp.mean((x - mu) ** 2, axis=-1, keepdims=True)
    return (x - mu) * jax.lax.rsqrt(var + eps) * g + b


# ----------------------------- Pallas kernel (whole encoder stack) -----------------------------
def encoder_stack_kernel(
    x_ref, pos_ref,                          # (1, S, D), (S, D)
    wqkv_ref, bqkv_ref,                      # (Lw, D, 3D), (Lw, 1, 3D)
    wo_ref, bo_ref,                          # (Lw, D, D),  (Lw, 1, D)
    g1_ref, be1_ref,                         # (Lw, 1, D)
    w1_ref, b1_ref, w2_ref, b2_ref,          # (Lw, D, F), (Lw, 1, F), (Lw, F, D), (Lw, 1, D)
    g2_ref, be2_ref,                         # (Lw, 1, D)
    o_ref,                                   # (1, S, D)
    act_ref,                                 # VMEM scratch (S, D) f32 — resident activation
    ctx_ref,                                 # VMEM scratch (S, D) f32 — per-head context slab
    *, num_heads, compute_dtype, approx_recip, weights_resident,
):
    l = pl.program_id(1)
    n_layers = pl.num_programs(1)
    # Resident mode: weight refs carry all layers, index with l.  Streaming mode:
    # refs carry one layer (leading dim 1), index 0.
    wi = l if weights_resident else 0

    # Load input + positional embedding once per batch row (layer 0 of this row).
    @pl.when(l == 0)
    def _():
        act_ref[...] = x_ref[0].astype(jnp.float32) + pos_ref[...]

    x = act_ref[...]                                     # (S, D) f32
    S, D = x.shape
    H = num_heads
    dk = D // H
    cd = compute_dtype

    x_c = x.astype(cd)

    # ----- fused QKV projection: (S, D) @ (D, 3D), lane-dense, full MXU width -----
    # 1/sqrt(dk) is already folded into the q block of wqkv / bqkv.
    qkv = jnp.dot(x_c, wqkv_ref[wi], preferred_element_type=jnp.float32) + bqkv_ref[wi]
    q2 = qkv[:, 0 * D:1 * D]                             # (S, D) f32, head-major columns
    k2 = qkv[:, 1 * D:2 * D]
    v2 = qkv[:, 2 * D:3 * D]

    # ----- per-head attention (static lane slices; scores are (S, S) lane-dense) -----
    for h in range(H):
        qh = q2[:, h * dk:(h + 1) * dk].astype(cd)       # (S, dk)
        kh = k2[:, h * dk:(h + 1) * dk].astype(cd)
        vh = v2[:, h * dk:(h + 1) * dk].astype(cd)

        s = jax.lax.dot_general(qh, kh, (((1,), (1,)), ((), ())),
                                preferred_element_type=jnp.float32)   # (S, S) f32
        s = s - jnp.max(s, axis=-1, keepdims=True)
        p = jnp.exp(s)
        p = p * pl.reciprocal(jnp.sum(p, axis=-1, keepdims=True), approx=approx_recip)

        ctx_ref[:, h * dk:(h + 1) * dk] = jnp.dot(
            p.astype(cd), vh, preferred_element_type=jnp.float32)     # (S, dk)

    # ----- fused output projection: (S, D) @ (D, D), K = H*dk = D (full MXU depth) -----
    attn = jnp.dot(ctx_ref[...].astype(cd), wo_ref[wi],
                   preferred_element_type=jnp.float32) + bo_ref[wi]   # (S, D) f32

    # ----- add & norm 1 (f32) -----
    out1 = _layer_norm(x + attn, g1_ref[wi], be1_ref[wi])

    # ----- position-wise FFN (conv1d k=1 == linear) -----
    h1 = jnp.dot(out1.astype(cd), w1_ref[wi], preferred_element_type=jnp.float32) + b1_ref[wi]
    h1 = jnp.maximum(h1, 0.0)
    ffn = jnp.dot(h1.astype(cd), w2_ref[wi], preferred_element_type=jnp.float32) + b2_ref[wi]

    # ----- add & norm 2 (f32) -----
    out2 = _layer_norm(out1 + ffn, g2_ref[wi], be2_ref[wi])

    act_ref[...] = out2                                  # carry to next layer

    @pl.when(l == n_layers - 1)
    def _():
        o_ref[0] = out2.astype(o_ref.dtype)


# ----------------------------- weight repacking (host-side, done ONCE) -----------------------------
def stack_layer_params(layers, num_heads, compute_dtype):
    """Fused lane-dense QKV weights, layer-stacked kernel layout, scale folded into q."""
    H = num_heads
    D = layers[0]["wq"].shape[0]
    dk = D // H
    scale = 1.0 / math.sqrt(dk)

    names = ["wqkv", "bqkv", "wo", "bo", "g1", "be1",
             "w1", "b1", "w2", "b2", "g2", "be2"]
    per = {n: [] for n in names}
    for lp in layers:
        # Fused (D, 3D) QKV weight; columns keep the original head-major order so
        # no head re-packing of wo is needed.  1/sqrt(dk) folded into wq AND bq.
        per["wqkv"].append(jnp.concatenate([lp["wq"] * scale, lp["wk"], lp["wv"]], axis=-1))
        per["bqkv"].append(jnp.concatenate([lp["bq"] * scale, lp["bk"], lp["bv"]], axis=-1))
        per["wo"].append(lp["wo"])                       # (D, D)
        per["bo"].append(lp["bo"])
        per["g1"].append(lp["g1"]); per["be1"].append(lp["be1"])
        per["w1"].append(lp["w1"]); per["b1"].append(lp["b1"])
        per["w2"].append(lp["w2"]); per["b2"].append(lp["b2"])
        per["g2"].append(lp["g2"]); per["be2"].append(lp["be2"])

    stacked = {n: jnp.stack(v) for n, v in per.items()}
    # MXU operands in compute dtype; biases & layernorm params stay f32.
    for n in ("wqkv", "wo", "w1", "w2"):
        stacked[n] = stacked[n].astype(compute_dtype)
    return stacked


def prepare_encoder_params(params, num_heads, compute_dtype):
    """Call once at load time (NOT per forward) — repacks and stacks layer weights."""
    return {"pos_emb": params["pos_emb"],
            "stacked": stack_layer_params(params["layers"], num_heads, compute_dtype)}


# ----------------------------- pallas_call wrapper -----------------------------
def encoder_stack_pallas(x, pos_emb, stacked, num_heads, compute_dtype):
    B, S, D = x.shape
    names = ["wqkv", "bqkv", "wo", "bo", "g1", "be1",
             "w1", "b1", "w2", "b2", "g2", "be2"]
    weights = [stacked[n] for n in names]
    L = stacked["wqkv"].shape[0]
    F = stacked["w1"].shape[-1]
    H = num_heads

    weight_bytes = sum(int(w.size) * w.dtype.itemsize for w in weights)
    # Small stacks: keep ALL layer weights VMEM-resident (constant index_map → one DMA
    # total, no per-batch re-streaming).  Large stacks: stream one layer per grid step.
    weights_resident = weight_bytes <= 8 * 1024 * 1024

    def wspec(arr):
        nd = arr.ndim
        if weights_resident:
            return pl.BlockSpec(arr.shape, lambda b, l, _nd=nd: (0,) * _nd)
        return pl.BlockSpec((1,) + arr.shape[1:],
                            lambda b, l, _nd=nd: (l,) + (0,) * (_nd - 1))

    in_specs = ([pl.BlockSpec((1, S, D), lambda b, l: (b, 0, 0)),
                 pl.BlockSpec((S, D), lambda b, l: (0, 0))]
                + [wspec(w) for w in weights])
    out_spec = pl.BlockSpec((1, S, D), lambda b, l: (b, 0, 0))

    flops = 2 * B * L * S * (4 * D * D + 2 * S * D + 2 * D * F)
    transcendentals = B * L * H * S * S
    bytes_accessed = weight_bytes + 2 * B * S * D * x.dtype.itemsize + S * D * 4

    return pl.pallas_call(
        functools.partial(encoder_stack_kernel,
                          num_heads=num_heads,
                          compute_dtype=compute_dtype,
                          approx_recip=(compute_dtype != jnp.float32),
                          weights_resident=weights_resident),
        out_shape=jax.ShapeDtypeStruct((B, S, D), x.dtype),
        grid=(B, L),
        in_specs=in_specs,
        out_specs=out_spec,
        scratch_shapes=[pltpu.VMEM((S, D), jnp.float32),      # resident activation
                        pltpu.VMEM((S, D), jnp.float32)],     # per-head context slab
        compiler_params=pltpu.CompilerParams(
            dimension_semantics=("parallel", "arbitrary"),
            vmem_limit_bytes=48 * 1024 * 1024),               # v7x-safe (64 MiB physical)
        cost_estimate=pl.CostEstimate(
            flops=flops, transcendentals=transcendentals, bytes_accessed=bytes_accessed),
    )(x, pos_emb, *weights)


# ----------------------------- parameter construction -----------------------------
def init_encoder_params(key, num_layers, enc_dim, num_heads, ffn_dim, max_len):
    params = {"pos_emb": pos_sinusoid_embedding(max_len, enc_dim), "layers": []}
    scale = 0.02
    for _ in range(num_layers):
        keys = jax.random.split(key, 7)
        key = keys[0]
        layer = {
            # stored already transposed: (in, out)
            "wq": scale * jax.random.normal(keys[1], (enc_dim, enc_dim), jnp.float32),
            "wk": scale * jax.random.normal(keys[2], (enc_dim, enc_dim), jnp.float32),
            "wv": scale * jax.random.normal(keys[3], (enc_dim, enc_dim), jnp.float32),
            "wo": scale * jax.random.normal(keys[4], (enc_dim, enc_dim), jnp.float32),
            "bq": jnp.zeros((1, enc_dim), jnp.float32),
            "bk": jnp.zeros((1, enc_dim), jnp.float32),
            "bv": jnp.zeros((1, enc_dim), jnp.float32),
            "bo": jnp.zeros((1, enc_dim), jnp.float32),
            "g1": jnp.ones((1, enc_dim), jnp.float32),
            "be1": jnp.zeros((1, enc_dim), jnp.float32),
            "w1": scale * jax.random.normal(keys[5], (enc_dim, ffn_dim), jnp.float32),
            "b1": jnp.zeros((1, ffn_dim), jnp.float32),
            "w2": scale * jax.random.normal(keys[6], (ffn_dim, enc_dim), jnp.float32),
            "b2": jnp.zeros((1, enc_dim), jnp.float32),
            "g2": jnp.ones((1, enc_dim), jnp.float32),
            "be2": jnp.zeros((1, enc_dim), jnp.float32),
        }
        params["layers"].append(layer)
    return params


# ----------------------------- full encoder forward -----------------------------
def encoder_forward(X, X_lens, packed, num_heads, mask=None, compute_dtype=jnp.bfloat16):
    # X: (B, S, D).  X_lens / mask unused (mask=None eval path of the reference module).
    # `packed` comes from prepare_encoder_params (repack done once at load time).
    B, S, D = X.shape
    pos = packed["pos_emb"][:S]                          # (S, D) — pos-emb add fused in kernel
    return encoder_stack_pallas(X, pos, packed["stacked"], num_heads, compute_dtype)


# ----------------------------- pure-JAX reference (for verification) -----------------------------
def encoder_forward_ref(X, params, num_heads):
    B, S, D = X.shape
    dk = D // num_heads
    out = X + params["pos_emb"][:S][None, :, :]
    for lp in params["layers"]:
        x = out
        q = x @ lp["wq"] + lp["bq"]
        k = x @ lp["wk"] + lp["bk"]
        v = x @ lp["wv"] + lp["bv"]
        qh = q.reshape(B, S, num_heads, dk).transpose(0, 2, 1, 3)
        kh = k.reshape(B, S, num_heads, dk).transpose(0, 2, 1, 3)
        vh = v.reshape(B, S, num_heads, dk).transpose(0, 2, 1, 3)
        s = jnp.einsum("bhqd,bhkd->bhqk", qh, kh) / math.sqrt(dk)
        p = jax.nn.softmax(s, axis=-1)
        ctx = jnp.einsum("bhqk,bhkd->bhqd", p, vh).transpose(0, 2, 1, 3).reshape(B, S, D)
        attn_out = ctx @ lp["wo"] + lp["bo"]
        o1 = _layer_norm(x + attn_out, lp["g1"], lp["be1"])
        h1 = jnp.maximum(o1 @ lp["w1"] + lp["b1"], 0.0)
        ffn = h1 @ lp["w2"] + lp["b2"]
        out = _layer_norm(o1 + ffn, lp["g2"], lp["be2"])
    return out


if __name__ == "__main__":
    # small, module-consistent shapes — lane-dense everywhere (S, D, ffn multiples of 128)
    B, S, D = 2, 128, 128
    num_layers, num_heads, ffn_dim, max_len = 2, 4, 256, 128

    key = jax.random.PRNGKey(0)
    k_x, k_p = jax.random.split(key)
    X = jax.random.normal(k_x, (B, S, D), jnp.float32)
    X_lens = jnp.full((B,), S, jnp.int32)

    params = init_encoder_params(k_p, num_layers, D, num_heads, ffn_dim, max_len)
    ref = encoder_forward_ref(X, params, num_heads)

    # full-precision path: semantics check against the f32 reference (exact reciprocal)
    packed_f32 = prepare_encoder_params(params, num_heads, jnp.float32)
    out_f32 = encoder_forward(X, X_lens, packed_f32, num_heads, compute_dtype=jnp.float32)
    out_f32 = jax.block_until_ready(out_f32)
    assert out_f32.shape == (B, S, D)
    assert jnp.allclose(out_f32, ref, atol=5e-3, rtol=5e-3), "f32-mode mismatch vs JAX reference"

    # bf16 MXU path (default): looser tolerance vs the f32 reference
    packed_bf16 = prepare_encoder_params(params, num_heads, jnp.bfloat16)
    out_bf16 = encoder_forward(X, X_lens, packed_bf16, num_heads, compute_dtype=jnp.bfloat16)
    out_bf16 = jax.block_until_ready(out_bf16)
    assert out_bf16.shape == (B, S, D)
    assert jnp.allclose(out_bf16, ref, atol=5e-2, rtol=5e-2), "bf16-mode mismatch vs JAX reference"

    print("KERNEL_OK")
</pallas_src>

<mosaic_0001>
module attributes {stable_mosaic.version = 11 : i64} {
  func.func @encoder_stack_kernel(%arg0: i32, %arg1: i32, %arg2: memref<1x128x128xf32, #tpu.memory_space<vmem>>, %arg3: memref<128x128xf32, #tpu.memory_space<vmem>>, %arg4: memref<2x128x384xf32, #tpu.memory_space<vmem>>, %arg5: memref<2x1x384xf32, #tpu.memory_space<vmem>>, %arg6: memref<2x128x128xf32, #tpu.memory_space<vmem>>, %arg7: memref<2x1x128xf32, #tpu.memory_space<vmem>>, %arg8: memref<2x1x128xf32, #tpu.memory_space<vmem>>, %arg9: memref<2x1x128xf32, #tpu.memory_space<vmem>>, %arg10: memref<2x128x256xf32, #tpu.memory_space<vmem>>, %arg11: memref<2x1x256xf32, #tpu.memory_space<vmem>>, %arg12: memref<2x256x128xf32, #tpu.memory_space<vmem>>, %arg13: memref<2x1x128xf32, #tpu.memory_space<vmem>>, %arg14: memref<2x1x128xf32, #tpu.memory_space<vmem>>, %arg15: memref<2x1x128xf32, #tpu.memory_space<vmem>>, %arg16: memref<1x128x128xf32, #tpu.memory_space<vmem>>, %arg17: memref<128x128xf32, #tpu.memory_space<vmem>>, %arg18: memref<128x128xf32, #tpu.memory_space<vmem>>) attributes {dimension_semantics = [#tpu.dimension_semantics<parallel>, #tpu.dimension_semantics<arbitrary>], iteration_bounds = array<i64: 2, 2>, scalar_prefetch = 0 : i64, scratch_operands = 2 : i64, tpu.core_type = #tpu.core_type<tc>, window_params = [{transform_indices = @transform_0, window_bounds = array<i64: 1, 128, 128>}, {pipeline_mode = #tpu.pipeline_mode<synchronous>, transform_indices = @transform_1, window_bounds = array<i64: 128, 128>}, {pipeline_mode = #tpu.pipeline_mode<synchronous>, transform_indices = @transform_2, window_bounds = array<i64: 2, 128, 384>}, {pipeline_mode = #tpu.pipeline_mode<synchronous>, transform_indices = @transform_3, window_bounds = array<i64: 2, 1, 384>}, {pipeline_mode = #tpu.pipeline_mode<synchronous>, transform_indices = @transform_4, window_bounds = array<i64: 2, 128, 128>}, {pipeline_mode = #tpu.pipeline_mode<synchronous>, transform_indices = @transform_5, window_bounds = array<i64: 2, 1, 128>}, {pipeline_mode = #tpu.pipeline_mode<synchronous>, transform_indices = @transform_6, window_bounds = array<i64: 2, 1, 128>}, {pipeline_mode = #tpu.pipeline_mode<synchronous>, transform_indices = @transform_7, window_bounds = array<i64: 2, 1, 128>}, {pipeline_mode = #tpu.pipeline_mode<synchronous>, transform_indices = @transform_8, window_bounds = array<i64: 2, 128, 256>}, {pipeline_mode = #tpu.pipeline_mode<synchronous>, transform_indices = @transform_9, window_bounds = array<i64: 2, 1, 256>}, {pipeline_mode = #tpu.pipeline_mode<synchronous>, transform_indices = @transform_10, window_bounds = array<i64: 2, 256, 128>}, {pipeline_mode = #tpu.pipeline_mode<synchronous>, transform_indices = @transform_11, window_bounds = array<i64: 2, 1, 128>}, {pipeline_mode = #tpu.pipeline_mode<synchronous>, transform_indices = @transform_12, window_bounds = array<i64: 2, 1, 128>}, {pipeline_mode = #tpu.pipeline_mode<synchronous>, transform_indices = @transform_13, window_bounds = array<i64: 2, 1, 128>}, {transform_indices = @transform_14, window_bounds = array<i64: 1, 128, 128>}]} {
    %c0_i32 = arith.constant 0 : i32
    %0 = arith.cmpi eq, %arg1, %c0_i32 : i32
    %1 = arith.extui %0 : i1 to i32
    %c0_i32_0 = arith.constant 0 : i32
    %2 = arith.cmpi ne, %1, %c0_i32_0 : i32
    scf.if %2 {
      %c0_66 = arith.constant 0 : index
      %c0_67 = arith.constant 0 : index
      %c0_68 = arith.constant 0 : index
      %172 = vector.load %arg2[%c0_66, %c0_67, %c0_68] : memref<1x128x128xf32, #tpu.memory_space<vmem>>, vector<1x128x128xf32>
      %173 = vector.shape_cast %172 : vector<1x128x128xf32> to vector<128x128xf32>
      %c0_69 = arith.constant 0 : index
      %c0_70 = arith.constant 0 : index
      %174 = vector.load %arg3[%c0_69, %c0_70] : memref<128x128xf32, #tpu.memory_space<vmem>>, vector<128x128xf32>
      %175 = arith.addf %173, %174 : vector<128x128xf32>
      %c0_71 = arith.constant 0 : index
      %c0_72 = arith.constant 0 : index
      %176 = vector.load %arg17[%c0_71, %c0_72] : memref<128x128xf32, #tpu.memory_space<vmem>>, vector<128x128xf32>
      tpu.vector_store %arg17[%c0_71, %c0_72], %175 {strides = array<i32>} : memref<128x128xf32, #tpu.memory_space<vmem>>, vector<128x128xf32>,
    } else {
    }
    %c0 = arith.constant 0 : index
    %c0_1 = arith.constant 0 : index
    %3 = vector.load %arg17[%c0, %c0_1] : memref<128x128xf32, #tpu.memory_space<vmem>>, vector<128x128xf32>
    %4 = arith.index_cast %arg1 : i32 to index
    %c0_2 = arith.constant 0 : index
    %c0_3 = arith.constant 0 : index
    %5 = vector.load %arg4[%4, %c0_2, %c0_3] : memref<2x128x384xf32, #tpu.memory_space<vmem>>, vector<1x128x384xf32>
    %6 = vector.shape_cast %5 : vector<1x128x384xf32> to vector<128x384xf32>
    %cst = arith.constant dense<0.000000e+00> : vector<128x384xf32>
    %7 = tpu.matmul %3, %6, %cst {dimension_numbers = #tpu.dot_dimension_numbers<[1], [0], [0], [1], [0, 0, 1, 1], [], []>} : vector<128x128xf32>, vector<128x384xf32>, vector<128x384xf32> -> vector<128x384xf32>
    %8 = arith.index_cast %arg1 : i32 to index
    %c0_4 = arith.constant 0 : index
    %c0_5 = arith.constant 0 : index
    %9 = vector.load %arg5[%8, %c0_4, %c0_5] : memref<2x1x384xf32, #tpu.memory_space<vmem>>, vector<1x1x384xf32>
    %10 = vector.shape_cast %9 : vector<1x1x384xf32> to vector<1x384xf32>
    %11 = vector.broadcast %10 : vector<1x384xf32> to vector<128x384xf32>
    %12 = arith.addf %7, %11 : vector<128x384xf32>
    %13 = vector.extract_strided_slice %12 {offsets = [0, 0], sizes = [128, 128], strides = [1, 1]} : vector<128x384xf32> to vector<128x128xf32>
    %14 = vector.extract_strided_slice %12 {offsets = [0, 128], sizes = [128, 128], strides = [1, 1]} : vector<128x384xf32> to vector<128x128xf32>
    %15 = vector.extract_strided_slice %12 {offsets = [0, 256], sizes = [128, 128], strides = [1, 1]} : vector<128x384xf32> to vector<128x128xf32>
    %16 = vector.extract_strided_slice %13 {offsets = [0, 0], sizes = [128, 32], strides = [1, 1]} : vector<128x128xf32> to vector<128x32xf32>
    %17 = vector.extract_strided_slice %14 {offsets = [0, 0], sizes = [128, 32], strides = [1, 1]} : vector<128x128xf32> to vector<128x32xf32>
    %18 = vector.extract_strided_slice %15 {offsets = [0, 0], sizes = [128, 32], strides = [1, 1]} : vector<128x128xf32> to vector<128x32xf32>
    %cst_6 = arith.constant dense<0.000000e+00> : vector<128x128xf32>
    %19 = tpu.matmul %16, %17, %cst_6 {dimension_numbers = #tpu.dot_dimension_numbers<[1], [1], [0], [0], [0, 0, 1, 0], [], []>} : vector<128x32xf32>, vector<128x32xf32>, vector<128x128xf32> -> vector<128x128xf32>
    %cst_7 = arith.constant dense<0xFF800000> : vector<128xf32>
    %20 = vector.multi_reduction <maximumf>, %19, %cst_7 [1] : vector<128x128xf32> to vector<128xf32>
    %21 = vector.shape_cast %20 : vector<128xf32> to vector<128x1xf32>
    %22 = vector.broadcast %21 : vector<128x1xf32> to vector<128x128xf32>
    %23 = arith.subf %19, %22 : vector<128x128xf32>
    %24 = math.exp %23 : vector<128x128xf32>
    %cst_8 = arith.constant dense<0.000000e+00> : vector<128xf32>
    %25 = vector.multi_reduction <add>, %24, %cst_8 [1] : vector<128x128xf32> to vector<128xf32>
    %26 = vector.shape_cast %25 : vector<128xf32> to vector<128x1xf32>
    %27 = tpu.reciprocal %26 : vector<128x1xf32> -> vector<128x1xf32>
    %28 = vector.broadcast %27 : vector<128x1xf32> to vector<128x128xf32>
    %29 = arith.mulf %24, %28 : vector<128x128xf32>
    %cst_9 = arith.constant dense<0.000000e+00> : vector<128x32xf32>
    %30 = tpu.matmul %29, %18, %cst_9 {dimension_numbers = #tpu.dot_dimension_numbers<[1], [0], [0], [1], [0, 0, 1, 1], [], []>} : vector<128x128xf32>, vector<128x32xf32>, vector<128x32xf32> -> vector<128x32xf32>
    %c0_10 = arith.constant 0 : index
    %c0_11 = arith.constant 0 : index
    %31 = vector.load %arg18[%c0_10, %c0_11] : memref<128x128xf32, #tpu.memory_space<vmem>>, vector<128x32xf32>
    tpu.vector_store %arg18[%c0_10, %c0_11], %30 {strides = array<i32>} : memref<128x128xf32, #tpu.memory_space<vmem>>, vector<128x32xf32>,
    %32 = vector.extract_strided_slice %13 {offsets = [0, 32], sizes = [128, 32], strides = [1, 1]} : vector<128x128xf32> to vector<128x32xf32>
    %33 = vector.extract_strided_slice %14 {offsets = [0, 32], sizes = [128, 32], strides = [1, 1]} : vector<128x128xf32> to vector<128x32xf32>
    %34 = vector.extract_strided_slice %15 {offsets = [0, 32], sizes = [128, 32], strides = [1, 1]} : vector<128x128xf32> to vector<128x32xf32>
    %cst_12 = arith.constant dense<0.000000e+00> : vector<128x128xf32>
    %35 = tpu.matmul %32, %33, %cst_12 {dimension_numbers = #tpu.dot_dimension_numbers<[1], [1], [0], [0], [0, 0, 1, 0], [], []>} : vector<128x32xf32>, vector<128x32xf32>, vector<128x128xf32> -> vector<128x128xf32>
    %cst_13 = arith.constant dense<0xFF800000> : vector<128xf32>
    %36 = vector.multi_reduction <maximumf>, %35, %cst_13 [1] : vector<128x128xf32> to vector<128xf32>
    %37 = vector.shape_cast %36 : vector<128xf32> to vector<128x1xf32>
    %38 = vector.broadcast %37 : vector<128x1xf32> to vector<128x128xf32>
    %39 = arith.subf %35, %38 : vector<128x128xf32>
    %40 = math.exp %39 : vector<128x128xf32>
    %cst_14 = arith.constant dense<0.000000e+00> : vector<128xf32>
    %41 = vector.multi_reduction <add>, %40, %cst_14 [1] : vector<128x128xf32> to vector<128xf32>
    %42 = vector.shape_cast %41 : vector<128xf32> to vector<128x1xf32>
    %43 = tpu.reciprocal %42 : vector<128x1xf32> -> vector<128x1xf32>
    %44 = vector.broadcast %43 : vector<128x1xf32> to vector<128x128xf32>
    %45 = arith.mulf %40, %44 : vector<128x128xf32>
    %cst_15 = arith.constant dense<0.000000e+00> : vector<128x32xf32>
    %46 = tpu.matmul %45, %34, %cst_15 {dimension_numbers = #tpu.dot_dimension_numbers<[1], [0], [0], [1], [0, 0, 1, 1], [], []>} : vector<128x128xf32>, vector<128x32xf32>, vector<128x32xf32> -> vector<128x32xf32>
    %c0_16 = arith.constant 0 : index
    %c32 = arith.constant 32 : index
    %47 = vector.load %arg18[%c0_16, %c32] : memref<128x128xf32, #tpu.memory_space<vmem>>, vector<128x32xf32>
    tpu.vector_store %arg18[%c0_16, %c32], %46 {strides = array<i32>} : memref<128x128xf32, #tpu.memory_space<vmem>>, vector<128x32xf32>,
    %48 = vector.extract_strided_slice %13 {offsets = [0, 64], sizes = [128, 32], strides = [1, 1]} : vector<128x128xf32> to vector<128x32xf32>
    %49 = vector.extract_strided_slice %14 {offsets = [0, 64], sizes = [128, 32], strides = [1, 1]} : vector<128x128xf32> to vector<128x32xf32>
    %50 = vector.extract_strided_slice %15 {offsets = [0, 64], sizes = [128, 32], strides = [1, 1]} : vector<128x128xf32> to vector<128x32xf32>
    %cst_17 = arith.constant dense<0.000000e+00> : vector<128x128xf32>
    %51 = tpu.matmul %48, %49, %cst_17 {dimension_numbers = #tpu.dot_dimension_numbers<[1], [1], [0], [0], [0, 0, 1, 0], [], []>} : vector<128x32xf32>, vector<128x32xf32>, vector<128x128xf32> -> vector<128x128xf32>
    %cst_18 = arith.constant dense<0xFF800000> : vector<128xf32>
    %52 = vector.multi_reduction <maximumf>, %51, %cst_18 [1] : vector<128x128xf32> to vector<128xf32>
    %53 = vector.shape_cast %52 : vector<128xf32> to vector<128x1xf32>
    %54 = vector.broadcast %53 : vector<128x1xf32> to vector<128x128xf32>
    %55 = arith.subf %51, %54 : vector<128x128xf32>
    %56 = math.exp %55 : vector<128x128xf32>
    %cst_19 = arith.constant dense<0.000000e+00> : vector<128xf32>
    %57 = vector.multi_reduction <add>, %56, %cst_19 [1] : vector<128x128xf32> to vector<128xf32>
    %58 = vector.shape_cast %57 : vector<128xf32> to vector<128x1xf32>
    %59 = tpu.reciprocal %58 : vector<128x1xf32> -> vector<128x1xf32>
    %60 = vector.broadcast %59 : vector<128x1xf32> to vector<128x128xf32>
    %61 = arith.mulf %56, %60 : vector<128x128xf32>
    %cst_20 = arith.constant dense<0.000000e+00> : vector<128x32xf32>
    %62 = tpu.matmul %61, %50, %cst_20 {dimension_numbers = #tpu.dot_dimension_numbers<[1], [0], [0], [1], [0, 0, 1, 1], [], []>} : vector<128x128xf32>, vector<128x32xf32>, vector<128x32xf32> -> vector<128x32xf32>
    %c0_21 = arith.constant 0 : index
    %c64 = arith.constant 64 : index
    %63 = vector.load %arg18[%c0_21, %c64] : memref<128x128xf32, #tpu.memory_space<vmem>>, vector<128x32xf32>
    tpu.vector_store %arg18[%c0_21, %c64], %62 {strides = array<i32>} : memref<128x128xf32, #tpu.memory_space<vmem>>, vector<128x32xf32>,
    %64 = vector.extract_strided_slice %13 {offsets = [0, 96], sizes = [128, 32], strides = [1, 1]} : vector<128x128xf32> to vector<128x32xf32>
    %65 = vector.extract_strided_slice %14 {offsets = [0, 96], sizes = [128, 32], strides = [1, 1]} : vector<128x128xf32> to vector<128x32xf32>
    %66 = vector.extract_strided_slice %15 {offsets = [0, 96], sizes = [128, 32], strides = [1, 1]} : vector<128x128xf32> to vector<128x32xf32>
    %cst_22 = arith.constant dense<0.000000e+00> : vector<128x128xf32>
    %67 = tpu.matmul %64, %65, %cst_22 {dimension_numbers = #tpu.dot_dimension_numbers<[1], [1], [0], [0], [0, 0, 1, 0], [], []>} : vector<128x32xf32>, vector<128x32xf32>, vector<128x128xf32> -> vector<128x128xf32>
    %cst_23 = arith.constant dense<0xFF800000> : vector<128xf32>
    %68 = vector.multi_reduction <maximumf>, %67, %cst_23 [1] : vector<128x128xf32> to vector<128xf32>
    %69 = vector.shape_cast %68 : vector<128xf32> to vector<128x1xf32>
    %70 = vector.broadcast %69 : vector<128x1xf32> to vector<128x128xf32>
    %71 = arith.subf %67, %70 : vector<128x128xf32>
    %72 = math.exp %71 : vector<128x128xf32>
    %cst_24 = arith.constant dense<0.000000e+00> : vector<128xf32>
    %73 = vector.multi_reduction <add>, %72, %cst_24 [1] : vector<128x128xf32> to vector<128xf32>
    %74 = vector.shape_cast %73 : vector<128xf32> to vector<128x1xf32>
    %75 = tpu.reciprocal %74 : vector<128x1xf32> -> vector<128x1xf32>
    %76 = vector.broadcast %75 : vector<128x1xf32> to vector<128x128xf32>
    %77 = arith.mulf %72, %76 : vector<128x128xf32>
    %cst_25 = arith.constant dense<0.000000e+00> : vector<128x32xf32>
    %78 = tpu.matmul %77, %66, %cst_25 {dimension_numbers = #tpu.dot_dimension_numbers<[1], [0], [0], [1], [0, 0, 1, 1], [], []>} : vector<128x128xf32>, vector<128x32xf32>, vector<128x32xf32> -> vector<128x32xf32>
    %c0_26 = arith.constant 0 : index
    %c96 = arith.constant 96 : index
    %79 = vector.load %arg18[%c0_26, %c96] : memref<128x128xf32, #tpu.memory_space<vmem>>, vector<128x32xf32>
    tpu.vector_store %arg18[%c0_26, %c96], %78 {strides = array<i32>} : memref<128x128xf32, #tpu.memory_space<vmem>>, vector<128x32xf32>,
    %c0_27 = arith.constant 0 : index
    %c0_28 = arith.constant 0 : index
    %80 = vector.load %arg18[%c0_27, %c0_28] : memref<128x128xf32, #tpu.memory_space<vmem>>, vector<128x128xf32>
    %81 = arith.index_cast %arg1 : i32 to index
    %c0_29 = arith.constant 0 : index
    %c0_30 = arith.constant 0 : index
    %82 = vector.load %arg6[%81, %c0_29, %c0_30] : memref<2x128x128xf32, #tpu.memory_space<vmem>>, vector<1x128x128xf32>
    %83 = vector.shape_cast %82 : vector<1x128x128xf32> to vector<128x128xf32>
    %cst_31 = arith.constant dense<0.000000e+00> : vector<128x128xf32>
    %84 = tpu.matmul %80, %83, %cst_31 {dimension_numbers = #tpu.dot_dimension_numbers<[1], [0], [0], [1], [0, 0, 1, 1], [], []>} : vector<128x128xf32>, vector<128x128xf32>, vector<128x128xf32> -> vector<128x128xf32>
    %85 = arith.index_cast %arg1 : i32 to index
    %c0_32 = arith.constant 0 : index
    %c0_33 = arith.constant 0 : index
    %86 = vector.load %arg7[%85, %c0_32, %c0_33] : memref<2x1x128xf32, #tpu.memory_space<vmem>>, vector<1x1x128xf32>
    %87 = vector.shape_cast %86 : vector<1x1x128xf32> to vector<1x128xf32>
    %88 = vector.broadcast %87 : vector<1x128xf32> to vector<128x128xf32>
    %89 = arith.addf %84, %88 : vector<128x128xf32>
    %90 = arith.addf %3, %89 : vector<128x128xf32>
    %91 = arith.index_cast %arg1 : i32 to index
    %c0_34 = arith.constant 0 : index
    %c0_35 = arith.constant 0 : index
    %92 = vector.load %arg8[%91, %c0_34, %c0_35] : memref<2x1x128xf32, #tpu.memory_space<vmem>>, vector<1x1x128xf32>
    %93 = vector.shape_cast %92 : vector<1x1x128xf32> to vector<1x128xf32>
    %94 = arith.index_cast %arg1 : i32 to index
    %c0_36 = arith.constant 0 : index
    %c0_37 = arith.constant 0 : index
    %95 = vector.load %arg9[%94, %c0_36, %c0_37] : memref<2x1x128xf32, #tpu.memory_space<vmem>>, vector<1x1x128xf32>
    %96 = vector.shape_cast %95 : vector<1x1x128xf32> to vector<1x128xf32>
    %cst_38 = arith.constant dense<0.000000e+00> : vector<128xf32>
    %97 = vector.multi_reduction <add>, %90, %cst_38 [1] : vector<128x128xf32> to vector<128xf32>
    %98 = vector.shape_cast %97 : vector<128xf32> to vector<128x1xf32>
    %cst_39 = arith.constant 1.280000e+02 : f32
    %99 = vector.broadcast %cst_39 : f32 to vector<128x1xf32>
    %100 = arith.divf %98, %99 : vector<128x1xf32>
    %101 = vector.broadcast %100 : vector<128x1xf32> to vector<128x128xf32>
    %102 = arith.subf %90, %101 : vector<128x128xf32>
    %103 = arith.mulf %102, %102 : vector<128x128xf32>
    %cst_40 = arith.constant dense<0.000000e+00> : vector<128xf32>
    %104 = vector.multi_reduction <add>, %103, %cst_40 [1] : vector<128x128xf32> to vector<128xf32>
    %105 = vector.shape_cast %104 : vector<128xf32> to vector<128x1xf32>
    %cst_41 = arith.constant 1.280000e+02 : f32
    %106 = vector.broadcast %cst_41 : f32 to vector<128x1xf32>
    %107 = arith.divf %105, %106 : vector<128x1xf32>
    %108 = vector.broadcast %100 : vector<128x1xf32> to vector<128x128xf32>
    %109 = arith.subf %90, %108 : vector<128x128xf32>
    %cst_42 = arith.constant 9.99999974E-6 : f32
    %110 = vector.broadcast %cst_42 : f32 to vector<128x1xf32>
    %111 = arith.addf %107, %110 : vector<128x1xf32>
    %112 = math.rsqrt %111 : vector<128x1xf32>
    %113 = vector.broadcast %112 : vector<128x1xf32> to vector<128x128xf32>
    %114 = arith.mulf %109, %113 : vector<128x128xf32>
    %115 = vector.broadcast %93 : vector<1x128xf32> to vector<128x128xf32>
    %116 = arith.mulf %114, %115 : vector<128x128xf32>
    %117 = vector.broadcast %96 : vector<1x128xf32> to vector<128x128xf32>
    %118 = arith.addf %116, %117 : vector<128x128xf32>
    %119 = arith.index_cast %arg1 : i32 to index
    %c0_43 = arith.constant 0 : index
    %c0_44 = arith.constant 0 : index
    %120 = vector.load %arg10[%119, %c0_43, %c0_44] : memref<2x128x256xf32, #tpu.memory_space<vmem>>, vector<1x128x256xf32>
    %121 = vector.shape_cast %120 : vector<1x128x256xf32> to vector<128x256xf32>
    %cst_45 = arith.constant dense<0.000000e+00> : vector<128x256xf32>
    %122 = tpu.matmul %118, %121, %cst_45 {dimension_numbers = #tpu.dot_dimension_numbers<[1], [0], [0], [1], [0, 0, 1, 1], [], []>} : vector<128x128xf32>, vector<128x256xf32>, vector<128x256xf32> -> vector<128x256xf32>
    %123 = arith.index_cast %arg1 : i32 to index
    %c0_46 = arith.constant 0 : index
    %c0_47 = arith.constant 0 : index
    %124 = vector.load %arg11[%123, %c0_46, %c0_47] : memref<2x1x256xf32, #tpu.memory_space<vmem>>, vector<1x1x256xf32>
    %125 = vector.shape_cast %124 : vector<1x1x256xf32> to vector<1x256xf32>
    %126 = vector.broadcast %125 : vector<1x256xf32> to vector<128x256xf32>
    %127 = arith.addf %122, %126 : vector<128x256xf32>
    %cst_48 = arith.constant 0.000000e+00 : f32
    %128 = vector.broadcast %cst_48 : f32 to vector<128x256xf32>
    %129 = arith.maximumf %127, %128 : vector<128x256xf32>
    %130 = arith.index_cast %arg1 : i32 to index
    %c0_49 = arith.constant 0 : index
    %c0_50 = arith.constant 0 : index
    %131 = vector.load %arg12[%130, %c0_49, %c0_50] : memref<2x256x128xf32, #tpu.memory_space<vmem>>, vector<1x256x128xf32>
    %132 = vector.shape_cast %131 : vector<1x256x128xf32> to vector<256x128xf32>
    %cst_51 = arith.constant dense<0.000000e+00> : vector<128x128xf32>
    %133 = tpu.matmul %129, %132, %cst_51 {dimension_numbers = #tpu.dot_dimension_numbers<[1], [0], [0], [1], [0, 0, 1, 1], [], []>} : vector<128x256xf32>, vector<256x128xf32>, vector<128x128xf32> -> vector<128x128xf32>
    %134 = arith.index_cast %arg1 : i32 to index
    %c0_52 = arith.constant 0 : index
    %c0_53 = arith.constant 0 : index
    %135 = vector.load %arg13[%134, %c0_52, %c0_53] : memref<2x1x128xf32, #tpu.memory_space<vmem>>, vector<1x1x128xf32>
    %136 = vector.shape_cast %135 : vector<1x1x128xf32> to vector<1x128xf32>
    %137 = vector.broadcast %136 : vector<1x128xf32> to vector<128x128xf32>
    %138 = arith.addf %133, %137 : vector<128x128xf32>
    %139 = arith.addf %118, %138 : vector<128x128xf32>
    %140 = arith.index_cast %arg1 : i32 to index
    %c0_54 = arith.constant 0 : index
    %c0_55 = arith.constant 0 : index
    %141 = vector.load %arg14[%140, %c0_54, %c0_55] : memref<2x1x128xf32, #tpu.memory_space<vmem>>, vector<1x1x128xf32>
    %142 = vector.shape_cast %141 : vector<1x1x128xf32> to vector<1x128xf32>
    %143 = arith.index_cast %arg1 : i32 to index
    %c0_56 = arith.constant 0 : index
    %c0_57 = arith.constant 0 : index
    %144 = vector.load %arg15[%143, %c0_56, %c0_57] : memref<2x1x128xf32, #tpu.memory_space<vmem>>, vector<1x1x128xf32>
    %145 = vector.shape_cast %144 : vector<1x1x128xf32> to vector<1x128xf32>
    %cst_58 = arith.constant dense<0.000000e+00> : vector<128xf32>
    %146 = vector.multi_reduction <add>, %139, %cst_58 [1] : vector<128x128xf32> to vector<128xf32>
    %147 = vector.shape_cast %146 : vector<128xf32> to vector<128x1xf32>
    %cst_59 = arith.constant 1.280000e+02 : f32
    %148 = vector.broadcast %cst_59 : f32 to vector<128x1xf32>
    %149 = arith.divf %147, %148 : vector<128x1xf32>
    %150 = vector.broadcast %149 : vector<128x1xf32> to vector<128x128xf32>
    %151 = arith.subf %139, %150 : vector<128x128xf32>
    %152 = arith.mulf %151, %151 : vector<128x128xf32>
    %cst_60 = arith.constant dense<0.000000e+00> : vector<128xf32>
    %153 = vector.multi_reduction <add>, %152, %cst_60 [1] : vector<128x128xf32> to vector<128xf32>
    %154 = vector.shape_cast %153 : vector<128xf32> to vector<128x1xf32>
    %cst_61 = arith.constant 1.280000e+02 : f32
    %155 = vector.broadcast %cst_61 : f32 to vector<128x1xf32>
    %156 = arith.divf %154, %155 : vector<128x1xf32>
    %157 = vector.broadcast %149 : vector<128x1xf32> to vector<128x128xf32>
    %158 = arith.subf %139, %157 : vector<128x128xf32>
    %cst_62 = arith.constant 9.99999974E-6 : f32
    %159 = vector.broadcast %cst_62 : f32 to vector<128x1xf32>
    %160 = arith.addf %156, %159 : vector<128x1xf32>
    %161 = math.rsqrt %160 : vector<128x1xf32>
    %162 = vector.broadcast %161 : vector<128x1xf32> to vector<128x128xf32>
    %163 = arith.mulf %158, %162 : vector<128x128xf32>
    %164 = vector.broadcast %142 : vector<1x128xf32> to vector<128x128xf32>
    %165 = arith.mulf %163, %164 : vector<128x128xf32>
    %166 = vector.broadcast %145 : vector<1x128xf32> to vector<128x128xf32>
    %167 = arith.addf %165, %166 : vector<128x128xf32>
    %c0_63 = arith.constant 0 : index
    %c0_64 = arith.constant 0 : index
    %168 = vector.load %arg17[%c0_63, %c0_64] : memref<128x128xf32, #tpu.memory_space<vmem>>, vector<128x128xf32>
    tpu.vector_store %arg17[%c0_63, %c0_64], %167 {strides = array<i32>} : memref<128x128xf32, #tpu.memory_space<vmem>>, vector<128x128xf32>,
    %c1_i32 = arith.constant 1 : i32
    %169 = arith.cmpi eq, %arg1, %c1_i32 : i32
    %170 = arith.extui %169 : i1 to i32
    %c0_i32_65 = arith.constant 0 : i32
    %171 = arith.cmpi ne, %170, %c0_i32_65 : i32
    scf.if %171 {
      %c0_66 = arith.constant 0 : index
      %c0_67 = arith.constant 0 : index
      %c0_68 = arith.constant 0 : index
      %172 = vector.load %arg16[%c0_66, %c0_67, %c0_68] : memref<1x128x128xf32, #tpu.memory_space<vmem>>, vector<1x128x128xf32>
      %173 = vector.shape_cast %172 : vector<1x128x128xf32> to vector<128x128xf32>
      %174 = vector.shape_cast %167 : vector<128x128xf32> to vector<1x128x128xf32>
      tpu.vector_store %arg16[%c0_66, %c0_67, %c0_68], %174 {strides = array<i32>} : memref<1x128x128xf32, #tpu.memory_space<vmem>>, vector<1x128x128xf32>,
    } else {
    }
    return
  }
  func.func @transform_0(%arg0: i32, %arg1: i32) -> (i32, i32, i32) {
    %c0_i32 = arith.constant 0 : i32
    %c0_i32_0 = arith.constant 0 : i32
    %c0_i32_1 = arith.constant 0 : i32
    return %arg0, %c0_i32, %c0_i32_0 : i32, i32, i32
  }
  func.func @transform_1(%arg0: i32, %arg1: i32) -> (i32, i32) {
    %c0_i32 = arith.constant 0 : i32
    %c0_i32_0 = arith.constant 0 : i32
    %c0_i32_1 = arith.constant 0 : i32
    return %c0_i32, %c0_i32_0 : i32, i32
  }
  func.func @transform_2(%arg0: i32, %arg1: i32) -> (i32, i32, i32) {
    %c0_i32 = arith.constant 0 : i32
    %c0_i32_0 = arith.constant 0 : i32
    %c0_i32_1 = arith.constant 0 : i32
    %c0_i32_2 = arith.constant 0 : i32
    return %c0_i32, %c0_i32_0, %c0_i32_1 : i32, i32, i32
  }
  func.func @transform_3(%arg0: i32, %arg1: i32) -> (i32, i32, i32) {
    %c0_i32 = arith.constant 0 : i32
    %c0_i32_0 = arith.constant 0 : i32
    %c0_i32_1 = arith.constant 0 : i32
    %c0_i32_2 = arith.constant 0 : i32
    return %c0_i32, %c0_i32_0, %c0_i32_1 : i32, i32, i32
  }
  func.func @transform_4(%arg0: i32, %arg1: i32) -> (i32, i32, i32) {
    %c0_i32 = arith.constant 0 : i32
    %c0_i32_0 = arith.constant 0 : i32
    %c0_i32_1 = arith.constant 0 : i32
    %c0_i32_2 = arith.constant 0 : i32
    return %c0_i32, %c0_i32_0, %c0_i32_1 : i32, i32, i32
  }
  func.func @transform_5(%arg0: i32, %arg1: i32) -> (i32, i32, i32) {
    %c0_i32 = arith.constant 0 : i32
    %c0_i32_0 = arith.constant 0 : i32
    %c0_i32_1 = arith.constant 0 : i32
    %c0_i32_2 = arith.constant 0 : i32
    return %c0_i32, %c0_i32_0, %c0_i32_1 : i32, i32, i32
  }
  func.func @transform_6(%arg0: i32, %arg1: i32) -> (i32, i32, i32) {
    %c0_i32 = arith.constant 0 : i32
    %c0_i32_0 = arith.constant 0 : i32
    %c0_i32_1 = arith.constant 0 : i32
    %c0_i32_2 = arith.constant 0 : i32
    return %c0_i32, %c0_i32_0, %c0_i32_1 : i32, i32, i32
  }
  func.func @transform_7(%arg0: i32, %arg1: i32) -> (i32, i32, i32) {
    %c0_i32 = arith.constant 0 : i32
    %c0_i32_0 = arith.constant 0 : i32
    %c0_i32_1 = arith.constant 0 : i32
    %c0_i32_2 = arith.constant 0 : i32
    return %c0_i32, %c0_i32_0, %c0_i32_1 : i32, i32, i32
  }
  func.func @transform_8(%arg0: i32, %arg1: i32) -> (i32, i32, i32) {
    %c0_i32 = arith.constant 0 : i32
    %c0_i32_0 = arith.constant 0 : i32
    %c0_i32_1 = arith.constant 0 : i32
    %c0_i32_2 = arith.constant 0 : i32
    return %c0_i32, %c0_i32_0, %c0_i32_1 : i32, i32, i32
  }
  func.func @transform_9(%arg0: i32, %arg1: i32) -> (i32, i32, i32) {
    %c0_i32 = arith.constant 0 : i32
    %c0_i32_0 = arith.constant 0 : i32
    %c0_i32_1 = arith.constant 0 : i32
    %c0_i32_2 = arith.constant 0 : i32
    return %c0_i32, %c0_i32_0, %c0_i32_1 : i32, i32, i32
  }
  func.func @transform_10(%arg0: i32, %arg1: i32) -> (i32, i32, i32) {
    %c0_i32 = arith.constant 0 : i32
    %c0_i32_0 = arith.constant 0 : i32
    %c0_i32_1 = arith.constant 0 : i32
    %c0_i32_2 = arith.constant 0 : i32
    return %c0_i32, %c0_i32_0, %c0_i32_1 : i32, i32, i32
  }
  func.func @transform_11(%arg0: i32, %arg1: i32) -> (i32, i32, i32) {
    %c0_i32 = arith.constant 0 : i32
    %c0_i32_0 = arith.constant 0 : i32
    %c0_i32_1 = arith.constant 0 : i32
    %c0_i32_2 = arith.constant 0 : i32
    return %c0_i32, %c0_i32_0, %c0_i32_1 : i32, i32, i32
  }
  func.func @transform_12(%arg0: i32, %arg1: i32) -> (i32, i32, i32) {
    %c0_i32 = arith.constant 0 : i32
    %c0_i32_0 = arith.constant 0 : i32
    %c0_i32_1 = arith.constant 0 : i32
    %c0_i32_2 = arith.constant 0 : i32
    return %c0_i32, %c0_i32_0, %c0_i32_1 : i32, i32, i32
  }
  func.func @transform_13(%arg0: i32, %arg1: i32) -> (i32, i32, i32) {
    %c0_i32 = arith.constant 0 : i32
    %c0_i32_0 = arith.constant 0 : i32
    %c0_i32_1 = arith.constant 0 : i32
    %c0_i32_2 = arith.constant 0 : i32
    return %c0_i32, %c0_i32_0, %c0_i32_1 : i32, i32, i32
  }
  func.func @transform_14(%arg0: i32, %arg1: i32) -> (i32, i32, i32) {
    %c0_i32 = arith.constant 0 : i32
    %c0_i32_0 = arith.constant 0 : i32
    %c0_i32_1 = arith.constant 0 : i32
    return %arg0, %c0_i32, %c0_i32_0 : i32, i32, i32
  }
}

</mosaic_0001>

<llo_original>
// kernel: tpu_custom_call.1
$region0: #{tpu_custom_call.1}
  #allocation0 [shape = 'u32[]', space=smem, size = 0x4, offset = 0x4, fixed_abs, tag = 'smem constant byte address 0x4 - core index']
  #allocation1 [shape = 'u32[144,128]{1,0:T(1,128)}', space=vmem, size = 0x12000, scoped, tag = 'internal scratch']
  #allocation2 [shape = 'f32[128,128]{1,0:T(8,128)}', space=vmem, size = 0x10000, scoped, tag = 'scratch operand']
  #allocation3 [shape = 'f32[128,128]{1,0:T(8,128)}', space=vmem, size = 0x10000, scoped, tag = 'scratch operand']
  %s0 = inlined_call_operand.hbm [shape: f32[2,128,128], index: 0, kind: input, shape index: {}]
  %s1 = inlined_call_operand.hbm [shape: f32[128,128], index: 1, kind: input, shape index: {}]
  %s2 = inlined_call_operand.hbm [shape: f32[2,128,384], index: 2, kind: input, shape index: {}]
  %s3 = inlined_call_operand.vmem [shape: f32[2,1,384], index: 3, kind: input, shape index: {}]
  %s4 = inlined_call_operand.hbm [shape: f32[2,128,128], index: 4, kind: input, shape index: {}]
  %s5 = inlined_call_operand.vmem [shape: f32[2,1,128], index: 5, kind: input, shape index: {}]
  %s6 = inlined_call_operand.vmem [shape: f32[2,1,128], index: 6, kind: input, shape index: {}]
  %s7 = inlined_call_operand.vmem [shape: f32[2,1,128], index: 7, kind: input, shape index: {}]
  %s8 = inlined_call_operand.hbm [shape: f32[2,128,256], index: 8, kind: input, shape index: {}]
  %s9 = inlined_call_operand.vmem [shape: f32[2,1,256], index: 9, kind: input, shape index: {}]
  %s10 = inlined_call_operand.hbm [shape: f32[2,256,128], index: 10, kind: input, shape index: {}]
  %s11 = inlined_call_operand.vmem [shape: f32[2,1,128], index: 11, kind: input, shape index: {}]
  %s12 = inlined_call_operand.vmem [shape: f32[2,1,128], index: 12, kind: input, shape index: {}]
  %s13 = inlined_call_operand.vmem [shape: f32[2,1,128], index: 13, kind: input, shape index: {}]
  %s14 = inlined_call_operand.hbm [shape: f32[2,128,128], index: 14, kind: output, shape index: {}]
  %s15 = sld [smem:[#allocation0]]
  $region121: #{tpu_custom_call.1} parent=0
    _
  %s17 = ssub.s32 1, %s15
  %s18 = scalar_select 0, %s17, %s15
  $region1: #{tpu_custom_call.1} parent=0
    #allocation4 [shape = 'u8[131072]{0}', space=vmem, size = 0x20000, scoped, tag = 'input window, operand 0']
    #allocation5 [shape = 's32[2]{0}', space=sflag, size = 0x8, scoped, tag = 'scoped memory for tpu_custom_call.1']
    #allocation6 [shape = 's32[2]{0}', space=sflag, size = 0x8, scoped, tag = 'scoped memory for tpu_custom_call.1']
    #allocation7 [shape = 'u8[65536]{0}', space=vmem, size = 0x10000, scoped, tag = 'input window, operand 1, single buffered']
    #allocation8 [shape = 's32[1]{0}', space=sflag, size = 0x4, scoped, tag = 'scoped memory for tpu_custom_call.1']
    #allocation9 [shape = 'u8[393216]{0}', space=vmem, size = 0x60000, scoped, tag = 'input window, operand 2, single buffered']
    #allocation10 [shape = 'u8[131072]{0}', space=vmem, size = 0x20000, scoped, tag = 'input window, operand 4, single buffered']
    #allocation11 [shape = 's32[1]{0}', space=sflag, size = 0x4, scoped, tag = 'scoped memory for tpu_custom_call.1']
    #allocation12 [shape = 'u8[262144]{0}', space=vmem, size = 0x40000, scoped, tag = 'input window, operand 8, single buffered']
    #allocation13 [shape = 'u8[262144]{0}', space=vmem, size = 0x40000, scoped, tag = 'input window, operand 10, single buffered']
    #allocation14 [shape = 's32[1]{0}', space=sflag, size = 0x4, scoped, tag = 'scoped memory for tpu_custom_call.1']
    #allocation15 [shape = 'u8[131072]{0}', space=vmem, size = 0x20000, scoped, tag = 'output window, operand 0']
    %19 = vsyncpa [#allocation5], 0
    %s20 = scalar_lea.sflag [#allocation5], 1
    %21 = vsyncpa %s20, 0
    %22 = vsyncpa [#allocation8], 0
    %23 = vsyncpa [#allocation11], 0
    %24 = vsyncpa [#allocation14], 0
    %25 = vsyncpa [#allocation6], 0
    %s26 = scalar_lea.sflag [#allocation6], 1
    %27 = vsyncpa %s26, 0
    loop: start=0, step=1, limit=6
    $region2: #{tpu_custom_call.1} parent=1 // loop_pre_header
      _
    $region3: #{tpu_custom_call.1} parent=1 // loop_header
      %s29 = sphi 0, %s33
      %p30 = scmp.ge.s32.totalorder %s29, 6
      %s36 = sphi 0, %s48
      %s37 = sphi 0, %s44
      %s38 = sphi 0, %s36
      %s39 = sphi 0, %s37
      %s40 = sphi 0, %s38
      %s41 = sphi 0, %s39
      %s51 = sphi 0, %s53
      %s54 = sphi 0, %s51
      %s55 = sphi 0, %s54
      %s71 = sphi 0, %s55
      %s75 = sphi 0, %s75
      %s77 = sphi 0, %s75
      %s78 = sphi 0, %s77
      %s92 = sphi 0, %s78
      %s96 = sphi 0, %s96
      %s98 = sphi 0, %s96
      %s99 = sphi 0, %s98
      %s113 = sphi 0, %s99
      %s117 = sphi 0, %s117
      %s119 = sphi 0, %s117
      %s120 = sphi 0, %s119
      %s134 = sphi 0, %s120
      %s138 = sphi 0, %s138
      %s140 = sphi 0, %s138
      %s141 = sphi 0, %s140
      %s155 = sphi 0, %s141
      %s159 = sphi 0, %s159
      %s161 = sphi 0, %s159
      %s162 = sphi 0, %s161
      %s176 = sphi 0, %s162
      %s180 = sphi 0, %s180
      %s182 = sphi 0, %s180
      %s183 = sphi 0, %s182
      %s197 = sphi 0, %s183
      %s201 = sphi 0, %s201
      %s203 = sphi 0, %s201
      %s204 = sphi 0, %s203
      %s218 = sphi 0, %s204
      %s222 = sphi 0, %s222
      %s224 = sphi 0, %s222
      %s225 = sphi 0, %s224
      %s239 = sphi 0, %s225
      %s243 = sphi 0, %s243
      %s245 = sphi 0, %s243
      %s246 = sphi 0, %s245
      %s260 = sphi 0, %s246
      %s264 = sphi 0, %s264
      %s266 = sphi 0, %s264
      %s267 = sphi 0, %s266
      %s281 = sphi 0, %s267
      %s285 = sphi 0, %s285
      %s287 = sphi 0, %s285
      %s288 = sphi 0, %s287
      %s302 = sphi 0, %s288
      %s306 = sphi 0, %s306
      %s308 = sphi 0, %s306
      %s309 = sphi 0, %s308
      %s323 = sphi 0, %s309
      %s327 = sphi 0, %s327
      %s329 = sphi 0, %s327
      %s330 = sphi 0, %s329
      %s344 = sphi 0, %s330
      %s350 = sphi 0, %s352
      %s353 = sphi 0, %s350
      %s354 = sphi 0, %s353
      %s370 = sphi 0, %s354
    $region4: #{tpu_custom_call.1} parent=1 // loop_header_branch
      %32 = sbr.rel (%p30) target = $region8
    $region5: #{tpu_custom_call.1} parent=1 // loop_body
      %s34 = ssub.s32 %s29, 1
      %s35 = ssub.s32 %s29, 2
      %s42 = sadd.s32 1, %s37
      %p43 = scmp.ge.s32.totalorder %s42, 2
      %s44 = scalar_select %p43, 0, %s42
      %s45 = sadd.s32 1, %s36
      %s46 = scalar_select %p43, %s45, %s36
      %p47 = scmp.ge.s32.totalorder %s46, 2
      %s48 = scalar_select %p47, 0, %s46
      %s49 = ssub.s32 %s36, %s48
      %p50 = scmp.eq.s32.totalorder %s49, 0
      %s52 = sadd.s32 %s51, 1
      %s53 = scalar_select %p50, %s51, %s52
      %p56 = pneg %p50
      %p57 = scmp.eq.s32.totalorder %s29, 3
      %p58 = por %p56, %p57
      %p59 = scmp.ne.s32.totalorder %s51, %s54
      %p60 = scmp.eq.s32.totalorder %s29, 0
      %p61 = por %p59, %p60
      %p62 = scmp.ne.s32.totalorder %s51, %s54
      %p63 = scmp.eq.s32.totalorder %s34, 3
      %p64 = por %p62, %p63
      %p65 = scmp.ne.s32.totalorder %s54, %s55
      %p66 = scmp.eq.s32.totalorder %s34, 0
      %p67 = por %p65, %p66
      %p68 = scmp.ne.s32.totalorder %s54, %s55
      %p69 = scmp.eq.s32.totalorder %s35, 3
      %p70 = por %p68, %p69
      %p72 = scmp.ne.s32.totalorder %s55, %s71
      %p73 = scmp.eq.s32.totalorder %s35, 0
      %p74 = por %p72, %p73
      %s76 = sadd.s32 %s75, 1
      %p79 = scmp.eq.s32.totalorder %s29, 3
      %p80 = scmp.ne.s32.totalorder %s75, %s77
      %p81 = scmp.eq.s32.totalorder %s29, 0
      %p82 = por %p80, %p81
      %p83 = scmp.ne.s32.totalorder %s75, %s77
      %p84 = scmp.eq.s32.totalorder %s34, 3
      %p85 = por %p83, %p84
      %p86 = scmp.ne.s32.totalorder %s77, %s78
      %p87 = scmp.eq.s32.totalorder %s34, 0
      %p88 = por %p86, %p87
      %p89 = scmp.ne.s32.totalorder %s77, %s78
      %p90 = scmp.eq.s32.totalorder %s35, 3
      %p91 = por %p89, %p90
      %p93 = scmp.ne.s32.totalorder %s78, %s92
      %p94 = scmp.eq.s32.totalorder %s35, 0
      %p95 = por %p93, %p94
      %s97 = sadd.s32 %s96, 1
      %p100 = scmp.eq.s32.totalorder %s29, 3
      %p101 = scmp.ne.s32.totalorder %s96, %s98
      %p102 = scmp.eq.s32.totalorder %s29, 0
      %p103 = por %p101, %p102
      %p104 = scmp.ne.s32.totalorder %s96, %s98
      %p105 = scmp.eq.s32.totalorder %s34, 3
      %p106 = por %p104, %p105
      %p107 = scmp.ne.s32.totalorder %s98, %s99
      %p108 = scmp.eq.s32.totalorder %s34, 0
      %p109 = por %p107, %p108
      %p110 = scmp.ne.s32.totalorder %s98, %s99
      %p111 = scmp.eq.s32.totalorder %s35, 3
      %p112 = por %p110, %p111
      %p114 = scmp.ne.s32.totalorder %s99, %s113
      %p115 = scmp.eq.s32.totalorder %s35, 0
      %p116 = por %p114, %p115
      %s118 = sadd.s32 %s117, 1
      %p121 = scmp.eq.s32.totalorder %s29, 3
      %p122 = scmp.ne.s32.totalorder %s117, %s119
      %p123 = scmp.eq.s32.totalorder %s29, 0
      %p124 = por %p122, %p123
      %p125 = scmp.ne.s32.totalorder %s117, %s119
      %p126 = scmp.eq.s32.totalorder %s34, 3
      %p127 = por %p125, %p126
      %p128 = scmp.ne.s32.totalorder %s119, %s120
      %p129 = scmp.eq.s32.totalorder %s34, 0
      %p130 = por %p128, %p129
      %p131 = scmp.ne.s32.totalorder %s119, %s120
      %p132 = scmp.eq.s32.totalorder %s35, 3
      %p133 = por %p131, %p132
      %p135 = scmp.ne.s32.totalorder %s120, %s134
      %p136 = scmp.eq.s32.totalorder %s35, 0
      %p137 = por %p135, %p136
      %s139 = sadd.s32 %s138, 1
      %p142 = scmp.eq.s32.totalorder %s29, 3
      %p143 = scmp.ne.s32.totalorder %s138, %s140
      %p144 = scmp.eq.s32.totalorder %s29, 0
      %p145 = por %p143, %p144
      %p146 = scmp.ne.s32.totalorder %s138, %s140
      %p147 = scmp.eq.s32.totalorder %s34, 3
      %p148 = por %p146, %p147
      %p149 = scmp.ne.s32.totalorder %s140, %s141
      %p150 = scmp.eq.s32.totalorder %s34, 0
      %p151 = por %p149, %p150
      %p152 = scmp.ne.s32.totalorder %s140, %s141
      %p153 = scmp.eq.s32.totalorder %s35, 3
      %p154 = por %p152, %p153
      %p156 = scmp.ne.s32.totalorder %s141, %s155
      %p157 = scmp.eq.s32.totalorder %s35, 0
      %p158 = por %p156, %p157
      %s160 = sadd.s32 %s159, 1
      %p163 = scmp.eq.s32.totalorder %s29, 3
      %p164 = scmp.ne.s32.totalorder %s159, %s161
      %p165 = scmp.eq.s32.totalorder %s29, 0
      %p166 = por %p164, %p165
      %p167 = scmp.ne.s32.totalorder %s159, %s161
      %p168 = scmp.eq.s32.totalorder %s34, 3
      %p169 = por %p167, %p168
      %p170 = scmp.ne.s32.totalorder %s161, %s162
      %p171 = scmp.eq.s32.totalorder %s34, 0
      %p172 = por %p170, %p171
      %p173 = scmp.ne.s32.totalorder %s161, %s162
      %p174 = scmp.eq.s32.totalorder %s35, 3
      %p175 = por %p173, %p174
      %p177 = scmp.ne.s32.totalorder %s162, %s176
      %p178 = scmp.eq.s32.totalorder %s35, 0
      %p179 = por %p177, %p178
      %s181 = sadd.s32 %s180, 1
      %p184 = scmp.eq.s32.totalorder %s29, 3
      %p185 = scmp.ne.s32.totalorder %s180, %s182
      %p186 = scmp.eq.s32.totalorder %s29, 0
      %p187 = por %p185, %p186
      %p188 = scmp.ne.s32.totalorder %s180, %s182
      %p189 = scmp.eq.s32.totalorder %s34, 3
      %p190 = por %p188, %p189
      %p191 = scmp.ne.s32.totalorder %s182, %s183
      %p192 = scmp.eq.s32.totalorder %s34, 0
      %p193 = por %p191, %p192
      %p194 = scmp.ne.s32.totalorder %s182, %s183
      %p195 = scmp.eq.s32.totalorder %s35, 3
      %p196 = por %p194, %p195
      %p198 = scmp.ne.s32.totalorder %s183, %s197
      %p199 = scmp.eq.s32.totalorder %s35, 0
      %p200 = por %p198, %p199
      %s202 = sadd.s32 %s201, 1
      %p205 = scmp.eq.s32.totalorder %s29, 3
      %p206 = scmp.ne.s32.totalorder %s201, %s203
      %p207 = scmp.eq.s32.totalorder %s29, 0
      %p208 = por %p206, %p207
      %p209 = scmp.ne.s32.totalorder %s201, %s203
      %p210 = scmp.eq.s32.totalorder %s34, 3
      %p211 = por %p209, %p210
      %p212 = scmp.ne.s32.totalorder %s203, %s204
      %p213 = scmp.eq.s32.totalorder %s34, 0
      %p214 = por %p212, %p213
      %p215 = scmp.ne.s32.totalorder %s203, %s204
      %p216 = scmp.eq.s32.totalorder %s35, 3
      %p217 = por %p215, %p216
      %p219 = scmp.ne.s32.totalorder %s204, %s218
      %p220 = scmp.eq.s32.totalorder %s35, 0
      %p221 = por %p219, %p220
      %s223 = sadd.s32 %s222, 1
      %p226 = scmp.eq.s32.totalorder %s29, 3
      %p227 = scmp.ne.s32.totalorder %s222, %s224
      %p228 = scmp.eq.s32.totalorder %s29, 0
      %p229 = por %p227, %p228
      %p230 = scmp.ne.s32.totalorder %s222, %s224
      %p231 = scmp.eq.s32.totalorder %s34, 3
      %p232 = por %p230, %p231
      %p233 = scmp.ne.s32.totalorder %s224, %s225
      %p234 = scmp.eq.s32.totalorder %s34, 0
      %p235 = por %p233, %p234
      %p236 = scmp.ne.s32.totalorder %s224, %s225
      %p237 = scmp.eq.s32.totalorder %s35, 3
      %p238 = por %p236, %p237
      %p240 = scmp.ne.s32.totalorder %s225, %s239
      %p241 = scmp.eq.s32.totalorder %s35, 0
      %p242 = por %p240, %p241
      %s244 = sadd.s32 %s243, 1
      %p247 = scmp.eq.s32.totalorder %s29, 3
      %p248 = scmp.ne.s32.totalorder %s243, %s245
      %p249 = scmp.eq.s32.totalorder %s29, 0
      %p250 = por %p248, %p249
      %p251 = scmp.ne.s32.totalorder %s243, %s245
      %p252 = scmp.eq.s32.totalorder %s34, 3
      %p253 = por %p251, %p252
      %p254 = scmp.ne.s32.totalorder %s245, %s246
      %p255 = scmp.eq.s32.totalorder %s34, 0
      %p256 = por %p254, %p255
      %p257 = scmp.ne.s32.totalorder %s245, %s246
      %p258 = scmp.eq.s32.totalorder %s35, 3
      %p259 = por %p257, %p258
      %p261 = scmp.ne.s32.totalorder %s246, %s260
      %p262 = scmp.eq.s32.totalorder %s35, 0
      %p263 = por %p261, %p262
      %s265 = sadd.s32 %s264, 1
      %p268 = scmp.eq.s32.totalorder %s29, 3
      %p269 = scmp.ne.s32.totalorder %s264, %s266
      %p270 = scmp.eq.s32.totalorder %s29, 0
      %p271 = por %p269, %p270
      %p272 = scmp.ne.s32.totalorder %s264, %s266
      %p273 = scmp.eq.s32.totalorder %s34, 3
      %p274 = por %p272, %p273
      %p275 = scmp.ne.s32.totalorder %s266, %s267
      %p276 = scmp.eq.s32.totalorder %s34, 0
      %p277 = por %p275, %p276
      %p278 = scmp.ne.s32.totalorder %s266, %s267
      %p279 = scmp.eq.s32.totalorder %s35, 3
      %p280 = por %p278, %p279
      %p282 = scmp.ne.s32.totalorder %s267, %s281
      %p283 = scmp.eq.s32.totalorder %s35, 0
      %p284 = por %p282, %p283
      %s286 = sadd.s32 %s285, 1
      %p289 = scmp.eq.s32.totalorder %s29, 3
      %p290 = scmp.ne.s32.totalorder %s285, %s287
      %p291 = scmp.eq.s32.totalorder %s29, 0
      %p292 = por %p290, %p291
      %p293 = scmp.ne.s32.totalorder %s285, %s287
      %p294 = scmp.eq.s32.totalorder %s34, 3
      %p295 = por %p293, %p294
      %p296 = scmp.ne.s32.totalorder %s287, %s288
      %p297 = scmp.eq.s32.totalorder %s34, 0
      %p298 = por %p296, %p297
      %p299 = scmp.ne.s32.totalorder %s287, %s288
      %p300 = scmp.eq.s32.totalorder %s35, 3
      %p301 = por %p299, %p300
      %p303 = scmp.ne.s32.totalorder %s288, %s302
      %p304 = scmp.eq.s32.totalorder %s35, 0
      %p305 = por %p303, %p304
      %s307 = sadd.s32 %s306, 1
      %p310 = scmp.eq.s32.totalorder %s29, 3
      %p311 = scmp.ne.s32.totalorder %s306, %s308
      %p312 = scmp.eq.s32.totalorder %s29, 0
      %p313 = por %p311, %p312
      %p314 = scmp.ne.s32.totalorder %s306, %s308
      %p315 = scmp.eq.s32.totalorder %s34, 3
      %p316 = por %p314, %p315
      %p317 = scmp.ne.s32.totalorder %s308, %s309
      %p318 = scmp.eq.s32.totalorder %s34, 0
      %p319 = por %p317, %p318
      %p320 = scmp.ne.s32.totalorder %s308, %s309
      %p321 = scmp.eq.s32.totalorder %s35, 3
      %p322 = por %p320, %p321
      %p324 = scmp.ne.s32.totalorder %s309, %s323
      %p325 = scmp.eq.s32.totalorder %s35, 0
      %p326 = por %p324, %p325
      %s328 = sadd.s32 %s327, 1
      %p331 = scmp.eq.s32.totalorder %s29, 3
      %p332 = scmp.ne.s32.totalorder %s327, %s329
      %p333 = scmp.eq.s32.totalorder %s29, 0
      %p334 = por %p332, %p333
      %p335 = scmp.ne.s32.totalorder %s327, %s329
      %p336 = scmp.eq.s32.totalorder %s34, 3
      %p337 = por %p335, %p336
      %p338 = scmp.ne.s32.totalorder %s329, %s330
      %p339 = scmp.eq.s32.totalorder %s34, 0
      %p340 = por %p338, %p339
      %p341 = scmp.ne.s32.totalorder %s329, %s330
      %p342 = scmp.eq.s32.totalorder %s35, 3
      %p343 = por %p341, %p342
      %p345 = scmp.ne.s32.totalorder %s330, %s344
      %p346 = scmp.eq.s32.totalorder %s35, 0
      %p347 = por %p345, %p346
      %s348 = ssub.s32 %s36, %s48
      %p349 = scmp.eq.s32.totalorder %s348, 0
      %s351 = sadd.s32 %s350, 1
      %s352 = scalar_select %p349, %s350, %s351
      %p355 = pneg %p349
      %p356 = scmp.eq.s32.totalorder %s29, 3
      %p357 = por %p355, %p356
      %p358 = scmp.ne.s32.totalorder %s350, %s353
      %p359 = scmp.eq.s32.totalorder %s29, 0
      %p360 = por %p358, %p359
      %p361 = scmp.ne.s32.totalorder %s350, %s353
      %p362 = scmp.eq.s32.totalorder %s34, 3
      %p363 = por %p361, %p362
      %p364 = scmp.ne.s32.totalorder %s353, %s354
      %p365 = scmp.eq.s32.totalorder %s34, 0
      %p366 = por %p364, %p365
      %p367 = scmp.ne.s32.totalorder %s353, %s354
      %p368 = scmp.eq.s32.totalorder %s35, 3
      %p369 = por %p367, %p368
      %p371 = scmp.ne.s32.totalorder %s354, %s370
      %p372 = scmp.eq.s32.totalorder %s35, 0
      %p373 = por %p371, %p372
      %p374 = scmp.le.s32.totalorder 1, %s29
      %p375 = scmp.lt.s32.totalorder %s29, 5
      %p376 = pnand %p374, %p375
      %p377 = pneg %p376
      // Predicated region
      $region9: #{tpu_custom_call.1} parent=5 // pred_check
        _
      $region10: #{tpu_custom_call.1} parent=5 // pred_check_branch
        %379 = sbr.rel (%p376) target = $region12
      $region11: #{tpu_custom_call.1} parent=5 // pred_region
        %s380 = ssub.s32 %s29, 1
        // Predicated region
        $region13: #{tpu_custom_call.1} parent=11 // pred_check
          %p381 = pneg %p88
        $region14: #{tpu_custom_call.1} parent=11 // pred_check_branch
          %383 = sbr.rel (%p381) target = $region16
        $region15: #{tpu_custom_call.1} parent=11 // pred_region
          %s385 = ssub.s32 2048, 2048
          %386 = vsyncadd [#allocation8], %s385
          %s387 = sshll.u32 [#allocation7], 4
          %s388 = int_to_ptr.vmem [resolvable:$true] %s387
          %393 = dma.hbm_to_vmem [thread:$0]  %s1, 2048, %s388, [#allocation8], 128, 128, 8
        $region16: #{tpu_custom_call.1} parent=11 // pred_fallthru
          _
        // Predicated region
        $region17: #{tpu_custom_call.1} parent=11 // pred_check
          %p394 = pneg %p109
        $region18: #{tpu_custom_call.1} parent=11 // pred_check_branch
          %396 = sbr.rel (%p394) target = $region20
        $region19: #{tpu_custom_call.1} parent=11 // pred_region
          %s398 = ssub.s32 12288, 12288
          %399 = vsyncadd [#allocation8], %s398
          %s400 = sshll.u32 [#allocation9], 4
          %s401 = int_to_ptr.vmem [resolvable:$true] %s400
          %406 = dma.hbm_to_vmem [thread:$0]  %s2, 12288, %s401, [#allocation8], 384, 384, 24
        $region20: #{tpu_custom_call.1} parent=11 // pred_fallthru
          _
        // Predicated region
        $region21: #{tpu_custom_call.1} parent=11 // pred_check
          %p407 = pneg %p130
        $region22: #{tpu_custom_call.1} parent=11 // pred_check_branch
          %409 = sbr.rel (%p407) target = $region24
        $region23: #{tpu_custom_call.1} parent=11 // pred_region
          _
        $region24: #{tpu_custom_call.1} parent=11 // pred_fallthru
          _
        // Predicated region
        $region25: #{tpu_custom_call.1} parent=11 // pred_check
          %p410 = pneg %p151
        $region26: #{tpu_custom_call.1} parent=11 // pred_check_branch
          %412 = sbr.rel (%p410) target = $region28
        $region27: #{tpu_custom_call.1} parent=11 // pred_region
          %s414 = ssub.s32 4096, 4096
          %415 = vsyncadd [#allocation11], %s414
          %s416 = sshll.u32 [#allocation10], 4
          %s417 = int_to_ptr.vmem [resolvable:$true] %s416
          %422 = dma.hbm_to_vmem [thread:$0]  %s4, 4096, %s417, [#allocation11], 128, 128, 8
        $region28: #{tpu_custom_call.1} parent=11 // pred_fallthru
          _
        // Predicated region
        $region29: #{tpu_custom_call.1} parent=11 // pred_check
          %p423 = pneg %p172
        $region30: #{tpu_custom_call.1} parent=11 // pred_check_branch
          %425 = sbr.rel (%p423) target = $region32
        $region31: #{tpu_custom_call.1} parent=11 // pred_region
          _
        $region32: #{tpu_custom_call.1} parent=11 // pred_fallthru
          _
        // Predicated region
        $region33: #{tpu_custom_call.1} parent=11 // pred_check
          %p426 = pneg %p193
        $region34: #{tpu_custom_call.1} parent=11 // pred_check_branch
          %428 = sbr.rel (%p426) target = $region36
        $region35: #{tpu_custom_call.1} parent=11 // pred_region
          _
        $region36: #{tpu_custom_call.1} parent=11 // pred_fallthru
          _
        // Predicated region
        $region37: #{tpu_custom_call.1} parent=11 // pred_check
          %p429 = pneg %p214
        $region38: #{tpu_custom_call.1} parent=11 // pred_check_branch
          %431 = sbr.rel (%p429) target = $region40
        $region39: #{tpu_custom_call.1} parent=11 // pred_region
          _
        $region40: #{tpu_custom_call.1} parent=11 // pred_fallthru
          _
        // Predicated region
        $region41: #{tpu_custom_call.1} parent=11 // pred_check
          %p432 = pneg %p235
        $region42: #{tpu_custom_call.1} parent=11 // pred_check_branch
          %434 = sbr.rel (%p432) target = $region44
        $region43: #{tpu_custom_call.1} parent=11 // pred_region
          %s436 = ssub.s32 8192, 8192
          %437 = vsyncadd [#allocation11], %s436
          %s438 = sshll.u32 [#allocation12], 4
          %s439 = int_to_ptr.vmem [resolvable:$true] %s438
          %444 = dma.hbm_to_vmem [thread:$0]  %s8, 8192, %s439, [#allocation11], 256, 256, 16
        $region44: #{tpu_custom_call.1} parent=11 // pred_fallthru
          _
        // Predicated region
        $region45: #{tpu_custom_call.1} parent=11 // pred_check
          %p445 = pneg %p256
        $region46: #{tpu_custom_call.1} parent=11 // pred_check_branch
          %447 = sbr.rel (%p445) target = $region48
        $region47: #{tpu_custom_call.1} parent=11 // pred_region
          _
        $region48: #{tpu_custom_call.1} parent=11 // pred_fallthru
          _
        // Predicated region
        $region49: #{tpu_custom_call.1} parent=11 // pred_check
          %p448 = pneg %p277
        $region50: #{tpu_custom_call.1} parent=11 // pred_check_branch
          %450 = sbr.rel (%p448) target = $region52
        $region51: #{tpu_custom_call.1} parent=11 // pred_region
          %s452 = ssub.s32 8192, 8192
          %453 = vsyncadd [#allocation14], %s452
          %s454 = sshll.u32 [#allocation13], 4
          %s455 = int_to_ptr.vmem [resolvable:$true] %s454
          %460 = dma.hbm_to_vmem [thread:$0]  %s10, 8192, %s455, [#allocation14], 128, 128, 8
        $region52: #{tpu_custom_call.1} parent=11 // pred_fallthru
          _
        // Predicated region
        $region53: #{tpu_custom_call.1} parent=11 // pred_check
          %p461 = pneg %p298
        $region54: #{tpu_custom_call.1} parent=11 // pred_check_branch
          %463 = sbr.rel (%p461) target = $region56
        $region55: #{tpu_custom_call.1} parent=11 // pred_region
          _
        $region56: #{tpu_custom_call.1} parent=11 // pred_fallthru
          _
        // Predicated region
        $region57: #{tpu_custom_call.1} parent=11 // pred_check
          %p464 = pneg %p319
        $region58: #{tpu_custom_call.1} parent=11 // pred_check_branch
          %466 = sbr.rel (%p464) target = $region60
        $region59: #{tpu_custom_call.1} parent=11 // pred_region
          _
        $region60: #{tpu_custom_call.1} parent=11 // pred_fallthru
          _
        // Predicated region
        $region61: #{tpu_custom_call.1} parent=11 // pred_check
          %p467 = pneg %p340
        $region62: #{tpu_custom_call.1} parent=11 // pred_check_branch
          %469 = sbr.rel (%p467) target = $region64
        $region63: #{tpu_custom_call.1} parent=11 // pred_region
          _
        $region64: #{tpu_custom_call.1} parent=11 // pred_fallthru
          _
      $region12: #{tpu_custom_call.1} parent=5 // pred_fallthru
        _
      %p470 = scmp.lt.s32.totalorder %s29, 4
      // Predicated region
      $region65: #{tpu_custom_call.1} parent=5 // pred_check
        %p471 = pneg %p470
      $region66: #{tpu_custom_call.1} parent=5 // pred_check_branch
        %473 = sbr.rel (%p471) target = $region68
      $region67: #{tpu_custom_call.1} parent=5 // pred_region
        // Predicated region
        $region69: #{tpu_custom_call.1} parent=67 // pred_check
          %p474 = pneg %p61
        $region70: #{tpu_custom_call.1} parent=67 // pred_check_branch
          %476 = sbr.rel (%p474) target = $region72
        $region71: #{tpu_custom_call.1} parent=67 // pred_region
          %s477 = sand.u32 %s51, 1
          %s478 = scalar_lea.sflag [#allocation5], %s477
          %s479 = sand.u32 %s51, 1
          %s480 = smul.addr %s479, 128
          %s481 = scalar_lea.vmem [#allocation4], %s480
          %s483 = ssub.s32 2048, 2048
          %484 = vsyncadd %s478, %s483
          %s485 = smul.addr %s36, 16
          %s486 = smul.addr %s485, 128
          %s487 = scalar_lea.hbm %s0, %s486
          %s488 = sshll.u32 %s481, 4
          %s489 = int_to_ptr.vmem [resolvable:$true] %s488
          %494 = dma.hbm_to_vmem [thread:$0]  %s487, 2048, %s489, %s478, 128, 128, 8
        $region72: #{tpu_custom_call.1} parent=67 // pred_fallthru
          _
      $region68: #{tpu_custom_call.1} parent=5 // pred_fallthru
        _
      %p495 = scmp.le.s32.totalorder 1, %s29
      %p496 = scmp.lt.s32.totalorder %s29, 5
      %p497 = pnand %p495, %p496
      %p498 = pneg %p497
      // Predicated region
      $region73: #{tpu_custom_call.1} parent=5 // pred_check
        _
      $region74: #{tpu_custom_call.1} parent=5 // pred_check_branch
        %500 = sbr.rel (%p497) target = $region76
      $region75: #{tpu_custom_call.1} parent=5 // pred_region
        %s501 = ssub.s32 %s29, 1
        %s502 = sand.u32 %s54, 1
        %s503 = scalar_lea.sflag [#allocation5], %s502
        %s504 = sand.u32 %s54, 1
        %s505 = smul.addr %s504, 128
        %s506 = scalar_lea.vmem [#allocation4], %s505
        // Predicated region
        $region77: #{tpu_custom_call.1} parent=75 // pred_check
          %p507 = pneg %p67
        $region78: #{tpu_custom_call.1} parent=75 // pred_check_branch
          %509 = sbr.rel (%p507) target = $region80
        $region79: #{tpu_custom_call.1} parent=75 // pred_region
          %510 = dma.done %s503, 2048
        $region80: #{tpu_custom_call.1} parent=75 // pred_fallthru
          _
        // Predicated region
        $region81: #{tpu_custom_call.1} parent=75 // pred_check
          %p511 = pneg %p88
        $region82: #{tpu_custom_call.1} parent=75 // pred_check_branch
          %513 = sbr.rel (%p511) target = $region84
        $region83: #{tpu_custom_call.1} parent=75 // pred_region
          %514 = dma.done [#allocation8], 2048
        $region84: #{tpu_custom_call.1} parent=75 // pred_fallthru
          _
        // Predicated region
        $region85: #{tpu_custom_call.1} parent=75 // pred_check
          %p515 = pneg %p109
        $region86: #{tpu_custom_call.1} parent=75 // pred_check_branch
          %517 = sbr.rel (%p515) target = $region88
        $region87: #{tpu_custom_call.1} parent=75 // pred_region
          %518 = dma.done [#allocation8], 12288
        $region88: #{tpu_custom_call.1} parent=75 // pred_fallthru
          _
        // Predicated region
        $region89: #{tpu_custom_call.1} parent=75 // pred_check
          %p519 = pneg %p151
        $region90: #{tpu_custom_call.1} parent=75 // pred_check_branch
          %521 = sbr.rel (%p519) target = $region92
        $region91: #{tpu_custom_call.1} parent=75 // pred_region
          %522 = dma.done [#allocation11], 4096
        $region92: #{tpu_custom_call.1} parent=75 // pred_fallthru
          _
        // Predicated region
        $region93: #{tpu_custom_call.1} parent=75 // pred_check
          %p523 = pneg %p235
        $region94: #{tpu_custom_call.1} parent=75 // pred_check_branch
          %525 = sbr.rel (%p523) target = $region96
        $region95: #{tpu_custom_call.1} parent=75 // pred_region
          %526 = dma.done [#allocation11], 8192
        $region96: #{tpu_custom_call.1} parent=75 // pred_fallthru
          _
        // Predicated region
        $region97: #{tpu_custom_call.1} parent=75 // pred_check
          %p527 = pneg %p277
        $region98: #{tpu_custom_call.1} parent=75 // pred_check_branch
          %529 = sbr.rel (%p527) target = $region100
        $region99: #{tpu_custom_call.1} parent=75 // pred_region
          %530 = dma.done [#allocation14], 8192
        $region100: #{tpu_custom_call.1} parent=75 // pred_fallthru
          _
        %s531 = sand.u32 %s54, 1
        %s532 = scalar_lea.sflag [#allocation5], %s531
        %s533 = sand.u32 %s54, 1
        %s534 = smul.addr %s533, 128
        %s535 = scalar_lea.vmem [#allocation4], %s534
        %p536 = pneg %p67
        %p537 = pneg %p64
        %p538 = pneg %p88
        %p539 = pneg %p85
        %p540 = pneg %p109
        %p541 = pneg %p106
        %p542 = pneg %p130
        %p543 = pneg %p127
        %p544 = pneg %p151
        %p545 = pneg %p148
        %p546 = pneg %p172
        %p547 = pneg %p169
        %p548 = pneg %p193
        %p549 = pneg %p190
        %p550 = pneg %p214
        %p551 = pneg %p211
        %p552 = pneg %p235
        %p553 = pneg %p232
        %p554 = pneg %p256
        %p555 = pneg %p253
        %p556 = pneg %p277
        %p557 = pneg %p274
        %p558 = pneg %p298
        %p559 = pneg %p295
        %p560 = pneg %p319
        %p561 = pneg %p316
        %p562 = pneg %p340
        %p563 = pneg %p337
        %p564 = pneg %p366
        %p565 = pneg %p363
        %s566 = sand.u32 %s353, 1
        %s567 = scalar_lea.sflag [#allocation6], %s566
        %s568 = sand.u32 %s353, 1
        %s569 = smul.addr %s568, 128
        %s570 = scalar_lea.vmem [#allocation15], %s569
        %p571 = scmp.eq.s32.totalorder %s39, 0
        // Predicated region
        $region101: #{tpu_custom_call.1} parent=75 // pred_check
          %p572 = pneg %p571
        $region102: #{tpu_custom_call.1} parent=75 // pred_check_branch
          %574 = sbr.rel (%p572) target = $region104
        $region103: #{tpu_custom_call.1} parent=75 // pred_region
          %v575 = vld [vmem:[%s506] sm:$0xff]
          %v576 = vld [vmem:[%s506 + $0x8] sm:$0xff]
          %v577 = vld [vmem:[%s506 + $0x10] sm:$0xff]
          %v578 = vld [vmem:[%s506 + $0x18] sm:$0xff]
          %v579 = vld [vmem:[%s506 + $0x20] sm:$0xff]
          %v580 = vld [vmem:[%s506 + $0x28] sm:$0xff]
          %v581 = vld [vmem:[%s506 + $0x30] sm:$0xff]
          %v582 = vld [vmem:[%s506 + $0x38] sm:$0xff]
          %v583 = vld [vmem:[%s506 + $0x40] sm:$0xff]
          %v584 = vld [vmem:[%s506 + $0x48] sm:$0xff]
          %v585 = vld [vmem:[%s506 + $0x50] sm:$0xff]
          %v586 = vld [vmem:[%s506 + $0x58] sm:$0xff]
          %v587 = vld [vmem:[%s506 + $0x60] sm:$0xff]
          %v588 = vld [vmem:[%s506 + $0x68] sm:$0xff]
          %v589 = vld [vmem:[%s506 + $0x70] sm:$0xff]
          %v590 = vld [vmem:[%s506 + $0x78] sm:$0xff]
          %v591 = vld [vmem:[#allocation7] sm:$0xff]
          %v592 = vld [vmem:[#allocation7 + $0x8] sm:$0xff]
          %v593 = vld [vmem:[#allocation7 + $0x10] sm:$0xff]
          %v594 = vld [vmem:[#allocation7 + $0x18] sm:$0xff]
          %v595 = vld [vmem:[#allocation7 + $0x20] sm:$0xff]
          %v596 = vld [vmem:[#allocation7 + $0x28] sm:$0xff]
          %v597 = vld [vmem:[#allocation7 + $0x30] sm:$0xff]
          %v598 = vld [vmem:[#allocation7 + $0x38] sm:$0xff]
          %v599 = vld [vmem:[#allocation7 + $0x40] sm:$0xff]
          %v600 = vld [vmem:[#allocation7 + $0x48] sm:$0xff]
          %v601 = vld [vmem:[#allocation7 + $0x50] sm:$0xff]
          %v602 = vld [vmem:[#allocation7 + $0x58] sm:$0xff]
          %v603 = vld [vmem:[#allocation7 + $0x60] sm:$0xff]
          %v604 = vld [vmem:[#allocation7 + $0x68] sm:$0xff]
          %v605 = vld [vmem:[#allocation7 + $0x70] sm:$0xff]
          %v606 = vld [vmem:[#allocation7 + $0x78] sm:$0xff]
          %v607 = vadd.f32 %v575, %v591
          %v608 = vadd.f32 %v576, %v592
          %v609 = vadd.f32 %v577, %v593
          %v610 = vadd.f32 %v578, %v594
          %v611 = vadd.f32 %v579, %v595
          %v612 = vadd.f32 %v580, %v596
          %v613 = vadd.f32 %v581, %v597
          %v614 = vadd.f32 %v582, %v598
          %v615 = vadd.f32 %v583, %v599
          %v616 = vadd.f32 %v584, %v600
          %v617 = vadd.f32 %v585, %v601
          %v618 = vadd.f32 %v586, %v602
          %v619 = vadd.f32 %v587, %v603
          %v620 = vadd.f32 %v588, %v604
          %v621 = vadd.f32 %v589, %v605
          %v622 = vadd.f32 %v590, %v606
          %623 = vst [vmem:[#allocation2] sm:$0xff] %v607
          %624 = vst [vmem:[#allocation2 + $0x8] sm:$0xff] %v608
          %625 = vst [vmem:[#allocation2 + $0x10] sm:$0xff] %v609
          %626 = vst [vmem:[#allocation2 + $0x18] sm:$0xff] %v610
          %627 = vst [vmem:[#allocation2 + $0x20] sm:$0xff] %v611
          %628 = vst [vmem:[#allocation2 + $0x28] sm:$0xff] %v612
          %629 = vst [vmem:[#allocation2 + $0x30] sm:$0xff] %v613
          %630 = vst [vmem:[#allocation2 + $0x38] sm:$0xff] %v614
          %631 = vst [vmem:[#allocation2 + $0x40] sm:$0xff] %v615
          %632 = vst [vmem:[#allocation2 + $0x48] sm:$0xff] %v616
          %633 = vst [vmem:[#allocation2 + $0x50] sm:$0xff] %v617
          %634 = vst [vmem:[#allocation2 + $0x58] sm:$0xff] %v618
          %635 = vst [vmem:[#allocation2 + $0x60] sm:$0xff] %v619
          %636 = vst [vmem:[#allocation2 + $0x68] sm:$0xff] %v620
          %637 = vst [vmem:[#allocation2 + $0x70] sm:$0xff] %v621
          %638 = vst [vmem:[#allocation2 + $0x78] sm:$0xff] %v622
        $region104: #{tpu_custom_call.1} parent=75 // pred_fallthru
          _
        %v639 = vld [vmem:[#allocation2] sm:$0xff]
        %v640 = vld [vmem:[#allocation2 + $0x8] sm:$0xff]
        %v641 = vld [vmem:[#allocation2 + $0x10] sm:$0xff]
        %v642 = vld [vmem:[#allocation2 + $0x18] sm:$0xff]
        %v643 = vld [vmem:[#allocation2 + $0x20] sm:$0xff]
        %v644 = vld [vmem:[#allocation2 + $0x28] sm:$0xff]
        %v645 = vld [vmem:[#allocation2 + $0x30] sm:$0xff]
        %v646 = vld [vmem:[#allocation2 + $0x38] sm:$0xff]
        %v647 = vld [vmem:[#allocation2 + $0x40] sm:$0xff]
        %v648 = vld [vmem:[#allocation2 + $0x48] sm:$0xff]
        %v649 = vld [vmem:[#allocation2 + $0x50] sm:$0xff]
        %v650 = vld [vmem:[#allocation2 + $0x58] sm:$0xff]
        %v651 = vld [vmem:[#allocation2 + $0x60] sm:$0xff]
        %v652 = vld [vmem:[#allocation2 + $0x68] sm:$0xff]
        %v653 = vld [vmem:[#allocation2 + $0x70] sm:$0xff]
        %v654 = vld [vmem:[#allocation2 + $0x78] sm:$0xff]
        %s655 = smul.u32 %s39, 48
        %s656 = smul.addr %s655, 8
        %s657 = scalar_lea.vmem [#allocation9], %s656
        %v658 = vld [vmem:[%s657] sm:$0xff]
        %v659 = vld [vmem:[%s657 + $0x8] sm:$0xff]
        %v660 = vld [vmem:[%s657 + $0x10] sm:$0xff]
        %v661 = vld [vmem:[%s657 + $0x18] sm:$0xff]
        %v662 = vld [vmem:[%s657 + $0x20] sm:$0xff]
        %v663 = vld [vmem:[%s657 + $0x28] sm:$0xff]
        %v664 = vld [vmem:[%s657 + $0x30] sm:$0xff]
        %v665 = vld [vmem:[%s657 + $0x38] sm:$0xff]
        %v666 = vld [vmem:[%s657 + $0x40] sm:$0xff]
        %v667 = vld [vmem:[%s657 + $0x48] sm:$0xff]
        %v668 = vld [vmem:[%s657 + $0x50] sm:$0xff]
        %v669 = vld [vmem:[%s657 + $0x58] sm:$0xff]
        %v670 = vld [vmem:[%s657 + $0x60] sm:$0xff]
        %v671 = vld [vmem:[%s657 + $0x68] sm:$0xff]
        %v672 = vld [vmem:[%s657 + $0x70] sm:$0xff]
        %v673 = vld [vmem:[%s657 + $0x78] sm:$0xff]
        %v674 = vld [vmem:[%s657 + $0x80] sm:$0xff]
        %v675 = vld [vmem:[%s657 + $0x88] sm:$0xff]
        %v676 = vld [vmem:[%s657 + $0x90] sm:$0xff]
        %v677 = vld [vmem:[%s657 + $0x98] sm:$0xff]
        %v678 = vld [vmem:[%s657 + $0xa0] sm:$0xff]
        %v679 = vld [vmem:[%s657 + $0xa8] sm:$0xff]
        %v680 = vld [vmem:[%s657 + $0xb0] sm:$0xff]
        %v681 = vld [vmem:[%s657 + $0xb8] sm:$0xff]
        %v682 = vld [vmem:[%s657 + $0xc0] sm:$0xff]
        %v683 = vld [vmem:[%s657 + $0xc8] sm:$0xff]
        %v684 = vld [vmem:[%s657 + $0xd0] sm:$0xff]
        %v685 = vld [vmem:[%s657 + $0xd8] sm:$0xff]
        %v686 = vld [vmem:[%s657 + $0xe0] sm:$0xff]
        %v687 = vld [vmem:[%s657 + $0xe8] sm:$0xff]
        %v688 = vld [vmem:[%s657 + $0xf0] sm:$0xff]
        %v689 = vld [vmem:[%s657 + $0xf8] sm:$0xff]
        %v690 = vld [vmem:[%s657 + $0x100] sm:$0xff]
        %v691 = vld [vmem:[%s657 + $0x108] sm:$0xff]
        %v692 = vld [vmem:[%s657 + $0x110] sm:$0xff]
        %v693 = vld [vmem:[%s657 + $0x118] sm:$0xff]
        %v694 = vld [vmem:[%s657 + $0x120] sm:$0xff]
        %v695 = vld [vmem:[%s657 + $0x128] sm:$0xff]
        %v696 = vld [vmem:[%s657 + $0x130] sm:$0xff]
        %v697 = vld [vmem:[%s657 + $0x138] sm:$0xff]
        %v698 = vld [vmem:[%s657 + $0x140] sm:$0xff]
        %v699 = vld [vmem:[%s657 + $0x148] sm:$0xff]
        %v700 = vld [vmem:[%s657 + $0x150] sm:$0xff]
        %v701 = vld [vmem:[%s657 + $0x158] sm:$0xff]
        %v702 = vld [vmem:[%s657 + $0x160] sm:$0xff]
        %v703 = vld [vmem:[%s657 + $0x168] sm:$0xff]
        %v704 = vld [vmem:[%s657 + $0x170] sm:$0xff]
        %v705 = vld [vmem:[%s657 + $0x178] sm:$0xff]
        %s706 = smul.u32 %s39, 3
        %s707 = scalar_lea.vmem %s3, %s706
        %v708 = vld [vmem:[%s707] sm:$0x7]
        %v710 = vlaneseq
        %v711 = vshrl.u32 %v710, 7
        %v712 = vsub.s32 0, %v711
        %v713 = vrot.slane %v708, %v712
        %v714 = vlaneseq
        %v715 = vshrl.u32 %v714, 7
        %v716 = vsub.s32 1, %v715
        %v717 = vrot.slane %v708, %v716
        %v718 = vlaneseq
        %v719 = vshrl.u32 %v718, 7
        %v720 = vsub.s32 2, %v719
        %v721 = vrot.slane %v708, %v720
        %725 = vmatprep.subr.mxu0 %v659
        %726 = vmatpush1.msra.mxu0 %v658
        %727 = vmatprep.subr.mxu0 %v662
        %728 = vmatpush1.msra.mxu0 %v661
        %729 = vmatprep.subr.mxu0 %v665
        %730 = vmatpush1.msra.mxu0 %v664
        %731 = vmatprep.subr.mxu0 %v668
        %732 = vmatpush1.msra.mxu0 %v667
        %733 = vmatprep.subr.mxu0 %v671
        %734 = vmatpush1.msra.mxu0 %v670
        %735 = vmatprep.subr.mxu0 %v674
        %736 = vmatpush1.msra.mxu0 %v673
        %737 = vmatprep.subr.mxu0 %v677
        %738 = vmatpush1.msra.mxu0 %v676
        %739 = vmatprep.subr.mxu0 %v680
        %740 = vmatpush1.msra.mxu0 %v679
        %741 = vmatprep.subr.mxu0 %v683
        %742 = vmatpush1.msra.mxu0 %v682
        %743 = vmatprep.subr.mxu0 %v686
        %744 = vmatpush1.msra.mxu0 %v685
        %745 = vmatprep.subr.mxu0 %v689
        %746 = vmatpush1.msra.mxu0 %v688
        %747 = vmatprep.subr.mxu0 %v692
        %748 = vmatpush1.msra.mxu0 %v691
        %749 = vmatprep.subr.mxu0 %v695
        %750 = vmatpush1.msra.mxu0 %v694
        %751 = vmatprep.subr.mxu0 %v698
        %752 = vmatpush1.msra.mxu0 %v697
        %753 = vmatprep.subr.mxu0 %v701
        %754 = vmatpush1.msra.mxu0 %v700
        %755 = vmatprep.subr.mxu0 %v704
        %756 = vmatpush1.msra.mxu0 %v703
        %757 = vmatprep.subr.mxu0 0.0
        %758 = vmatpush1.msra.mxu0 0.0
        %759 = vmatprep.subr.mxu0 0.0
        %760 = vmatpush1.msra.mxu0 0.0
        %761 = vmatprep.subr.mxu0 0.0
        %762 = vmatpush1.msra.mxu0 0.0
        %763 = vmatprep.subr.mxu0 0.0
        %764 = vmatpush1.msra.mxu0 0.0
        %765 = vmatprep.subr.mxu0 0.0
        %766 = vmatpush1.msra.mxu0 0.0
        %767 = vmatprep.subr.mxu0 0.0
        %768 = vmatpush1.msra.mxu0 0.0
        %769 = vmatprep.subr.mxu0 0.0
        %770 = vmatpush1.msra.mxu0 0.0
        %771 = vmatprep.subr.mxu0 0.0
        %772 = vmatpush1.msra.mxu0 0.0
        %773 = vmatprep.subr.mxu0 0.0
        %774 = vmatpush1.msra.mxu0 0.0
        %775 = vmatprep.subr.mxu0 0.0
        %776 = vmatpush1.msra.mxu0 0.0
        %777 = vmatprep.subr.mxu0 0.0
        %778 = vmatpush1.msra.mxu0 0.0
        %779 = vmatprep.subr.mxu0 0.0
        %780 = vmatpush1.msra.mxu0 0.0
        %781 = vmatprep.subr.mxu0 0.0
        %782 = vmatpush1.msra.mxu0 0.0
        %783 = vmatprep.subr.mxu0 0.0
        %784 = vmatpush1.msra.mxu0 0.0
        %785 = vmatprep.subr.mxu0 0.0
        %786 = vmatpush1.msra.mxu0 0.0
        %787 = vmatprep.subr.mxu0 0.0
        %788 = vmatpush1.msra.mxu0 0.0
        %789 = vmatprep.mubr.f32.mxu0 0.0
        %790 = vmatmul.mubr.f32.gmra.mrb[0].mxu0 %v639
        %v791 = vpop.f32.mrb[0].mxu0
        %v792 = vadd.f32 %v713, %v791
        %v793 = vpop.f32.mrb[0].mxu0
        %v794 = vadd.f32 %v717, %v793
        %795 = vmatprep.mubr.f32.mxu0 0.0
        %796 = vmatmul.mubr.f32.gmra.mrb[0].mxu0 %v640
        %v797 = vpop.f32.mrb[0].mxu0
        %v798 = vadd.f32 %v713, %v797
        %v799 = vpop.f32.mrb[0].mxu0
        %v800 = vadd.f32 %v717, %v799
        %801 = vmatprep.mubr.f32.mxu0 0.0
        %802 = vmatmul.mubr.f32.gmra.mrb[0].mxu0 %v641
        %v803 = vpop.f32.mrb[0].mxu0
        %v804 = vadd.f32 %v713, %v803
        %v805 = vpop.f32.mrb[0].mxu0
        %v806 = vadd.f32 %v717, %v805
        %807 = vmatprep.mubr.f32.mxu0 0.0
        %808 = vmatmul.mubr.f32.gmra.mrb[0].mxu0 %v642
        %v809 = vpop.f32.mrb[0].mxu0
        %v810 = vadd.f32 %v713, %v809
        %v811 = vpop.f32.mrb[0].mxu0
        %v812 = vadd.f32 %v717, %v811
        %813 = vmatprep.mubr.f32.mxu0 0.0
        %814 = vmatmul.mubr.f32.gmra.mrb[0].mxu0 %v643
        %v815 = vpop.f32.mrb[0].mxu0
        %v816 = vadd.f32 %v713, %v815
        %v817 = vpop.f32.mrb[0].mxu0
        %v818 = vadd.f32 %v717, %v817
        %819 = vmatprep.mubr.f32.mxu0 0.0
        %820 = vmatmul.mubr.f32.gmra.mrb[0].mxu0 %v644
        %v821 = vpop.f32.mrb[0].mxu0
        %v822 = vadd.f32 %v713, %v821
        %v823 = vpop.f32.mrb[0].mxu0
        %v824 = vadd.f32 %v717, %v823
        %825 = vmatprep.mubr.f32.mxu0 0.0
        %826 = vmatmul.mubr.f32.gmra.mrb[0].mxu0 %v645
        %v827 = vpop.f32.mrb[0].mxu0
        %v828 = vadd.f32 %v713, %v827
        %v829 = vpop.f32.mrb[0].mxu0
        %v830 = vadd.f32 %v717, %v829
        %831 = vmatprep.mubr.f32.mxu0 0.0
        %832 = vmatmul.mubr.f32.gmra.mrb[0].mxu0 %v646
        %v833 = vpop.f32.mrb[0].mxu0
        %v834 = vadd.f32 %v713, %v833
        %v835 = vpop.f32.mrb[0].mxu0
        %v836 = vadd.f32 %v717, %v835
        %837 = vmatprep.mubr.f32.mxu0 0.0
        %838 = vmatmul.mubr.f32.gmra.mrb[0].mxu0 %v647
        %v839 = vpop.f32.mrb[0].mxu0
        %v840 = vadd.f32 %v713, %v839
        %v841 = vpop.f32.mrb[0].mxu0
        %v842 = vadd.f32 %v717, %v841
        %843 = vmatprep.mubr.f32.mxu0 0.0
        %844 = vmatmul.mubr.f32.gmra.mrb[0].mxu0 %v648
        %v845 = vpop.f32.mrb[0].mxu0
        %v846 = vadd.f32 %v713, %v845
        %v847 = vpop.f32.mrb[0].mxu0
        %v848 = vadd.f32 %v717, %v847
        %849 = vmatprep.mubr.f32.mxu0 0.0
        %850 = vmatmul.mubr.f32.gmra.mrb[0].mxu0 %v649
        %v851 = vpop.f32.mrb[0].mxu0
        %v852 = vadd.f32 %v713, %v851
        %v853 = vpop.f32.mrb[0].mxu0
        %v854 = vadd.f32 %v717, %v853
        %855 = vmatprep.mubr.f32.mxu0 0.0
        %856 = vmatmul.mubr.f32.gmra.mrb[0].mxu0 %v650
        %v857 = vpop.f32.mrb[0].mxu0
        %v858 = vadd.f32 %v713, %v857
        %v859 = vpop.f32.mrb[0].mxu0
        %v860 = vadd.f32 %v717, %v859
        %861 = vmatprep.mubr.f32.mxu0 0.0
        %862 = vmatmul.mubr.f32.gmra.mrb[0].mxu0 %v651
        %v863 = vpop.f32.mrb[0].mxu0
        %v864 = vadd.f32 %v713, %v863
        %v865 = vpop.f32.mrb[0].mxu0
        %v866 = vadd.f32 %v717, %v865
        %867 = vmatprep.mubr.f32.mxu0 0.0
        %868 = vmatmul.mubr.f32.gmra.mrb[0].mxu0 %v652
        %v869 = vpop.f32.mrb[0].mxu0
        %v870 = vadd.f32 %v713, %v869
        %v871 = vpop.f32.mrb[0].mxu0
        %v872 = vadd.f32 %v717, %v871
        %873 = vmatprep.mubr.f32.mxu0 0.0
        %874 = vmatmul.mubr.f32.gmra.mrb[0].mxu0 %v653
        %v875 = vpop.f32.mrb[0].mxu0
        %v876 = vadd.f32 %v713, %v875
        %v877 = vpop.f32.mrb[0].mxu0
        %v878 = vadd.f32 %v717, %v877
        %879 = vmatprep.mubr.f32.mxu0 0.0
        %880 = vmatmul.mubr.f32.gmra.mrb[0].mxu0 %v654
        %v881 = vpop.f32.mrb[0].mxu0
        %v882 = vadd.f32 %v713, %v881
        %v883 = vpop.f32.mrb[0].mxu0
        %v884 = vadd.f32 %v717, %v883
        %885 = vdwg.mxu0
        %886 = vmatprep.subr.mxu0 0.0
        %887 = vmatpush1.msra.mxu0 %v660
        %888 = vmatprep.subr.mxu0 0.0
        %889 = vmatpush1.msra.mxu0 %v663
        %890 = vmatprep.subr.mxu0 0.0
        %891 = vmatpush1.msra.mxu0 %v666
        %892 = vmatprep.subr.mxu0 0.0
        %893 = vmatpush1.msra.mxu0 %v669
        %894 = vmatprep.subr.mxu0 0.0
        %895 = vmatpush1.msra.mxu0 %v672
        %896 = vmatprep.subr.mxu0 0.0
        %897 = vmatpush1.msra.mxu0 %v675
        %898 = vmatprep.subr.mxu0 0.0
        %899 = vmatpush1.msra.mxu0 %v678
        %900 = vmatprep.subr.mxu0 0.0
        %901 = vmatpush1.msra.mxu0 %v681
        %902 = vmatprep.subr.mxu0 0.0
        %903 = vmatpush1.msra.mxu0 %v684
        %904 = vmatprep.subr.mxu0 0.0
        %905 = vmatpush1.msra.mxu0 %v687
        %906 = vmatprep.subr.mxu0 0.0
        %907 = vmatpush1.msra.mxu0 %v690
        %908 = vmatprep.subr.mxu0 0.0
        %909 = vmatpush1.msra.mxu0 %v693
        %910 = vmatprep.subr.mxu0 0.0
        %911 = vmatpush1.msra.mxu0 %v696
        %912 = vmatprep.subr.mxu0 0.0
        %913 = vmatpush1.msra.mxu0 %v699
        %914 = vmatprep.subr.mxu0 0.0
        %915 = vmatpush1.msra.mxu0 %v702
        %916 = vmatprep.subr.mxu0 0.0
        %917 = vmatpush1.msra.mxu0 %v705
        %918 = vmatprep.subr.mxu0 0.0
        %919 = vmatpush1.msra.mxu0 0.0
        %920 = vmatprep.subr.mxu0 0.0
        %921 = vmatpush1.msra.mxu0 0.0
        %922 = vmatprep.subr.mxu0 0.0
        %923 = vmatpush1.msra.mxu0 0.0
        %924 = vmatprep.subr.mxu0 0.0
        %925 = vmatpush1.msra.mxu0 0.0
        %926 = vmatprep.subr.mxu0 0.0
        %927 = vmatpush1.msra.mxu0 0.0
        %928 = vmatprep.subr.mxu0 0.0
        %929 = vmatpush1.msra.mxu0 0.0
        %930 = vmatprep.subr.mxu0 0.0
        %931 = vmatpush1.msra.mxu0 0.0
        %932 = vmatprep.subr.mxu0 0.0
        %933 = vmatpush1.msra.mxu0 0.0
        %934 = vmatprep.subr.mxu0 0.0
        %935 = vmatpush1.msra.mxu0 0.0
        %936 = vmatprep.subr.mxu0 0.0
        %937 = vmatpush1.msra.mxu0 0.0
        %938 = vmatprep.subr.mxu0 0.0
        %939 = vmatpush1.msra.mxu0 0.0
        %940 = vmatprep.subr.mxu0 0.0
        %941 = vmatpush1.msra.mxu0 0.0
        %942 = vmatprep.subr.mxu0 0.0
        %943 = vmatpush1.msra.mxu0 0.0
        %944 = vmatprep.subr.mxu0 0.0
        %945 = vmatpush1.msra.mxu0 0.0
        %946 = vmatprep.subr.mxu0 0.0
        %947 = vmatpush1.msra.mxu0 0.0
        %948 = vmatprep.subr.mxu0 0.0
        %949 = vmatpush1.msra.mxu0 0.0
        %950 = vmatprep.mubr.f32.mxu0 0.0
        %951 = vmatmul.mubr.f32.gmra.mrb[0].mxu0 %v639
        %v952 = vpop.f32.mrb[0].mxu0
        %v953 = vadd.f32 %v721, %v952
        %v954 = vpop.f32.mrb[0].mxu0
        %955 = vmatprep.mubr.f32.mxu0 0.0
        %956 = vmatmul.mubr.f32.gmra.mrb[0].mxu0 %v640
        %v957 = vpop.f32.mrb[0].mxu0
        %v958 = vadd.f32 %v721, %v957
        %v959 = vpop.f32.mrb[0].mxu0
        %960 = vmatprep.mubr.f32.mxu0 0.0
        %961 = vmatmul.mubr.f32.gmra.mrb[0].mxu0 %v641
        %v962 = vpop.f32.mrb[0].mxu0
        %v963 = vadd.f32 %v721, %v962
        %v964 = vpop.f32.mrb[0].mxu0
        %965 = vmatprep.mubr.f32.mxu0 0.0
        %966 = vmatmul.mubr.f32.gmra.mrb[0].mxu0 %v642
        %v967 = vpop.f32.mrb[0].mxu0
        %v968 = vadd.f32 %v721, %v967
        %v969 = vpop.f32.mrb[0].mxu0
        %970 = vmatprep.mubr.f32.mxu0 0.0
        %971 = vmatmul.mubr.f32.gmra.mrb[0].mxu0 %v643
        %v972 = vpop.f32.mrb[0].mxu0
        %v973 = vadd.f32 %v721, %v972
        %v974 = vpop.f32.mrb[0].mxu0
        %975 = vmatprep.mubr.f32.mxu0 0.0
        %976 = vmatmul.mubr.f32.gmra.mrb[0].mxu0 %v644
        %v977 = vpop.f32.mrb[0].mxu0
        %v978 = vadd.f32 %v721, %v977
        %v979 = vpop.f32.mrb[0].mxu0
        %980 = vmatprep.mubr.f32.mxu0 0.0
        %981 = vmatmul.mubr.f32.gmra.mrb[0].mxu0 %v645
        %v982 = vpop.f32.mrb[0].mxu0
        %v983 = vadd.f32 %v721, %v982
        %v984 = vpop.f32.mrb[0].mxu0
        %985 = vmatprep.mubr.f32.mxu0 0.0
        %986 = vmatmul.mubr.f32.gmra.mrb[0].mxu0 %v646
        %v987 = vpop.f32.mrb[0].mxu0
        %v988 = vadd.f32 %v721, %v987
        %v989 = vpop.f32.mrb[0].mxu0
        %990 = vmatprep.mubr.f32.mxu0 0.0
        %991 = vmatmul.mubr.f32.gmra.mrb[0].mxu0 %v647
        %v992 = vpop.f32.mrb[0].mxu0
        %v993 = vadd.f32 %v721, %v992
        %v994 = vpop.f32.mrb[0].mxu0
        %995 = vmatprep.mubr.f32.mxu0 0.0
        %996 = vmatmul.mubr.f32.gmra.mrb[0].mxu0 %v648
        %v997 = vpop.f32.mrb[0].mxu0
        %v998 = vadd.f32 %v721, %v997
        %v999 = vpop.f32.mrb[0].mxu0
        %1000 = vmatprep.mubr.f32.mxu0 0.0
        %1001 = vmatmul.mubr.f32.gmra.mrb[0].mxu0 %v649
        %v1002 = vpop.f32.mrb[0].mxu0
        %v1003 = vadd.f32 %v721, %v1002
        %v1004 = vpop.f32.mrb[0].mxu0
        %1005 = vmatprep.mubr.f32.mxu0 0.0
        %1006 = vmatmul.mubr.f32.gmra.mrb[0].mxu0 %v650
        %v1007 = vpop.f32.mrb[0].mxu0
        %v1008 = vadd.f32 %v721, %v1007
        %v1009 = vpop.f32.mrb[0].mxu0
        %1010 = vmatprep.mubr.f32.mxu0 0.0
        %1011 = vmatmul.mubr.f32.gmra.mrb[0].mxu0 %v651
        %v1012 = vpop.f32.mrb[0].mxu0
        %v1013 = vadd.f32 %v721, %v1012
        %v1014 = vpop.f32.mrb[0].mxu0
        %1015 = vmatprep.mubr.f32.mxu0 0.0
        %1016 = vmatmul.mubr.f32.gmra.mrb[0].mxu0 %v652
        %v1017 = vpop.f32.mrb[0].mxu0
        %v1018 = vadd.f32 %v721, %v1017
        %v1019 = vpop.f32.mrb[0].mxu0
        %1020 = vmatprep.mubr.f32.mxu0 0.0
        %1021 = vmatmul.mubr.f32.gmra.mrb[0].mxu0 %v653
        %v1022 = vpop.f32.mrb[0].mxu0
        %v1023 = vadd.f32 %v721, %v1022
        %v1024 = vpop.f32.mrb[0].mxu0
        %1025 = vmatprep.mubr.f32.mxu0 0.0
        %1026 = vmatmul.mubr.f32.gmra.mrb[0].mxu0 %v654
        %v1027 = vpop.f32.mrb[0].mxu0
        %v1028 = vadd.f32 %v721, %v1027
        %v1029 = vpop.f32.mrb[0].mxu0
        %1030 = vdwg.mxu0
        %vm1031 = vcmask 261120
        %v1033 = vsel %vm1031, %v792, 0
        %v1036 = vsel %vm1031, %v798, 0
        %v1039 = vsel %vm1031, %v804, 0
        %v1042 = vsel %vm1031, %v810, 0
        %v1045 = vsel %vm1031, %v816, 0
        %v1048 = vsel %vm1031, %v822, 0
        %v1051 = vsel %vm1031, %v828, 0
        %v1054 = vsel %vm1031, %v834, 0
        %v1057 = vsel %vm1031, %v840, 0
        %v1060 = vsel %vm1031, %v846, 0
        %v1063 = vsel %vm1031, %v852, 0
        %v1066 = vsel %vm1031, %v858, 0
        %v1069 = vsel %vm1031, %v864, 0
        %v1072 = vsel %vm1031, %v870, 0
        %v1075 = vsel %vm1031, %v876, 0
        %v1078 = vsel %vm1031, %v882, 0
        %v1081 = vsel %vm1031, %v794, 0
        %v1084 = vsel %vm1031, %v800, 0
        %v1087 = vsel %vm1031, %v806, 0
        %v1090 = vsel %vm1031, %v812, 0
        %v1093 = vsel %vm1031, %v818, 0
        %v1096 = vsel %vm1031, %v824, 0
        %v1099 = vsel %vm1031, %v830, 0
        %v1102 = vsel %vm1031, %v836, 0
        %v1105 = vsel %vm1031, %v842, 0
        %v1108 = vsel %vm1031, %v848, 0
        %v1111 = vsel %vm1031, %v854, 0
        %v1114 = vsel %vm1031, %v860, 0
        %v1117 = vsel %vm1031, %v866, 0
        %v1120 = vsel %vm1031, %v872, 0
        %v1123 = vsel %vm1031, %v878, 0
        %v1126 = vsel %vm1031, %v884, 0
        %1128 = vmatprep.subr.mxu0 0.0
        %1129 = vmatpush1.xpose.msra.mxu0 %v1081
        %1130 = vmatprep.subr.mxu0 0.0
        %1131 = vmatpush1.xpose.msra.mxu0 %v1084
        %1132 = vmatprep.subr.mxu0 0.0
        %1133 = vmatpush1.xpose.msra.mxu0 %v1087
        %1134 = vmatprep.subr.mxu0 0.0
        %1135 = vmatpush1.xpose.msra.mxu0 %v1090
        %1136 = vmatprep.subr.mxu0 0.0
        %1137 = vmatpush1.xpose.msra.mxu0 %v1093
        %1138 = vmatprep.subr.mxu0 0.0
        %1139 = vmatpush1.xpose.msra.mxu0 %v1096
        %1140 = vmatprep.subr.mxu0 0.0
        %1141 = vmatpush1.xpose.msra.mxu0 %v1099
        %1142 = vmatprep.subr.mxu0 0.0
        %1143 = vmatpush1.xpose.msra.mxu0 %v1102
        %1144 = vmatprep.subr.mxu0 0.0
        %1145 = vmatpush1.xpose.msra.mxu0 %v1105
        %1146 = vmatprep.subr.mxu0 0.0
        %1147 = vmatpush1.xpose.msra.mxu0 %v1108
        %1148 = vmatprep.subr.mxu0 0.0
        %1149 = vmatpush1.xpose.msra.mxu0 %v1111
        %1150 = vmatprep.subr.mxu0 0.0
        %1151 = vmatpush1.xpose.msra.mxu0 %v1114
        %1152 = vmatprep.subr.mxu0 0.0
        %1153 = vmatpush1.xpose.msra.mxu0 %v1117
        %1154 = vmatprep.subr.mxu0 0.0
        %1155 = vmatpush1.xpose.msra.mxu0 %v1120
        %1156 = vmatprep.subr.mxu0 0.0
        %1157 = vmatpush1.xpose.msra.mxu0 %v1123
        %1158 = vmatprep.subr.mxu0 0.0
        %1159 = vmatpush1.xpose.msra.mxu0 %v1126
        %1160 = vmatprep.subr.mxu0 0.0
        %1161 = vmatpush1.xpose.msra.mxu0 0.0
        %1162 = vmatprep.subr.mxu0 0.0
        %1163 = vmatpush1.xpose.msra.mxu0 0.0
        %1164 = vmatprep.subr.mxu0 0.0
        %1165 = vmatpush1.xpose.msra.mxu0 0.0
        %1166 = vmatprep.subr.mxu0 0.0
        %1167 = vmatpush1.xpose.msra.mxu0 0.0
        %1168 = vmatprep.subr.mxu0 0.0
        %1169 = vmatpush1.xpose.msra.mxu0 0.0
        %1170 = vmatprep.subr.mxu0 0.0
        %1171 = vmatpush1.xpose.msra.mxu0 0.0
        %1172 = vmatprep.subr.mxu0 0.0
        %1173 = vmatpush1.xpose.msra.mxu0 0.0
        %1174 = vmatprep.subr.mxu0 0.0
        %1175 = vmatpush1.xpose.msra.mxu0 0.0
        %1176 = vmatprep.subr.mxu0 0.0
        %1177 = vmatpush1.xpose.msra.mxu0 0.0
        %1178 = vmatprep.subr.mxu0 0.0
        %1179 = vmatpush1.xpose.msra.mxu0 0.0
        %1180 = vmatprep.subr.mxu0 0.0
        %1181 = vmatpush1.xpose.msra.mxu0 0.0
        %1182 = vmatprep.subr.mxu0 0.0
        %1183 = vmatpush1.xpose.msra.mxu0 0.0
        %1184 = vmatprep.subr.mxu0 0.0
        %1185 = vmatpush1.xpose.msra.mxu0 0.0
        %1186 = vmatprep.subr.mxu0 0.0
        %1187 = vmatpush1.xpose.msra.mxu0 0.0
        %1188 = vmatprep.subr.mxu0 0.0
        %1189 = vmatpush1.xpose.msra.mxu0 0.0
        %1190 = vmatprep.subr.mxu0 0.0
        %1191 = vmatpush1.xpose.msra.mxu0 0.0
        %1192 = vmatprep.mubr.f32.mxu0 0.0
        %1193 = vmatmul.mubr.f32.gmra.mrb[0].mxu0 %v1033
        %v1194 = vpop.f32.mrb[0].mxu0
        %v1195 = vadd.f32 0.0, %v1194
        %v1196 = vpop.f32.mrb[0].mxu0
        %1197 = vmatprep.mubr.f32.mxu0 0.0
        %1198 = vmatmul.mubr.f32.gmra.mrb[0].mxu0 %v1036
        %v1199 = vpop.f32.mrb[0].mxu0
        %v1200 = vadd.f32 0.0, %v1199
        %v1201 = vpop.f32.mrb[0].mxu0
        %1202 = vmatprep.mubr.f32.mxu0 0.0
        %1203 = vmatmul.mubr.f32.gmra.mrb[0].mxu0 %v1039
        %v1204 = vpop.f32.mrb[0].mxu0
        %v1205 = vadd.f32 0.0, %v1204
        %v1206 = vpop.f32.mrb[0].mxu0
        %1207 = vmatprep.mubr.f32.mxu0 0.0
        %1208 = vmatmul.mubr.f32.gmra.mrb[0].mxu0 %v1042
        %v1209 = vpop.f32.mrb[0].mxu0
        %v1210 = vadd.f32 0.0, %v1209
        %v1211 = vpop.f32.mrb[0].mxu0
        %1212 = vmatprep.mubr.f32.mxu0 0.0
        %1213 = vmatmul.mubr.f32.gmra.mrb[0].mxu0 %v1045
        %v1214 = vpop.f32.mrb[0].mxu0
        %v1215 = vadd.f32 0.0, %v1214
        %v1216 = vpop.f32.mrb[0].mxu0
        %1217 = vmatprep.mubr.f32.mxu0 0.0
        %1218 = vmatmul.mubr.f32.gmra.mrb[0].mxu0 %v1048
        %v1219 = vpop.f32.mrb[0].mxu0
        %v1220 = vadd.f32 0.0, %v1219
        %v1221 = vpop.f32.mrb[0].mxu0
        %1222 = vmatprep.mubr.f32.mxu0 0.0
        %1223 = vmatmul.mubr.f32.gmra.mrb[0].mxu0 %v1051
        %v1224 = vpop.f32.mrb[0].mxu0
        %v1225 = vadd.f32 0.0, %v1224
        %v1226 = vpop.f32.mrb[0].mxu0
        %1227 = vmatprep.mubr.f32.mxu0 0.0
        %1228 = vmatmul.mubr.f32.gmra.mrb[0].mxu0 %v1054
        %v1229 = vpop.f32.mrb[0].mxu0
        %v1230 = vadd.f32 0.0, %v1229
        %v1231 = vpop.f32.mrb[0].mxu0
        %1232 = vmatprep.mubr.f32.mxu0 0.0
        %1233 = vmatmul.mubr.f32.gmra.mrb[0].mxu0 %v1057
        %v1234 = vpop.f32.mrb[0].mxu0
        %v1235 = vadd.f32 0.0, %v1234
        %v1236 = vpop.f32.mrb[0].mxu0
        %1237 = vmatprep.mubr.f32.mxu0 0.0
        %1238 = vmatmul.mubr.f32.gmra.mrb[0].mxu0 %v1060
        %v1239 = vpop.f32.mrb[0].mxu0
        %v1240 = vadd.f32 0.0, %v1239
        %v1241 = vpop.f32.mrb[0].mxu0
        %1242 = vmatprep.mubr.f32.mxu0 0.0
        %1243 = vmatmul.mubr.f32.gmra.mrb[0].mxu0 %v1063
        %v1244 = vpop.f32.mrb[0].mxu0
        %v1245 = vadd.f32 0.0, %v1244
        %v1246 = vpop.f32.mrb[0].mxu0
        %1247 = vmatprep.mubr.f32.mxu0 0.0
        %1248 = vmatmul.mubr.f32.gmra.mrb[0].mxu0 %v1066
        %v1249 = vpop.f32.mrb[0].mxu0
        %v1250 = vadd.f32 0.0, %v1249
        %v1251 = vpop.f32.mrb[0].mxu0
        %1252 = vmatprep.mubr.f32.mxu0 0.0
        %1253 = vmatmul.mubr.f32.gmra.mrb[0].mxu0 %v1069
        %v1254 = vpop.f32.mrb[0].mxu0
        %v1255 = vadd.f32 0.0, %v1254
        %v1256 = vpop.f32.mrb[0].mxu0
        %1257 = vmatprep.mubr.f32.mxu0 0.0
        %1258 = vmatmul.mubr.f32.gmra.mrb[0].mxu0 %v1072
        %v1259 = vpop.f32.mrb[0].mxu0
        %v1260 = vadd.f32 0.0, %v1259
        %v1261 = vpop.f32.mrb[0].mxu0
        %1262 = vmatprep.mubr.f32.mxu0 0.0
        %1263 = vmatmul.mubr.f32.gmra.mrb[0].mxu0 %v1075
        %v1264 = vpop.f32.mrb[0].mxu0
        %v1265 = vadd.f32 0.0, %v1264
        %v1266 = vpop.f32.mrb[0].mxu0
        %1267 = vmatprep.mubr.f32.mxu0 0.0
        %1268 = vmatmul.mubr.f32.gmra.mrb[0].mxu0 %v1078
        %v1269 = vpop.f32.mrb[0].mxu0
        %v1270 = vadd.f32 0.0, %v1269
        %v1271 = vpop.f32.mrb[0].mxu0
        %1272 = vdwg.mxu0
        %1273 = vmax.xlane.f32.xlu0 %v1195
        %v1274 = vpop.xlane.xlu0 %1273
        %1275 = vmax.xlane.f32.xlu0 %v1200
        %v1276 = vpop.xlane.xlu0 %1275
        %1277 = vmax.xlane.f32.xlu0 %v1205
        %v1278 = vpop.xlane.xlu0 %1277
        %1279 = vmax.xlane.f32.xlu0 %v1210
        %v1280 = vpop.xlane.xlu0 %1279
        %1281 = vmax.xlane.f32.xlu0 %v1215
        %v1282 = vpop.xlane.xlu0 %1281
        %1283 = vmax.xlane.f32.xlu0 %v1220
        %v1284 = vpop.xlane.xlu0 %1283
        %1285 = vmax.xlane.f32.xlu0 %v1225
        %v1286 = vpop.xlane.xlu0 %1285
        %1287 = vmax.xlane.f32.xlu0 %v1230
        %v1288 = vpop.xlane.xlu0 %1287
        %1289 = vmax.xlane.f32.xlu0 %v1235
        %v1290 = vpop.xlane.xlu0 %1289
        %1291 = vmax.xlane.f32.xlu0 %v1240
        %v1292 = vpop.xlane.xlu0 %1291
        %1293 = vmax.xlane.f32.xlu0 %v1245
        %v1294 = vpop.xlane.xlu0 %1293
        %1295 = vmax.xlane.f32.xlu0 %v1250
        %v1296 = vpop.xlane.xlu0 %1295
        %1297 = vmax.xlane.f32.xlu0 %v1255
        %v1298 = vpop.xlane.xlu0 %1297
        %1299 = vmax.xlane.f32.xlu0 %v1260
        %v1300 = vpop.xlane.xlu0 %1299
        %1301 = vmax.xlane.f32.xlu0 %v1265
        %v1302 = vpop.xlane.xlu0 %1301
        %1303 = vmax.xlane.f32.xlu0 %v1270
        %v1304 = vpop.xlane.xlu0 %1303
        %v1305 = vsub.f32 %v1195, %v1274
        %v1306 = vsub.f32 %v1200, %v1276
        %v1307 = vsub.f32 %v1205, %v1278
        %v1308 = vsub.f32 %v1210, %v1280
        %v1309 = vsub.f32 %v1215, %v1282
        %v1310 = vsub.f32 %v1220, %v1284
        %v1311 = vsub.f32 %v1225, %v1286
        %v1312 = vsub.f32 %v1230, %v1288
        %v1313 = vsub.f32 %v1235, %v1290
        %v1314 = vsub.f32 %v1240, %v1292
        %v1315 = vsub.f32 %v1245, %v1294
        %v1316 = vsub.f32 %v1250, %v1296
        %v1317 = vsub.f32 %v1255, %v1298
        %v1318 = vsub.f32 %v1260, %v1300
        %v1319 = vsub.f32 %v1265, %v1302
        %v1320 = vsub.f32 %v1270, %v1304
        %v1321 = vmul.f32 %v1305, 1.442695
        %v1322 = vpow.pop %v1321
        %v1323 = vmul.f32 %v1306, 1.442695
        %v1324 = vpow.pop %v1323
        %v1325 = vmul.f32 %v1307, 1.442695
        %v1326 = vpow.pop %v1325
        %v1327 = vmul.f32 %v1308, 1.442695
        %v1328 = vpow.pop %v1327
        %v1329 = vmul.f32 %v1309, 1.442695
        %v1330 = vpow.pop %v1329
        %v1331 = vmul.f32 %v1310, 1.442695
        %v1332 = vpow.pop %v1331
        %v1333 = vmul.f32 %v1311, 1.442695
        %v1334 = vpow.pop %v1333
        %v1335 = vmul.f32 %v1312, 1.442695
        %v1336 = vpow.pop %v1335
        %v1337 = vmul.f32 %v1313, 1.442695
        %v1338 = vpow.pop %v1337
        %v1339 = vmul.f32 %v1314, 1.442695
        %v1340 = vpow.pop %v1339
        %v1341 = vmul.f32 %v1315, 1.442695
        %v1342 = vpow.pop %v1341
        %v1343 = vmul.f32 %v1316, 1.442695
        %v1344 = vpow.pop %v1343
        %v1345 = vmul.f32 %v1317, 1.442695
        %v1346 = vpow.pop %v1345
        %v1347 = vmul.f32 %v1318, 1.442695
        %v1348 = vpow.pop %v1347
        %v1349 = vmul.f32 %v1319, 1.442695
        %v1350 = vpow.pop %v1349
        %v1351 = vmul.f32 %v1320, 1.442695
        %v1352 = vpow.pop %v1351
        %1353 = vadd.xlane.f32.xlu0 %v1322
        %v1354 = vpop.xlane.xlu0 %1353
        %1355 = vadd.xlane.f32.xlu0 %v1324
        %v1356 = vpop.xlane.xlu0 %1355
        %1357 = vadd.xlane.f32.xlu0 %v1326
        %v1358 = vpop.xlane.xlu0 %1357
        %1359 = vadd.xlane.f32.xlu0 %v1328
        %v1360 = vpop.xlane.xlu0 %1359
        %1361 = vadd.xlane.f32.xlu0 %v1330
        %v1362 = vpop.xlane.xlu0 %1361
        %1363 = vadd.xlane.f32.xlu0 %v1332
        %v1364 = vpop.xlane.xlu0 %1363
        %1365 = vadd.xlane.f32.xlu0 %v1334
        %v1366 = vpop.xlane.xlu0 %1365
        %1367 = vadd.xlane.f32.xlu0 %v1336
        %v1368 = vpop.xlane.xlu0 %1367
        %1369 = vadd.xlane.f32.xlu0 %v1338
        %v1370 = vpop.xlane.xlu0 %1369
        %1371 = vadd.xlane.f32.xlu0 %v1340
        %v1372 = vpop.xlane.xlu0 %1371
        %1373 = vadd.xlane.f32.xlu0 %v1342
        %v1374 = vpop.xlane.xlu0 %1373
        %1375 = vadd.xlane.f32.xlu0 %v1344
        %v1376 = vpop.xlane.xlu0 %1375
        %1377 = vadd.xlane.f32.xlu0 %v1346
        %v1378 = vpop.xlane.xlu0 %1377
        %1379 = vadd.xlane.f32.xlu0 %v1348
        %v1380 = vpop.xlane.xlu0 %1379
        %1381 = vadd.xlane.f32.xlu0 %v1350
        %v1382 = vpop.xlane.xlu0 %1381
        %1383 = vadd.xlane.f32.xlu0 %v1352
        %v1384 = vpop.xlane.xlu0 %1383
        %v1385 = vrcp.pop %v1354
        %v1386 = vrcp.pop %v1356
        %v1387 = vrcp.pop %v1358
        %v1388 = vrcp.pop %v1360
        %v1389 = vrcp.pop %v1362
        %v1390 = vrcp.pop %v1364
        %v1391 = vrcp.pop %v1366
        %v1392 = vrcp.pop %v1368
        %v1393 = vrcp.pop %v1370
        %v1394 = vrcp.pop %v1372
        %v1395 = vrcp.pop %v1374
        %v1396 = vrcp.pop %v1376
        %v1397 = vrcp.pop %v1378
        %v1398 = vrcp.pop %v1380
        %v1399 = vrcp.pop %v1382
        %v1400 = vrcp.pop %v1384
        %v1401 = vmul.f32 %v1322, %v1385
        %v1402 = vmul.f32 %v1324, %v1386
        %v1403 = vmul.f32 %v1326, %v1387
        %v1404 = vmul.f32 %v1328, %v1388
        %v1405 = vmul.f32 %v1330, %v1389
        %v1406 = vmul.f32 %v1332, %v1390
        %v1407 = vmul.f32 %v1334, %v1391
        %v1408 = vmul.f32 %v1336, %v1392
        %v1409 = vmul.f32 %v1338, %v1393
        %v1410 = vmul.f32 %v1340, %v1394
        %v1411 = vmul.f32 %v1342, %v1395
        %v1412 = vmul.f32 %v1344, %v1396
        %v1413 = vmul.f32 %v1346, %v1397
        %v1414 = vmul.f32 %v1348, %v1398
        %v1415 = vmul.f32 %v1350, %v1399
        %v1416 = vmul.f32 %v1352, %v1400
        %1417 = vmatprep.subr.mxu0 0.0
        %1418 = vmatpush1.msra.mxu0 %v953
        %1419 = vmatprep.subr.mxu0 0.0
        %1420 = vmatpush1.msra.mxu0 %v958
        %1421 = vmatprep.subr.mxu0 0.0
        %1422 = vmatpush1.msra.mxu0 %v963
        %1423 = vmatprep.subr.mxu0 0.0
        %1424 = vmatpush1.msra.mxu0 %v968
        %1425 = vmatprep.subr.mxu0 0.0
        %1426 = vmatpush1.msra.mxu0 %v973
        %1427 = vmatprep.subr.mxu0 0.0
        %1428 = vmatpush1.msra.mxu0 %v978
        %1429 = vmatprep.subr.mxu0 0.0
        %1430 = vmatpush1.msra.mxu0 %v983
        %1431 = vmatprep.subr.mxu0 0.0
        %1432 = vmatpush1.msra.mxu0 %v988
        %1433 = vmatprep.subr.mxu0 0.0
        %1434 = vmatpush1.msra.mxu0 %v993
        %1435 = vmatprep.subr.mxu0 0.0
        %1436 = vmatpush1.msra.mxu0 %v998
        %1437 = vmatprep.subr.mxu0 0.0
        %1438 = vmatpush1.msra.mxu0 %v1003
        %1439 = vmatprep.subr.mxu0 0.0
        %1440 = vmatpush1.msra.mxu0 %v1008
        %1441 = vmatprep.subr.mxu0 0.0
        %1442 = vmatpush1.msra.mxu0 %v1013
        %1443 = vmatprep.subr.mxu0 0.0
        %1444 = vmatpush1.msra.mxu0 %v1018
        %1445 = vmatprep.subr.mxu0 0.0
        %1446 = vmatpush1.msra.mxu0 %v1023
        %1447 = vmatprep.subr.mxu0 0.0
        %1448 = vmatpush1.msra.mxu0 %v1028
        %1449 = vmatprep.subr.mxu0 0.0
        %1450 = vmatpush1.msra.mxu0 0.0
        %1451 = vmatprep.subr.mxu0 0.0
        %1452 = vmatpush1.msra.mxu0 0.0
        %1453 = vmatprep.subr.mxu0 0.0
        %1454 = vmatpush1.msra.mxu0 0.0
        %1455 = vmatprep.subr.mxu0 0.0
        %1456 = vmatpush1.msra.mxu0 0.0
        %1457 = vmatprep.subr.mxu0 0.0
        %1458 = vmatpush1.msra.mxu0 0.0
        %1459 = vmatprep.subr.mxu0 0.0
        %1460 = vmatpush1.msra.mxu0 0.0
        %1461 = vmatprep.subr.mxu0 0.0
        %1462 = vmatpush1.msra.mxu0 0.0
        %1463 = vmatprep.subr.mxu0 0.0
        %1464 = vmatpush1.msra.mxu0 0.0
        %1465 = vmatprep.subr.mxu0 0.0
        %1466 = vmatpush1.msra.mxu0 0.0
        %1467 = vmatprep.subr.mxu0 0.0
        %1468 = vmatpush1.msra.mxu0 0.0
        %1469 = vmatprep.subr.mxu0 0.0
        %1470 = vmatpush1.msra.mxu0 0.0
        %1471 = vmatprep.subr.mxu0 0.0
        %1472 = vmatpush1.msra.mxu0 0.0
        %1473 = vmatprep.subr.mxu0 0.0
        %1474 = vmatpush1.msra.mxu0 0.0
        %1475 = vmatprep.subr.mxu0 0.0
        %1476 = vmatpush1.msra.mxu0 0.0
        %1477 = vmatprep.subr.mxu0 0.0
        %1478 = vmatpush1.msra.mxu0 0.0
        %1479 = vmatprep.subr.mxu0 0.0
        %1480 = vmatpush1.msra.mxu0 0.0
        %1481 = vmatprep.mubr.f32.mxu0 0.0
        %1482 = vmatmul.mubr.f32.gmra.mrb[0].mxu0 %v1401
        %v1483 = vpop.f32.mrb[0].mxu0
        %v1484 = vadd.f32 0.0, %v1483
        %v1485 = vpop.f32.mrb[0].mxu0
        %1486 = vmatprep.mubr.f32.mxu0 0.0
        %1487 = vmatmul.mubr.f32.gmra.mrb[0].mxu0 %v1402
        %v1488 = vpop.f32.mrb[0].mxu0
        %v1489 = vadd.f32 0.0, %v1488
        %v1490 = vpop.f32.mrb[0].mxu0
        %1491 = vmatprep.mubr.f32.mxu0 0.0
        %1492 = vmatmul.mubr.f32.gmra.mrb[0].mxu0 %v1403
        %v1493 = vpop.f32.mrb[0].mxu0
        %v1494 = vadd.f32 0.0, %v1493
        %v1495 = vpop.f32.mrb[0].mxu0
        %1496 = vmatprep.mubr.f32.mxu0 0.0
        %1497 = vmatmul.mubr.f32.gmra.mrb[0].mxu0 %v1404
        %v1498 = vpop.f32.mrb[0].mxu0
        %v1499 = vadd.f32 0.0, %v1498
        %v1500 = vpop.f32.mrb[0].mxu0
        %1501 = vmatprep.mubr.f32.mxu0 0.0
        %1502 = vmatmul.mubr.f32.gmra.mrb[0].mxu0 %v1405
        %v1503 = vpop.f32.mrb[0].mxu0
        %v1504 = vadd.f32 0.0, %v1503
        %v1505 = vpop.f32.mrb[0].mxu0
        %1506 = vmatprep.mubr.f32.mxu0 0.0
        %1507 = vmatmul.mubr.f32.gmra.mrb[0].mxu0 %v1406
        %v1508 = vpop.f32.mrb[0].mxu0
        %v1509 = vadd.f32 0.0, %v1508
        %v1510 = vpop.f32.mrb[0].mxu0
        %1511 = vmatprep.mubr.f32.mxu0 0.0
        %1512 = vmatmul.mubr.f32.gmra.mrb[0].mxu0 %v1407
        %v1513 = vpop.f32.mrb[0].mxu0
        %v1514 = vadd.f32 0.0, %v1513
        %v1515 = vpop.f32.mrb[0].mxu0
        %1516 = vmatprep.mubr.f32.mxu0 0.0
        %1517 = vmatmul.mubr.f32.gmra.mrb[0].mxu0 %v1408
        %v1518 = vpop.f32.mrb[0].mxu0
        %v1519 = vadd.f32 0.0, %v1518
        %v1520 = vpop.f32.mrb[0].mxu0
        %1521 = vmatprep.mubr.f32.mxu0 0.0
        %1522 = vmatmul.mubr.f32.gmra.mrb[0].mxu0 %v1409
        %v1523 = vpop.f32.mrb[0].mxu0
        %v1524 = vadd.f32 0.0, %v1523
        %v1525 = vpop.f32.mrb[0].mxu0
        %1526 = vmatprep.mubr.f32.mxu0 0.0
        %1527 = vmatmul.mubr.f32.gmra.mrb[0].mxu0 %v1410
        %v1528 = vpop.f32.mrb[0].mxu0
        %v1529 = vadd.f32 0.0, %v1528
        %v1530 = vpop.f32.mrb[0].mxu0
        %1531 = vmatprep.mubr.f32.mxu0 0.0
        %1532 = vmatmul.mubr.f32.gmra.mrb[0].mxu0 %v1411
        %v1533 = vpop.f32.mrb[0].mxu0
        %v1534 = vadd.f32 0.0, %v1533
        %v1535 = vpop.f32.mrb[0].mxu0
        %1536 = vmatprep.mubr.f32.mxu0 0.0
        %1537 = vmatmul.mubr.f32.gmra.mrb[0].mxu0 %v1412
        %v1538 = vpop.f32.mrb[0].mxu0
        %v1539 = vadd.f32 0.0, %v1538
        %v1540 = vpop.f32.mrb[0].mxu0
        %1541 = vmatprep.mubr.f32.mxu0 0.0
        %1542 = vmatmul.mubr.f32.gmra.mrb[0].mxu0 %v1413
        %v1543 = vpop.f32.mrb[0].mxu0
        %v1544 = vadd.f32 0.0, %v1543
        %v1545 = vpop.f32.mrb[0].mxu0
        %1546 = vmatprep.mubr.f32.mxu0 0.0
        %1547 = vmatmul.mubr.f32.gmra.mrb[0].mxu0 %v1414
        %v1548 = vpop.f32.mrb[0].mxu0
        %v1549 = vadd.f32 0.0, %v1548
        %v1550 = vpop.f32.mrb[0].mxu0
        %1551 = vmatprep.mubr.f32.mxu0 0.0
        %1552 = vmatmul.mubr.f32.gmra.mrb[0].mxu0 %v1415
        %v1553 = vpop.f32.mrb[0].mxu0
        %v1554 = vadd.f32 0.0, %v1553
        %v1555 = vpop.f32.mrb[0].mxu0
        %1556 = vmatprep.mubr.f32.mxu0 0.0
        %1557 = vmatmul.mubr.f32.gmra.mrb[0].mxu0 %v1416
        %v1558 = vpop.f32.mrb[0].mxu0
        %v1559 = vadd.f32 0.0, %v1558
        %v1560 = vpop.f32.mrb[0].mxu0
        %1561 = vdwg.mxu0
        %1562 = vst.msk [vmem:[#allocation3] sm:$0xff] %vm1031, %v1484
        %1563 = vst.msk [vmem:[#allocation3 + $0x8] sm:$0xff] %vm1031, %v1489
        %1564 = vst.msk [vmem:[#allocation3 + $0x10] sm:$0xff] %vm1031, %v1494
        %1565 = vst.msk [vmem:[#allocation3 + $0x18] sm:$0xff] %vm1031, %v1499
        %1566 = vst.msk [vmem:[#allocation3 + $0x20] sm:$0xff] %vm1031, %v1504
        %1567 = vst.msk [vmem:[#allocation3 + $0x28] sm:$0xff] %vm1031, %v1509
        %1568 = vst.msk [vmem:[#allocation3 + $0x30] sm:$0xff] %vm1031, %v1514
        %1569 = vst.msk [vmem:[#allocation3 + $0x38] sm:$0xff] %vm1031, %v1519
        %1570 = vst.msk [vmem:[#allocation3 + $0x40] sm:$0xff] %vm1031, %v1524
        %1571 = vst.msk [vmem:[#allocation3 + $0x48] sm:$0xff] %vm1031, %v1529
        %1572 = vst.msk [vmem:[#allocation3 + $0x50] sm:$0xff] %vm1031, %v1534
        %1573 = vst.msk [vmem:[#allocation3 + $0x58] sm:$0xff] %vm1031, %v1539
        %1574 = vst.msk [vmem:[#allocation3 + $0x60] sm:$0xff] %vm1031, %v1544
        %1575 = vst.msk [vmem:[#allocation3 + $0x68] sm:$0xff] %vm1031, %v1549
        %1576 = vst.msk [vmem:[#allocation3 + $0x70] sm:$0xff] %vm1031, %v1554
        %1577 = vst.msk [vmem:[#allocation3 + $0x78] sm:$0xff] %vm1031, %v1559
        %1578 = vrot.lane.b32.xlu0 %v792, 96
        %v1579 = vpop.permute.xlu0 %1578
        %1580 = vrot.lane.b32.xlu0 %v798, 96
        %v1581 = vpop.permute.xlu0 %1580
        %1582 = vrot.lane.b32.xlu0 %v804, 96
        %v1583 = vpop.permute.xlu0 %1582
        %1584 = vrot.lane.b32.xlu0 %v810, 96
        %v1585 = vpop.permute.xlu0 %1584
        %1586 = vrot.lane.b32.xlu0 %v816, 96
        %v1587 = vpop.permute.xlu0 %1586
        %1588 = vrot.lane.b32.xlu0 %v822, 96
        %v1589 = vpop.permute.xlu0 %1588
        %1590 = vrot.lane.b32.xlu0 %v828, 96
        %v1591 = vpop.permute.xlu0 %1590
        %1592 = vrot.lane.b32.xlu0 %v834, 96
        %v1593 = vpop.permute.xlu0 %1592
        %1594 = vrot.lane.b32.xlu0 %v840, 96
        %v1595 = vpop.permute.xlu0 %1594
        %1596 = vrot.lane.b32.xlu0 %v846, 96
        %v1597 = vpop.permute.xlu0 %1596
        %1598 = vrot.lane.b32.xlu0 %v852, 96
        %v1599 = vpop.permute.xlu0 %1598
        %1600 = vrot.lane.b32.xlu0 %v858, 96
        %v1601 = vpop.permute.xlu0 %1600
        %1602 = vrot.lane.b32.xlu0 %v864, 96
        %v1603 = vpop.permute.xlu0 %1602
        %1604 = vrot.lane.b32.xlu0 %v870, 96
        %v1605 = vpop.permute.xlu0 %1604
        %1606 = vrot.lane.b32.xlu0 %v876, 96
        %v1607 = vpop.permute.xlu0 %1606
        %1608 = vrot.lane.b32.xlu0 %v882, 96
        %v1609 = vpop.permute.xlu0 %1608
        %1610 = vrot.lane.b32.xlu0 %v794, 96
        %v1611 = vpop.permute.xlu0 %1610
        %1612 = vrot.lane.b32.xlu0 %v800, 96
        %v1613 = vpop.permute.xlu0 %1612
        %1614 = vrot.lane.b32.xlu0 %v806, 96
        %v1615 = vpop.permute.xlu0 %1614
        %1616 = vrot.lane.b32.xlu0 %v812, 96
        %v1617 = vpop.permute.xlu0 %1616
        %1618 = vrot.lane.b32.xlu0 %v818, 96
        %v1619 = vpop.permute.xlu0 %1618
        %1620 = vrot.lane.b32.xlu0 %v824, 96
        %v1621 = vpop.permute.xlu0 %1620
        %1622 = vrot.lane.b32.xlu0 %v830, 96
        %v1623 = vpop.permute.xlu0 %1622
        %1624 = vrot.lane.b32.xlu0 %v836, 96
        %v1625 = vpop.permute.xlu0 %1624
        %1626 = vrot.lane.b32.xlu0 %v842, 96
        %v1627 = vpop.permute.xlu0 %1626
        %1628 = vrot.lane.b32.xlu0 %v848, 96
        %v1629 = vpop.permute.xlu0 %1628
        %1630 = vrot.lane.b32.xlu0 %v854, 96
        %v1631 = vpop.permute.xlu0 %1630
        %1632 = vrot.lane.b32.xlu0 %v860, 96
        %v1633 = vpop.permute.xlu0 %1632
        %1634 = vrot.lane.b32.xlu0 %v866, 96
        %v1635 = vpop.permute.xlu0 %1634
        %1636 = vrot.lane.b32.xlu0 %v872, 96
        %v1637 = vpop.permute.xlu0 %1636
        %1638 = vrot.lane.b32.xlu0 %v878, 96
        %v1639 = vpop.permute.xlu0 %1638
        %1640 = vrot.lane.b32.xlu0 %v884, 96
        %v1641 = vpop.permute.xlu0 %1640
        %v1642 = vsel %vm1031, %v1579, 0
        %v1644 = vsel %vm1031, %v1581, 0
        %v1646 = vsel %vm1031, %v1583, 0
        %v1648 = vsel %vm1031, %v1585, 0
        %v1650 = vsel %vm1031, %v1587, 0
        %v1652 = vsel %vm1031, %v1589, 0
        %v1654 = vsel %vm1031, %v1591, 0
        %v1656 = vsel %vm1031, %v1593, 0
        %v1658 = vsel %vm1031, %v1595, 0
        %v1660 = vsel %vm1031, %v1597, 0
        %v1662 = vsel %vm1031, %v1599, 0
        %v1664 = vsel %vm1031, %v1601, 0
        %v1666 = vsel %vm1031, %v1603, 0
        %v1668 = vsel %vm1031, %v1605, 0
        %v1670 = vsel %vm1031, %v1607, 0
        %v1672 = vsel %vm1031, %v1609, 0
        %v1674 = vsel %vm1031, %v1611, 0
        %v1676 = vsel %vm1031, %v1613, 0
        %v1678 = vsel %vm1031, %v1615, 0
        %v1680 = vsel %vm1031, %v1617, 0
        %v1682 = vsel %vm1031, %v1619, 0
        %v1684 = vsel %vm1031, %v1621, 0
        %v1686 = vsel %vm1031, %v1623, 0
        %v1688 = vsel %vm1031, %v1625, 0
        %v1690 = vsel %vm1031, %v1627, 0
        %v1692 = vsel %vm1031, %v1629, 0
        %v1694 = vsel %vm1031, %v1631, 0
        %v1696 = vsel %vm1031, %v1633, 0
        %v1698 = vsel %vm1031, %v1635, 0
        %v1700 = vsel %vm1031, %v1637, 0
        %v1702 = vsel %vm1031, %v1639, 0
        %v1704 = vsel %vm1031, %v1641, 0
        %1706 = vmatprep.subr.mxu0 0.0
        %1707 = vmatpush1.xpose.msra.mxu0 %v1674
        %1708 = vmatprep.subr.mxu0 0.0
        %1709 = vmatpush1.xpose.msra.mxu0 %v1676
        %1710 = vmatprep.subr.mxu0 0.0
        %1711 = vmatpush1.xpose.msra.mxu0 %v1678
        %1712 = vmatprep.subr.mxu0 0.0
        %1713 = vmatpush1.xpose.msra.mxu0 %v1680
        %1714 = vmatprep.subr.mxu0 0.0
        %1715 = vmatpush1.xpose.msra.mxu0 %v1682
        %1716 = vmatprep.subr.mxu0 0.0
        %1717 = vmatpush1.xpose.msra.mxu0 %v1684
        %1718 = vmatprep.subr.mxu0 0.0
        %1719 = vmatpush1.xpose.msra.mxu0 %v1686
        %1720 = vmatprep.subr.mxu0 0.0
        %1721 = vmatpush1.xpose.msra.mxu0 %v1688
        %1722 = vmatprep.subr.mxu0 0.0
        %1723 = vmatpush1.xpose.msra.mxu0 %v1690
        %1724 = vmatprep.subr.mxu0 0.0
        %1725 = vmatpush1.xpose.msra.mxu0 %v1692
        %1726 = vmatprep.subr.mxu0 0.0
        %1727 = vmatpush1.xpose.msra.mxu0 %v1694
        %1728 = vmatprep.subr.mxu0 0.0
        %1729 = vmatpush1.xpose.msra.mxu0 %v1696
        %1730 = vmatprep.subr.mxu0 0.0
        %1731 = vmatpush1.xpose.msra.mxu0 %v1698
        %1732 = vmatprep.subr.mxu0 0.0
        %1733 = vmatpush1.xpose.msra.mxu0 %v1700
        %1734 = vmatprep.subr.mxu0 0.0
        %1735 = vmatpush1.xpose.msra.mxu0 %v1702
        %1736 = vmatprep.subr.mxu0 0.0
        %1737 = vmatpush1.xpose.msra.mxu0 %v1704
        %1738 = vmatprep.subr.mxu0 0.0
        %1739 = vmatpush1.xpose.msra.mxu0 0.0
        %1740 = vmatprep.subr.mxu0 0.0
        %1741 = vmatpush1.xpose.msra.mxu0 0.0
        %1742 = vmatprep.subr.mxu0 0.0
        %1743 = vmatpush1.xpose.msra.mxu0 0.0
        %1744 = vmatprep.subr.mxu0 0.0
        %1745 = vmatpush1.xpose.msra.mxu0 0.0
        %1746 = vmatprep.subr.mxu0 0.0
        %1747 = vmatpush1.xpose.msra.mxu0 0.0
        %1748 = vmatprep.subr.mxu0 0.0
        %1749 = vmatpush1.xpose.msra.mxu0 0.0
        %1750 = vmatprep.subr.mxu0 0.0
        %1751 = vmatpush1.xpose.msra.mxu0 0.0
        %1752 = vmatprep.subr.mxu0 0.0
        %1753 = vmatpush1.xpose.msra.mxu0 0.0
        %1754 = vmatprep.subr.mxu0 0.0
        %1755 = vmatpush1.xpose.msra.mxu0 0.0
        %1756 = vmatprep.subr.mxu0 0.0
        %1757 = vmatpush1.xpose.msra.mxu0 0.0
        %1758 = vmatprep.subr.mxu0 0.0
        %1759 = vmatpush1.xpose.msra.mxu0 0.0
        %1760 = vmatprep.subr.mxu0 0.0
        %1761 = vmatpush1.xpose.msra.mxu0 0.0
        %1762 = vmatprep.subr.mxu0 0.0
        %1763 = vmatpush1.xpose.msra.mxu0 0.0
        %1764 = vmatprep.subr.mxu0 0.0
        %1765 = vmatpush1.xpose.msra.mxu0 0.0
        %1766 = vmatprep.subr.mxu0 0.0
        %1767 = vmatpush1.xpose.msra.mxu0 0.0
        %1768 = vmatprep.subr.mxu0 0.0
        %1769 = vmatpush1.xpose.msra.mxu0 0.0
        %1770 = vmatprep.mubr.f32.mxu0 0.0
        %1771 = vmatmul.mubr.f32.gmra.mrb[0].mxu0 %v1642
        %v1772 = vpop.f32.mrb[0].mxu0
        %v1773 = vadd.f32 0.0, %v1772
        %v1774 = vpop.f32.mrb[0].mxu0
        %1775 = vmatprep.mubr.f32.mxu0 0.0
        %1776 = vmatmul.mubr.f32.gmra.mrb[0].mxu0 %v1644
        %v1777 = vpop.f32.mrb[0].mxu0
        %v1778 = vadd.f32 0.0, %v1777
        %v1779 = vpop.f32.mrb[0].mxu0
        %1780 = vmatprep.mubr.f32.mxu0 0.0
        %1781 = vmatmul.mubr.f32.gmra.mrb[0].mxu0 %v1646
        %v1782 = vpop.f32.mrb[0].mxu0
        %v1783 = vadd.f32 0.0, %v1782
        %v1784 = vpop.f32.mrb[0].mxu0
        %1785 = vmatprep.mubr.f32.mxu0 0.0
        %1786 = vmatmul.mubr.f32.gmra.mrb[0].mxu0 %v1648
        %v1787 = vpop.f32.mrb[0].mxu0
        %v1788 = vadd.f32 0.0, %v1787
        %v1789 = vpop.f32.mrb[0].mxu0
        %1790 = vmatprep.mubr.f32.mxu0 0.0
        %1791 = vmatmul.mubr.f32.gmra.mrb[0].mxu0 %v1650
        %v1792 = vpop.f32.mrb[0].mxu0
        %v1793 = vadd.f32 0.0, %v1792
        %v1794 = vpop.f32.mrb[0].mxu0
        %1795 = vmatprep.mubr.f32.mxu0 0.0
        %1796 = vmatmul.mubr.f32.gmra.mrb[0].mxu0 %v1652
        %v1797 = vpop.f32.mrb[0].mxu0
        %v1798 = vadd.f32 0.0, %v1797
        %v1799 = vpop.f32.mrb[0].mxu0
        %1800 = vmatprep.mubr.f32.mxu0 0.0
        %1801 = vmatmul.mubr.f32.gmra.mrb[0].mxu0 %v1654
        %v1802 = vpop.f32.mrb[0].mxu0
        %v1803 = vadd.f32 0.0, %v1802
        %v1804 = vpop.f32.mrb[0].mxu0
        %1805 = vmatprep.mubr.f32.mxu0 0.0
        %1806 = vmatmul.mubr.f32.gmra.mrb[0].mxu0 %v1656
        %v1807 = vpop.f32.mrb[0].mxu0
        %v1808 = vadd.f32 0.0, %v1807
        %v1809 = vpop.f32.mrb[0].mxu0
        %1810 = vmatprep.mubr.f32.mxu0 0.0
        %1811 = vmatmul.mubr.f32.gmra.mrb[0].mxu0 %v1658
        %v1812 = vpop.f32.mrb[0].mxu0
        %v1813 = vadd.f32 0.0, %v1812
        %v1814 = vpop.f32.mrb[0].mxu0
        %1815 = vmatprep.mubr.f32.mxu0 0.0
        %1816 = vmatmul.mubr.f32.gmra.mrb[0].mxu0 %v1660
        %v1817 = vpop.f32.mrb[0].mxu0
        %v1818 = vadd.f32 0.0, %v1817
        %v1819 = vpop.f32.mrb[0].mxu0
        %1820 = vmatprep.mubr.f32.mxu0 0.0
        %1821 = vmatmul.mubr.f32.gmra.mrb[0].mxu0 %v1662
        %v1822 = vpop.f32.mrb[0].mxu0
        %v1823 = vadd.f32 0.0, %v1822
        %v1824 = vpop.f32.mrb[0].mxu0
        %1825 = vmatprep.mubr.f32.mxu0 0.0
        %1826 = vmatmul.mubr.f32.gmra.mrb[0].mxu0 %v1664
        %v1827 = vpop.f32.mrb[0].mxu0
        %v1828 = vadd.f32 0.0, %v1827
        %v1829 = vpop.f32.mrb[0].mxu0
        %1830 = vmatprep.mubr.f32.mxu0 0.0
        %1831 = vmatmul.mubr.f32.gmra.mrb[0].mxu0 %v1666
        %v1832 = vpop.f32.mrb[0].mxu0
        %v1833 = vadd.f32 0.0, %v1832
        %v1834 = vpop.f32.mrb[0].mxu0
        %1835 = vmatprep.mubr.f32.mxu0 0.0
        %1836 = vmatmul.mubr.f32.gmra.mrb[0].mxu0 %v1668
        %v1837 = vpop.f32.mrb[0].mxu0
        %v1838 = vadd.f32 0.0, %v1837
        %v1839 = vpop.f32.mrb[0].mxu0
        %1840 = vmatprep.mubr.f32.mxu0 0.0
        %1841 = vmatmul.mubr.f32.gmra.mrb[0].mxu0 %v1670
        %v1842 = vpop.f32.mrb[0].mxu0
        %v1843 = vadd.f32 0.0, %v1842
        %v1844 = vpop.f32.mrb[0].mxu0
        %1845 = vmatprep.mubr.f32.mxu0 0.0
        %1846 = vmatmul.mubr.f32.gmra.mrb[0].mxu0 %v1672
        %v1847 = vpop.f32.mrb[0].mxu0
        %v1848 = vadd.f32 0.0, %v1847
        %v1849 = vpop.f32.mrb[0].mxu0
        %1850 = vdwg.mxu0
        %1851 = vmax.xlane.f32.xlu0 %v1773
        %v1852 = vpop.xlane.xlu0 %1851
        %1853 = vmax.xlane.f32.xlu0 %v1778
        %v1854 = vpop.xlane.xlu0 %1853
        %1855 = vmax.xlane.f32.xlu0 %v1783
        %v1856 = vpop.xlane.xlu0 %1855
        %1857 = vmax.xlane.f32.xlu0 %v1788
        %v1858 = vpop.xlane.xlu0 %1857
        %1859 = vmax.xlane.f32.xlu0 %v1793
        %v1860 = vpop.xlane.xlu0 %1859
        %1861 = vmax.xlane.f32.xlu0 %v1798
        %v1862 = vpop.xlane.xlu0 %1861
        %1863 = vmax.xlane.f32.xlu0 %v1803
        %v1864 = vpop.xlane.xlu0 %1863
        %1865 = vmax.xlane.f32.xlu0 %v1808
        %v1866 = vpop.xlane.xlu0 %1865
        %1867 = vmax.xlane.f32.xlu0 %v1813
        %v1868 = vpop.xlane.xlu0 %1867
        %1869 = vmax.xlane.f32.xlu0 %v1818
        %v1870 = vpop.xlane.xlu0 %1869
        %1871 = vmax.xlane.f32.xlu0 %v1823
        %v1872 = vpop.xlane.xlu0 %1871
        %1873 = vmax.xlane.f32.xlu0 %v1828
        %v1874 = vpop.xlane.xlu0 %1873
        %1875 = vmax.xlane.f32.xlu0 %v1833
        %v1876 = vpop.xlane.xlu0 %1875
        %1877 = vmax.xlane.f32.xlu0 %v1838
        %v1878 = vpop.xlane.xlu0 %1877
        %1879 = vmax.xlane.f32.xlu0 %v1843
        %v1880 = vpop.xlane.xlu0 %1879
        %1881 = vmax.xlane.f32.xlu0 %v1848
        %v1882 = vpop.xlane.xlu0 %1881
        %v1883 = vsub.f32 %v1773, %v1852
        %v1884 = vsub.f32 %v1778, %v1854
        %v1885 = vsub.f32 %v1783, %v1856
        %v1886 = vsub.f32 %v1788, %v1858
        %v1887 = vsub.f32 %v1793, %v1860
        %v1888 = vsub.f32 %v1798, %v1862
        %v1889 = vsub.f32 %v1803, %v1864
        %v1890 = vsub.f32 %v1808, %v1866
        %v1891 = vsub.f32 %v1813, %v1868
        %v1892 = vsub.f32 %v1818, %v1870
        %v1893 = vsub.f32 %v1823, %v1872
        %v1894 = vsub.f32 %v1828, %v1874
        %v1895 = vsub.f32 %v1833, %v1876
        %v1896 = vsub.f32 %v1838, %v1878
        %v1897 = vsub.f32 %v1843, %v1880
        %v1898 = vsub.f32 %v1848, %v1882
        %v1899 = vmul.f32 %v1883, 1.442695
        %v1900 = vpow.pop %v1899
        %v1901 = vmul.f32 %v1884, 1.442695
        %v1902 = vpow.pop %v1901
        %v1903 = vmul.f32 %v1885, 1.442695
        %v1904 = vpow.pop %v1903
        %v1905 = vmul.f32 %v1886, 1.442695
        %v1906 = vpow.pop %v1905
        %v1907 = vmul.f32 %v1887, 1.442695
        %v1908 = vpow.pop %v1907
        %v1909 = vmul.f32 %v1888, 1.442695
        %v1910 = vpow.pop %v1909
        %v1911 = vmul.f32 %v1889, 1.442695
        %v1912 = vpow.pop %v1911
        %v1913 = vmul.f32 %v1890, 1.442695
        %v1914 = vpow.pop %v1913
        %v1915 = vmul.f32 %v1891, 1.442695
        %v1916 = vpow.pop %v1915
        %v1917 = vmul.f32 %v1892, 1.442695
        %v1918 = vpow.pop %v1917
        %v1919 = vmul.f32 %v1893, 1.442695
        %v1920 = vpow.pop %v1919
        %v1921 = vmul.f32 %v1894, 1.442695
        %v1922 = vpow.pop %v1921
        %v1923 = vmul.f32 %v1895, 1.442695
        %v1924 = vpow.pop %v1923
        %v1925 = vmul.f32 %v1896, 1.442695
        %v1926 = vpow.pop %v1925
        %v1927 = vmul.f32 %v1897, 1.442695
        %v1928 = vpow.pop %v1927
        %v1929 = vmul.f32 %v1898, 1.442695
        %v1930 = vpow.pop %v1929
        %1931 = vadd.xlane.f32.xlu0 %v1900
        %v1932 = vpop.xlane.xlu0 %1931
        %1933 = vadd.xlane.f32.xlu0 %v1902
        %v1934 = vpop.xlane.xlu0 %1933
        %1935 = vadd.xlane.f32.xlu0 %v1904
        %v1936 = vpop.xlane.xlu0 %1935
        %1937 = vadd.xlane.f32.xlu0 %v1906
        %v1938 = vpop.xlane.xlu0 %1937
        %1939 = vadd.xlane.f32.xlu0 %v1908
        %v1940 = vpop.xlane.xlu0 %1939
        %1941 = vadd.xlane.f32.xlu0 %v1910
        %v1942 = vpop.xlane.xlu0 %1941
        %1943 = vadd.xlane.f32.xlu0 %v1912
        %v1944 = vpop.xlane.xlu0 %1943
        %1945 = vadd.xlane.f32.xlu0 %v1914
        %v1946 = vpop.xlane.xlu0 %1945
        %1947 = vadd.xlane.f32.xlu0 %v1916
        %v1948 = vpop.xlane.xlu0 %1947
        %1949 = vadd.xlane.f32.xlu0 %v1918
        %v1950 = vpop.xlane.xlu0 %1949
        %1951 = vadd.xlane.f32.xlu0 %v1920
        %v1952 = vpop.xlane.xlu0 %1951
        %1953 = vadd.xlane.f32.xlu0 %v1922
        %v1954 = vpop.xlane.xlu0 %1953
        %1955 = vadd.xlane.f32.xlu0 %v1924
        %v1956 = vpop.xlane.xlu0 %1955
        %1957 = vadd.xlane.f32.xlu0 %v1926
        %v1958 = vpop.xlane.xlu0 %1957
        %1959 = vadd.xlane.f32.xlu0 %v1928
        %v1960 = vpop.xlane.xlu0 %1959
        %1961 = vadd.xlane.f32.xlu0 %v1930
        %v1962 = vpop.xlane.xlu0 %1961
        %v1963 = vrcp.pop %v1932
        %v1964 = vrcp.pop %v1934
        %v1965 = vrcp.pop %v1936
        %v1966 = vrcp.pop %v1938
        %v1967 = vrcp.pop %v1940
        %v1968 = vrcp.pop %v1942
        %v1969 = vrcp.pop %v1944
        %v1970 = vrcp.pop %v1946
        %v1971 = vrcp.pop %v1948
        %v1972 = vrcp.pop %v1950
        %v1973 = vrcp.pop %v1952
        %v1974 = vrcp.pop %v1954
        %v1975 = vrcp.pop %v1956
        %v1976 = vrcp.pop %v1958
        %v1977 = vrcp.pop %v1960
        %v1978 = vrcp.pop %v1962
        %v1979 = vmul.f32 %v1900, %v1963
        %v1980 = vmul.f32 %v1902, %v1964
        %v1981 = vmul.f32 %v1904, %v1965
        %v1982 = vmul.f32 %v1906, %v1966
        %v1983 = vmul.f32 %v1908, %v1967
        %v1984 = vmul.f32 %v1910, %v1968
        %v1985 = vmul.f32 %v1912, %v1969
        %v1986 = vmul.f32 %v1914, %v1970
        %v1987 = vmul.f32 %v1916, %v1971
        %v1988 = vmul.f32 %v1918, %v1972
        %v1989 = vmul.f32 %v1920, %v1973
        %v1990 = vmul.f32 %v1922, %v1974
        %v1991 = vmul.f32 %v1924, %v1975
        %v1992 = vmul.f32 %v1926, %v1976
        %v1993 = vmul.f32 %v1928, %v1977
        %v1994 = vmul.f32 %v1930, %v1978
        %2011 = vrot.lane.b32.xlu0 %v953, 96
        %v2012 = vpop.permute.xlu0 %2011
        %2013 = vrot.lane.b32.xlu0 %v958, 96
        %v2014 = vpop.permute.xlu0 %2013
        %2015 = vrot.lane.b32.xlu0 %v963, 96
        %v2016 = vpop.permute.xlu0 %2015
        %2017 = vrot.lane.b32.xlu0 %v968, 96
        %v2018 = vpop.permute.xlu0 %2017
        %2019 = vrot.lane.b32.xlu0 %v973, 96
        %v2020 = vpop.permute.xlu0 %2019
        %2021 = vrot.lane.b32.xlu0 %v978, 96
        %v2022 = vpop.permute.xlu0 %2021
        %2023 = vrot.lane.b32.xlu0 %v983, 96
        %v2024 = vpop.permute.xlu0 %2023
        %2025 = vrot.lane.b32.xlu0 %v988, 96
        %v2026 = vpop.permute.xlu0 %2025
        %2027 = vrot.lane.b32.xlu0 %v993, 96
        %v2028 = vpop.permute.xlu0 %2027
        %2029 = vrot.lane.b32.xlu0 %v998, 96
        %v2030 = vpop.permute.xlu0 %2029
        %2031 = vrot.lane.b32.xlu0 %v1003, 96
        %v2032 = vpop.permute.xlu0 %2031
        %2033 = vrot.lane.b32.xlu0 %v1008, 96
        %v2034 = vpop.permute.xlu0 %2033
        %2035 = vrot.lane.b32.xlu0 %v1013, 96
        %v2036 = vpop.permute.xlu0 %2035
        %2037 = vrot.lane.b32.xlu0 %v1018, 96
        %v2038 = vpop.permute.xlu0 %2037
        %2039 = vrot.lane.b32.xlu0 %v1023, 96
        %v2040 = vpop.permute.xlu0 %2039
        %2041 = vrot.lane.b32.xlu0 %v1028, 96
        %v2042 = vpop.permute.xlu0 %2041
        %2059 = vmatprep.subr.mxu0 0.0
        %2060 = vmatpush1.msra.mxu0 %v2012
        %2061 = vmatprep.subr.mxu0 0.0
        %2062 = vmatpush1.msra.mxu0 %v2014
        %2063 = vmatprep.subr.mxu0 0.0
        %2064 = vmatpush1.msra.mxu0 %v2016
        %2065 = vmatprep.subr.mxu0 0.0
        %2066 = vmatpush1.msra.mxu0 %v2018
        %2067 = vmatprep.subr.mxu0 0.0
        %2068 = vmatpush1.msra.mxu0 %v2020
        %2069 = vmatprep.subr.mxu0 0.0
        %2070 = vmatpush1.msra.mxu0 %v2022
        %2071 = vmatprep.subr.mxu0 0.0
        %2072 = vmatpush1.msra.mxu0 %v2024
        %2073 = vmatprep.subr.mxu0 0.0
        %2074 = vmatpush1.msra.mxu0 %v2026
        %2075 = vmatprep.subr.mxu0 0.0
        %2076 = vmatpush1.msra.mxu0 %v2028
        %2077 = vmatprep.subr.mxu0 0.0
        %2078 = vmatpush1.msra.mxu0 %v2030
        %2079 = vmatprep.subr.mxu0 0.0
        %2080 = vmatpush1.msra.mxu0 %v2032
        %2081 = vmatprep.subr.mxu0 0.0
        %2082 = vmatpush1.msra.mxu0 %v2034
        %2083 = vmatprep.subr.mxu0 0.0
        %2084 = vmatpush1.msra.mxu0 %v2036
        %2085 = vmatprep.subr.mxu0 0.0
        %2086 = vmatpush1.msra.mxu0 %v2038
        %2087 = vmatprep.subr.mxu0 0.0
        %2088 = vmatpush1.msra.mxu0 %v2040
        %2089 = vmatprep.subr.mxu0 0.0
        %2090 = vmatpush1.msra.mxu0 %v2042
        %2091 = vmatprep.subr.mxu0 0.0
        %2092 = vmatpush1.msra.mxu0 0.0
        %2093 = vmatprep.subr.mxu0 0.0
        %2094 = vmatpush1.msra.mxu0 0.0
        %2095 = vmatprep.subr.mxu0 0.0
        %2096 = vmatpush1.msra.mxu0 0.0
        %2097 = vmatprep.subr.mxu0 0.0
        %2098 = vmatpush1.msra.mxu0 0.0
        %2099 = vmatprep.subr.mxu0 0.0
        %2100 = vmatpush1.msra.mxu0 0.0
        %2101 = vmatprep.subr.mxu0 0.0
        %2102 = vmatpush1.msra.mxu0 0.0
        %2103 = vmatprep.subr.mxu0 0.0
        %2104 = vmatpush1.msra.mxu0 0.0
        %2105 = vmatprep.subr.mxu0 0.0
        %2106 = vmatpush1.msra.mxu0 0.0
        %2107 = vmatprep.subr.mxu0 0.0
        %2108 = vmatpush1.msra.mxu0 0.0
        %2109 = vmatprep.subr.mxu0 0.0
        %2110 = vmatpush1.msra.mxu0 0.0
        %2111 = vmatprep.subr.mxu0 0.0
        %2112 = vmatpush1.msra.mxu0 0.0
        %2113 = vmatprep.subr.mxu0 0.0
        %2114 = vmatpush1.msra.mxu0 0.0
        %2115 = vmatprep.subr.mxu0 0.0
        %2116 = vmatpush1.msra.mxu0 0.0
        %2117 = vmatprep.subr.mxu0 0.0
        %2118 = vmatpush1.msra.mxu0 0.0
        %2119 = vmatprep.subr.mxu0 0.0
        %2120 = vmatpush1.msra.mxu0 0.0
        %2121 = vmatprep.subr.mxu0 0.0
        %2122 = vmatpush1.msra.mxu0 0.0
        %2123 = vmatprep.mubr.f32.mxu0 0.0
        %2124 = vmatmul.mubr.f32.gmra.mrb[0].mxu0 %v1979
        %v2125 = vpop.f32.mrb[0].mxu0
        %v2126 = vadd.f32 0.0, %v2125
        %v2127 = vpop.f32.mrb[0].mxu0
        %2128 = vmatprep.mubr.f32.mxu0 0.0
        %2129 = vmatmul.mubr.f32.gmra.mrb[0].mxu0 %v1980
        %v2130 = vpop.f32.mrb[0].mxu0
        %v2131 = vadd.f32 0.0, %v2130
        %v2132 = vpop.f32.mrb[0].mxu0
        %2133 = vmatprep.mubr.f32.mxu0 0.0
        %2134 = vmatmul.mubr.f32.gmra.mrb[0].mxu0 %v1981
        %v2135 = vpop.f32.mrb[0].mxu0
        %v2136 = vadd.f32 0.0, %v2135
        %v2137 = vpop.f32.mrb[0].mxu0
        %2138 = vmatprep.mubr.f32.mxu0 0.0
        %2139 = vmatmul.mubr.f32.gmra.mrb[0].mxu0 %v1982
        %v2140 = vpop.f32.mrb[0].mxu0
        %v2141 = vadd.f32 0.0, %v2140
        %v2142 = vpop.f32.mrb[0].mxu0
        %2143 = vmatprep.mubr.f32.mxu0 0.0
        %2144 = vmatmul.mubr.f32.gmra.mrb[0].mxu0 %v1983
        %v2145 = vpop.f32.mrb[0].mxu0
        %v2146 = vadd.f32 0.0, %v2145
        %v2147 = vpop.f32.mrb[0].mxu0
        %2148 = vmatprep.mubr.f32.mxu0 0.0
        %2149 = vmatmul.mubr.f32.gmra.mrb[0].mxu0 %v1984
        %v2150 = vpop.f32.mrb[0].mxu0
        %v2151 = vadd.f32 0.0, %v2150
        %v2152 = vpop.f32.mrb[0].mxu0
        %2153 = vmatprep.mubr.f32.mxu0 0.0
        %2154 = vmatmul.mubr.f32.gmra.mrb[0].mxu0 %v1985
        %v2155 = vpop.f32.mrb[0].mxu0
        %v2156 = vadd.f32 0.0, %v2155
        %v2157 = vpop.f32.mrb[0].mxu0
        %2158 = vmatprep.mubr.f32.mxu0 0.0
        %2159 = vmatmul.mubr.f32.gmra.mrb[0].mxu0 %v1986
        %v2160 = vpop.f32.mrb[0].mxu0
        %v2161 = vadd.f32 0.0, %v2160
        %v2162 = vpop.f32.mrb[0].mxu0
        %2163 = vmatprep.mubr.f32.mxu0 0.0
        %2164 = vmatmul.mubr.f32.gmra.mrb[0].mxu0 %v1987
        %v2165 = vpop.f32.mrb[0].mxu0
        %v2166 = vadd.f32 0.0, %v2165
        %v2167 = vpop.f32.mrb[0].mxu0
        %2168 = vmatprep.mubr.f32.mxu0 0.0
        %2169 = vmatmul.mubr.f32.gmra.mrb[0].mxu0 %v1988
        %v2170 = vpop.f32.mrb[0].mxu0
        %v2171 = vadd.f32 0.0, %v2170
        %v2172 = vpop.f32.mrb[0].mxu0
        %2173 = vmatprep.mubr.f32.mxu0 0.0
        %2174 = vmatmul.mubr.f32.gmra.mrb[0].mxu0 %v1989
        %v2175 = vpop.f32.mrb[0].mxu0
        %v2176 = vadd.f32 0.0, %v2175
        %v2177 = vpop.f32.mrb[0].mxu0
        %2178 = vmatprep.mubr.f32.mxu0 0.0
        %2179 = vmatmul.mubr.f32.gmra.mrb[0].mxu0 %v1990
        %v2180 = vpop.f32.mrb[0].mxu0
        %v2181 = vadd.f32 0.0, %v2180
        %v2182 = vpop.f32.mrb[0].mxu0
        %2183 = vmatprep.mubr.f32.mxu0 0.0
        %2184 = vmatmul.mubr.f32.gmra.mrb[0].mxu0 %v1991
        %v2185 = vpop.f32.mrb[0].mxu0
        %v2186 = vadd.f32 0.0, %v2185
        %v2187 = vpop.f32.mrb[0].mxu0
        %2188 = vmatprep.mubr.f32.mxu0 0.0
        %2189 = vmatmul.mubr.f32.gmra.mrb[0].mxu0 %v1992
        %v2190 = vpop.f32.mrb[0].mxu0
        %v2191 = vadd.f32 0.0, %v2190
        %v2192 = vpop.f32.mrb[0].mxu0
        %2193 = vmatprep.mubr.f32.mxu0 0.0
        %2194 = vmatmul.mubr.f32.gmra.mrb[0].mxu0 %v1993
        %v2195 = vpop.f32.mrb[0].mxu0
        %v2196 = vadd.f32 0.0, %v2195
        %v2197 = vpop.f32.mrb[0].mxu0
        %2198 = vmatprep.mubr.f32.mxu0 0.0
        %2199 = vmatmul.mubr.f32.gmra.mrb[0].mxu0 %v1994
        %v2200 = vpop.f32.mrb[0].mxu0
        %v2201 = vadd.f32 0.0, %v2200
        %v2202 = vpop.f32.mrb[0].mxu0
        %2203 = vdwg.mxu0
        %2220 = vrot.lane.b32.xlu0 %v2126, 32
        %v2221 = vpop.permute.xlu0 %2220
        %2222 = vrot.lane.b32.xlu0 %v2131, 32
        %v2223 = vpop.permute.xlu0 %2222
        %2224 = vrot.lane.b32.xlu0 %v2136, 32
        %v2225 = vpop.permute.xlu0 %2224
        %2226 = vrot.lane.b32.xlu0 %v2141, 32
        %v2227 = vpop.permute.xlu0 %2226
        %2228 = vrot.lane.b32.xlu0 %v2146, 32
        %v2229 = vpop.permute.xlu0 %2228
        %2230 = vrot.lane.b32.xlu0 %v2151, 32
        %v2231 = vpop.permute.xlu0 %2230
        %2232 = vrot.lane.b32.xlu0 %v2156, 32
        %v2233 = vpop.permute.xlu0 %2232
        %2234 = vrot.lane.b32.xlu0 %v2161, 32
        %v2235 = vpop.permute.xlu0 %2234
        %2236 = vrot.lane.b32.xlu0 %v2166, 32
        %v2237 = vpop.permute.xlu0 %2236
        %2238 = vrot.lane.b32.xlu0 %v2171, 32
        %v2239 = vpop.permute.xlu0 %2238
        %2240 = vrot.lane.b32.xlu0 %v2176, 32
        %v2241 = vpop.permute.xlu0 %2240
        %2242 = vrot.lane.b32.xlu0 %v2181, 32
        %v2243 = vpop.permute.xlu0 %2242
        %2244 = vrot.lane.b32.xlu0 %v2186, 32
        %v2245 = vpop.permute.xlu0 %2244
        %2246 = vrot.lane.b32.xlu0 %v2191, 32
        %v2247 = vpop.permute.xlu0 %2246
        %2248 = vrot.lane.b32.xlu0 %v2196, 32
        %v2249 = vpop.permute.xlu0 %2248
        %2250 = vrot.lane.b32.xlu0 %v2201, 32
        %v2251 = vpop.permute.xlu0 %2250
        %vm2268 = vcmask 523520
        %2269 = vst.msk [vmem:[#allocation3] sm:$0xff] %vm2268, %v2221
        %2270 = vst.msk [vmem:[#allocation3 + $0x8] sm:$0xff] %vm2268, %v2223
        %2271 = vst.msk [vmem:[#allocation3 + $0x10] sm:$0xff] %vm2268, %v2225
        %2272 = vst.msk [vmem:[#allocation3 + $0x18] sm:$0xff] %vm2268, %v2227
        %2273 = vst.msk [vmem:[#allocation3 + $0x20] sm:$0xff] %vm2268, %v2229
        %2274 = vst.msk [vmem:[#allocation3 + $0x28] sm:$0xff] %vm2268, %v2231
        %2275 = vst.msk [vmem:[#allocation3 + $0x30] sm:$0xff] %vm2268, %v2233
        %2276 = vst.msk [vmem:[#allocation3 + $0x38] sm:$0xff] %vm2268, %v2235
        %2277 = vst.msk [vmem:[#allocation3 + $0x40] sm:$0xff] %vm2268, %v2237
        %2278 = vst.msk [vmem:[#allocation3 + $0x48] sm:$0xff] %vm2268, %v2239
        %2279 = vst.msk [vmem:[#allocation3 + $0x50] sm:$0xff] %vm2268, %v2241
        %2280 = vst.msk [vmem:[#allocation3 + $0x58] sm:$0xff] %vm2268, %v2243
        %2281 = vst.msk [vmem:[#allocation3 + $0x60] sm:$0xff] %vm2268, %v2245
        %2282 = vst.msk [vmem:[#allocation3 + $0x68] sm:$0xff] %vm2268, %v2247
        %2283 = vst.msk [vmem:[#allocation3 + $0x70] sm:$0xff] %vm2268, %v2249
        %2284 = vst.msk [vmem:[#allocation3 + $0x78] sm:$0xff] %vm2268, %v2251
        %2285 = vrot.lane.b32.xlu0 %v792, 64
        %v2286 = vpop.permute.xlu0 %2285
        %2287 = vrot.lane.b32.xlu0 %v798, 64
        %v2288 = vpop.permute.xlu0 %2287
        %2289 = vrot.lane.b32.xlu0 %v804, 64
        %v2290 = vpop.permute.xlu0 %2289
        %2291 = vrot.lane.b32.xlu0 %v810, 64
        %v2292 = vpop.permute.xlu0 %2291
        %2293 = vrot.lane.b32.xlu0 %v816, 64
        %v2294 = vpop.permute.xlu0 %2293
        %2295 = vrot.lane.b32.xlu0 %v822, 64
        %v2296 = vpop.permute.xlu0 %2295
        %2297 = vrot.lane.b32.xlu0 %v828, 64
        %v2298 = vpop.permute.xlu0 %2297
        %2299 = vrot.lane.b32.xlu0 %v834, 64
        %v2300 = vpop.permute.xlu0 %2299
        %2301 = vrot.lane.b32.xlu0 %v840, 64
        %v2302 = vpop.permute.xlu0 %2301
        %2303 = vrot.lane.b32.xlu0 %v846, 64
        %v2304 = vpop.permute.xlu0 %2303
        %2305 = vrot.lane.b32.xlu0 %v852, 64
        %v2306 = vpop.permute.xlu0 %2305
        %2307 = vrot.lane.b32.xlu0 %v858, 64
        %v2308 = vpop.permute.xlu0 %2307
        %2309 = vrot.lane.b32.xlu0 %v864, 64
        %v2310 = vpop.permute.xlu0 %2309
        %2311 = vrot.lane.b32.xlu0 %v870, 64
        %v2312 = vpop.permute.xlu0 %2311
        %2313 = vrot.lane.b32.xlu0 %v876, 64
        %v2314 = vpop.permute.xlu0 %2313
        %2315 = vrot.lane.b32.xlu0 %v882, 64
        %v2316 = vpop.permute.xlu0 %2315
        %2317 = vrot.lane.b32.xlu0 %v794, 64
        %v2318 = vpop.permute.xlu0 %2317
        %2319 = vrot.lane.b32.xlu0 %v800, 64
        %v2320 = vpop.permute.xlu0 %2319
        %2321 = vrot.lane.b32.xlu0 %v806, 64
        %v2322 = vpop.permute.xlu0 %2321
        %2323 = vrot.lane.b32.xlu0 %v812, 64
        %v2324 = vpop.permute.xlu0 %2323
        %2325 = vrot.lane.b32.xlu0 %v818, 64
        %v2326 = vpop.permute.xlu0 %2325
        %2327 = vrot.lane.b32.xlu0 %v824, 64
        %v2328 = vpop.permute.xlu0 %2327
        %2329 = vrot.lane.b32.xlu0 %v830, 64
        %v2330 = vpop.permute.xlu0 %2329
        %2331 = vrot.lane.b32.xlu0 %v836, 64
        %v2332 = vpop.permute.xlu0 %2331
        %2333 = vrot.lane.b32.xlu0 %v842, 64
        %v2334 = vpop.permute.xlu0 %2333
        %2335 = vrot.lane.b32.xlu0 %v848, 64
        %v2336 = vpop.permute.xlu0 %2335
        %2337 = vrot.lane.b32.xlu0 %v854, 64
        %v2338 = vpop.permute.xlu0 %2337
        %2339 = vrot.lane.b32.xlu0 %v860, 64
        %v2340 = vpop.permute.xlu0 %2339
        %2341 = vrot.lane.b32.xlu0 %v866, 64
        %v2342 = vpop.permute.xlu0 %2341
        %2343 = vrot.lane.b32.xlu0 %v872, 64
        %v2344 = vpop.permute.xlu0 %2343
        %2345 = vrot.lane.b32.xlu0 %v878, 64
        %v2346 = vpop.permute.xlu0 %2345
        %2347 = vrot.lane.b32.xlu0 %v884, 64
        %v2348 = vpop.permute.xlu0 %2347
        %v2349 = vsel %vm1031, %v2286, 0
        %v2351 = vsel %vm1031, %v2288, 0
        %v2353 = vsel %vm1031, %v2290, 0
        %v2355 = vsel %vm1031, %v2292, 0
        %v2357 = vsel %vm1031, %v2294, 0
        %v2359 = vsel %vm1031, %v2296, 0
        %v2361 = vsel %vm1031, %v2298, 0
        %v2363 = vsel %vm1031, %v2300, 0
        %v2365 = vsel %vm1031, %v2302, 0
        %v2367 = vsel %vm1031, %v2304, 0
        %v2369 = vsel %vm1031, %v2306, 0
        %v2371 = vsel %vm1031, %v2308, 0
        %v2373 = vsel %vm1031, %v2310, 0
        %v2375 = vsel %vm1031, %v2312, 0
        %v2377 = vsel %vm1031, %v2314, 0
        %v2379 = vsel %vm1031, %v2316, 0
        %v2381 = vsel %vm1031, %v2318, 0
        %v2383 = vsel %vm1031, %v2320, 0
        %v2385 = vsel %vm1031, %v2322, 0
        %v2387 = vsel %vm1031, %v2324, 0
        %v2389 = vsel %vm1031, %v2326, 0
        %v2391 = vsel %vm1031, %v2328, 0
        %v2393 = vsel %vm1031, %v2330, 0
        %v2395 = vsel %vm1031, %v2332, 0
        %v2397 = vsel %vm1031, %v2334, 0
        %v2399 = vsel %vm1031, %v2336, 0
        %v2401 = vsel %vm1031, %v2338, 0
        %v2403 = vsel %vm1031, %v2340, 0
        %v2405 = vsel %vm1031, %v2342, 0
        %v2407 = vsel %vm1031, %v2344, 0
        %v2409 = vsel %vm1031, %v2346, 0
        %v2411 = vsel %vm1031, %v2348, 0
        %2413 = vmatprep.subr.mxu0 0.0
        %2414 = vmatpush1.xpose.msra.mxu0 %v2381
        %2415 = vmatprep.subr.mxu0 0.0
        %2416 = vmatpush1.xpose.msra.mxu0 %v2383
        %2417 = vmatprep.subr.mxu0 0.0
        %2418 = vmatpush1.xpose.msra.mxu0 %v2385
        %2419 = vmatprep.subr.mxu0 0.0
        %2420 = vmatpush1.xpose.msra.mxu0 %v2387
        %2421 = vmatprep.subr.mxu0 0.0
        %2422 = vmatpush1.xpose.msra.mxu0 %v2389
        %2423 = vmatprep.subr.mxu0 0.0
        %2424 = vmatpush1.xpose.msra.mxu0 %v2391
        %2425 = vmatprep.subr.mxu0 0.0
        %2426 = vmatpush1.xpose.msra.mxu0 %v2393
        %2427 = vmatprep.subr.mxu0 0.0
        %2428 = vmatpush1.xpose.msra.mxu0 %v2395
        %2429 = vmatprep.subr.mxu0 0.0
        %2430 = vmatpush1.xpose.msra.mxu0 %v2397
        %2431 = vmatprep.subr.mxu0 0.0
        %2432 = vmatpush1.xpose.msra.mxu0 %v2399
        %2433 = vmatprep.subr.mxu0 0.0
        %2434 = vmatpush1.xpose.msra.mxu0 %v2401
        %2435 = vmatprep.subr.mxu0 0.0
        %2436 = vmatpush1.xpose.msra.mxu0 %v2403
        %2437 = vmatprep.subr.mxu0 0.0
        %2438 = vmatpush1.xpose.msra.mxu0 %v2405
        %2439 = vmatprep.subr.mxu0 0.0
        %2440 = vmatpush1.xpose.msra.mxu0 %v2407
        %2441 = vmatprep.subr.mxu0 0.0
        %2442 = vmatpush1.xpose.msra.mxu0 %v2409
        %2443 = vmatprep.subr.mxu0 0.0
        %2444 = vmatpush1.xpose.msra.mxu0 %v2411
        %2445 = vmatprep.subr.mxu0 0.0
        %2446 = vmatpush1.xpose.msra.mxu0 0.0
        %2447 = vmatprep.subr.mxu0 0.0
        %2448 = vmatpush1.xpose.msra.mxu0 0.0
        %2449 = vmatprep.subr.mxu0 0.0
        %2450 = vmatpush1.xpose.msra.mxu0 0.0
        %2451 = vmatprep.subr.mxu0 0.0
        %2452 = vmatpush1.xpose.msra.mxu0 0.0
        %2453 = vmatprep.subr.mxu0 0.0
        %2454 = vmatpush1.xpose.msra.mxu0 0.0
        %2455 = vmatprep.subr.mxu0 0.0
        %2456 = vmatpush1.xpose.msra.mxu0 0.0
        %2457 = vmatprep.subr.mxu0 0.0
        %2458 = vmatpush1.xpose.msra.mxu0 0.0
        %2459 = vmatprep.subr.mxu0 0.0
        %2460 = vmatpush1.xpose.msra.mxu0 0.0
        %2461 = vmatprep.subr.mxu0 0.0
        %2462 = vmatpush1.xpose.msra.mxu0 0.0
        %2463 = vmatprep.subr.mxu0 0.0
        %2464 = vmatpush1.xpose.msra.mxu0 0.0
        %2465 = vmatprep.subr.mxu0 0.0
        %2466 = vmatpush1.xpose.msra.mxu0 0.0
        %2467 = vmatprep.subr.mxu0 0.0
        %2468 = vmatpush1.xpose.msra.mxu0 0.0
        %2469 = vmatprep.subr.mxu0 0.0
        %2470 = vmatpush1.xpose.msra.mxu0 0.0
        %2471 = vmatprep.subr.mxu0 0.0
        %2472 = vmatpush1.xpose.msra.mxu0 0.0
        %2473 = vmatprep.subr.mxu0 0.0
        %2474 = vmatpush1.xpose.msra.mxu0 0.0
        %2475 = vmatprep.subr.mxu0 0.0
        %2476 = vmatpush1.xpose.msra.mxu0 0.0
        %2477 = vmatprep.mubr.f32.mxu0 0.0
        %2478 = vmatmul.mubr.f32.gmra.mrb[0].mxu0 %v2349
        %v2479 = vpop.f32.mrb[0].mxu0
        %v2480 = vadd.f32 0.0, %v2479
        %v2481 = vpop.f32.mrb[0].mxu0
        %2482 = vmatprep.mubr.f32.mxu0 0.0
        %2483 = vmatmul.mubr.f32.gmra.mrb[0].mxu0 %v2351
        %v2484 = vpop.f32.mrb[0].mxu0
        %v2485 = vadd.f32 0.0, %v2484
        %v2486 = vpop.f32.mrb[0].mxu0
        %2487 = vmatprep.mubr.f32.mxu0 0.0
        %2488 = vmatmul.mubr.f32.gmra.mrb[0].mxu0 %v2353
        %v2489 = vpop.f32.mrb[0].mxu0
        %v2490 = vadd.f32 0.0, %v2489
        %v2491 = vpop.f32.mrb[0].mxu0
        %2492 = vmatprep.mubr.f32.mxu0 0.0
        %2493 = vmatmul.mubr.f32.gmra.mrb[0].mxu0 %v2355
        %v2494 = vpop.f32.mrb[0].mxu0
        %v2495 = vadd.f32 0.0, %v2494
        %v2496 = vpop.f32.mrb[0].mxu0
        %2497 = vmatprep.mubr.f32.mxu0 0.0
        %2498 = vmatmul.mubr.f32.gmra.mrb[0].mxu0 %v2357
        %v2499 = vpop.f32.mrb[0].mxu0
        %v2500 = vadd.f32 0.0, %v2499
        %v2501 = vpop.f32.mrb[0].mxu0
        %2502 = vmatprep.mubr.f32.mxu0 0.0
        %2503 = vmatmul.mubr.f32.gmra.mrb[0].mxu0 %v2359
        %v2504 = vpop.f32.mrb[0].mxu0
        %v2505 = vadd.f32 0.0, %v2504
        %v2506 = vpop.f32.mrb[0].mxu0
        %2507 = vmatprep.mubr.f32.mxu0 0.0
        %2508 = vmatmul.mubr.f32.gmra.mrb[0].mxu0 %v2361
        %v2509 = vpop.f32.mrb[0].mxu0
        %v2510 = vadd.f32 0.0, %v2509
        %v2511 = vpop.f32.mrb[0].mxu0
        %2512 = vmatprep.mubr.f32.mxu0 0.0
        %2513 = vmatmul.mubr.f32.gmra.mrb[0].mxu0 %v2363
        %v2514 = vpop.f32.mrb[0].mxu0
        %v2515 = vadd.f32 0.0, %v2514
        %v2516 = vpop.f32.mrb[0].mxu0
        %2517 = vmatprep.mubr.f32.mxu0 0.0
        %2518 = vmatmul.mubr.f32.gmra.mrb[0].mxu0 %v2365
        %v2519 = vpop.f32.mrb[0].mxu0
        %v2520 = vadd.f32 0.0, %v2519
        %v2521 = vpop.f32.mrb[0].mxu0
        %2522 = vmatprep.mubr.f32.mxu0 0.0
        %2523 = vmatmul.mubr.f32.gmra.mrb[0].mxu0 %v2367
        %v2524 = vpop.f32.mrb[0].mxu0
        %v2525 = vadd.f32 0.0, %v2524
        %v2526 = vpop.f32.mrb[0].mxu0
        %2527 = vmatprep.mubr.f32.mxu0 0.0
        %2528 = vmatmul.mubr.f32.gmra.mrb[0].mxu0 %v2369
        %v2529 = vpop.f32.mrb[0].mxu0
        %v2530 = vadd.f32 0.0, %v2529
        %v2531 = vpop.f32.mrb[0].mxu0
        %2532 = vmatprep.mubr.f32.mxu0 0.0
        %2533 = vmatmul.mubr.f32.gmra.mrb[0].mxu0 %v2371
        %v2534 = vpop.f32.mrb[0].mxu0
        %v2535 = vadd.f32 0.0, %v2534
        %v2536 = vpop.f32.mrb[0].mxu0
        %2537 = vmatprep.mubr.f32.mxu0 0.0
        %2538 = vmatmul.mubr.f32.gmra.mrb[0].mxu0 %v2373
        %v2539 = vpop.f32.mrb[0].mxu0
        %v2540 = vadd.f32 0.0, %v2539
        %v2541 = vpop.f32.mrb[0].mxu0
        %2542 = vmatprep.mubr.f32.mxu0 0.0
        %2543 = vmatmul.mubr.f32.gmra.mrb[0].mxu0 %v2375
        %v2544 = vpop.f32.mrb[0].mxu0
        %v2545 = vadd.f32 0.0, %v2544
        %v2546 = vpop.f32.mrb[0].mxu0
        %2547 = vmatprep.mubr.f32.mxu0 0.0
        %2548 = vmatmul.mubr.f32.gmra.mrb[0].mxu0 %v2377
        %v2549 = vpop.f32.mrb[0].mxu0
        %v2550 = vadd.f32 0.0, %v2549
        %v2551 = vpop.f32.mrb[0].mxu0
        %2552 = vmatprep.mubr.f32.mxu0 0.0
        %2553 = vmatmul.mubr.f32.gmra.mrb[0].mxu0 %v2379
        %v2554 = vpop.f32.mrb[0].mxu0
        %v2555 = vadd.f32 0.0, %v2554
        %v2556 = vpop.f32.mrb[0].mxu0
        %2557 = vdwg.mxu0
        %2558 = vmax.xlane.f32.xlu0 %v2480
        %v2559 = vpop.xlane.xlu0 %2558
        %2560 = vmax.xlane.f32.xlu0 %v2485
        %v2561 = vpop.xlane.xlu0 %2560
        %2562 = vmax.xlane.f32.xlu0 %v2490
        %v2563 = vpop.xlane.xlu0 %2562
        %2564 = vmax.xlane.f32.xlu0 %v2495
        %v2565 = vpop.xlane.xlu0 %2564
        %2566 = vmax.xlane.f32.xlu0 %v2500
        %v2567 = vpop.xlane.xlu0 %2566
        %2568 = vmax.xlane.f32.xlu0 %v2505
        %v2569 = vpop.xlane.xlu0 %2568
        %2570 = vmax.xlane.f32.xlu0 %v2510
        %v2571 = vpop.xlane.xlu0 %2570
        %2572 = vmax.xlane.f32.xlu0 %v2515
        %v2573 = vpop.xlane.xlu0 %2572
        %2574 = vmax.xlane.f32.xlu0 %v2520
        %v2575 = vpop.xlane.xlu0 %2574
        %2576 = vmax.xlane.f32.xlu0 %v2525
        %v2577 = vpop.xlane.xlu0 %2576
        %2578 = vmax.xlane.f32.xlu0 %v2530
        %v2579 = vpop.xlane.xlu0 %2578
        %2580 = vmax.xlane.f32.xlu0 %v2535
        %v2581 = vpop.xlane.xlu0 %2580
        %2582 = vmax.xlane.f32.xlu0 %v2540
        %v2583 = vpop.xlane.xlu0 %2582
        %2584 = vmax.xlane.f32.xlu0 %v2545
        %v2585 = vpop.xlane.xlu0 %2584
        %2586 = vmax.xlane.f32.xlu0 %v2550
        %v2587 = vpop.xlane.xlu0 %2586
        %2588 = vmax.xlane.f32.xlu0 %v2555
        %v2589 = vpop.xlane.xlu0 %2588
        %v2590 = vsub.f32 %v2480, %v2559
        %v2591 = vsub.f32 %v2485, %v2561
        %v2592 = vsub.f32 %v2490, %v2563
        %v2593 = vsub.f32 %v2495, %v2565
        %v2594 = vsub.f32 %v2500, %v2567
        %v2595 = vsub.f32 %v2505, %v2569
        %v2596 = vsub.f32 %v2510, %v2571
        %v2597 = vsub.f32 %v2515, %v2573
        %v2598 = vsub.f32 %v2520, %v2575
        %v2599 = vsub.f32 %v2525, %v2577
        %v2600 = vsub.f32 %v2530, %v2579
        %v2601 = vsub.f32 %v2535, %v2581
        %v2602 = vsub.f32 %v2540, %v2583
        %v2603 = vsub.f32 %v2545, %v2585
        %v2604 = vsub.f32 %v2550, %v2587
        %v2605 = vsub.f32 %v2555, %v2589
        %v2606 = vmul.f32 %v2590, 1.442695
        %v2607 = vpow.pop %v2606
        %v2608 = vmul.f32 %v2591, 1.442695
        %v2609 = vpow.pop %v2608
        %v2610 = vmul.f32 %v2592, 1.442695
        %v2611 = vpow.pop %v2610
        %v2612 = vmul.f32 %v2593, 1.442695
        %v2613 = vpow.pop %v2612
        %v2614 = vmul.f32 %v2594, 1.442695
        %v2615 = vpow.pop %v2614
        %v2616 = vmul.f32 %v2595, 1.442695
        %v2617 = vpow.pop %v2616
        %v2618 = vmul.f32 %v2596, 1.442695
        %v2619 = vpow.pop %v2618
        %v2620 = vmul.f32 %v2597, 1.442695
        %v2621 = vpow.pop %v2620
        %v2622 = vmul.f32 %v2598, 1.442695
        %v2623 = vpow.pop %v2622
        %v2624 = vmul.f32 %v2599, 1.442695
        %v2625 = vpow.pop %v2624
        %v2626 = vmul.f32 %v2600, 1.442695
        %v2627 = vpow.pop %v2626
        %v2628 = vmul.f32 %v2601, 1.442695
        %v2629 = vpow.pop %v2628
        %v2630 = vmul.f32 %v2602, 1.442695
        %v2631 = vpow.pop %v2630
        %v2632 = vmul.f32 %v2603, 1.442695
        %v2633 = vpow.pop %v2632
        %v2634 = vmul.f32 %v2604, 1.442695
        %v2635 = vpow.pop %v2634
        %v2636 = vmul.f32 %v2605, 1.442695
        %v2637 = vpow.pop %v2636
        %2638 = vadd.xlane.f32.xlu0 %v2607
        %v2639 = vpop.xlane.xlu0 %2638
        %2640 = vadd.xlane.f32.xlu0 %v2609
        %v2641 = vpop.xlane.xlu0 %2640
        %2642 = vadd.xlane.f32.xlu0 %v2611
        %v2643 = vpop.xlane.xlu0 %2642
        %2644 = vadd.xlane.f32.xlu0 %v2613
        %v2645 = vpop.xlane.xlu0 %2644
        %2646 = vadd.xlane.f32.xlu0 %v2615
        %v2647 = vpop.xlane.xlu0 %2646
        %2648 = vadd.xlane.f32.xlu0 %v2617
        %v2649 = vpop.xlane.xlu0 %2648
        %2650 = vadd.xlane.f32.xlu0 %v2619
        %v2651 = vpop.xlane.xlu0 %2650
        %2652 = vadd.xlane.f32.xlu0 %v2621
        %v2653 = vpop.xlane.xlu0 %2652
        %2654 = vadd.xlane.f32.xlu0 %v2623
        %v2655 = vpop.xlane.xlu0 %2654
        %2656 = vadd.xlane.f32.xlu0 %v2625
        %v2657 = vpop.xlane.xlu0 %2656
        %2658 = vadd.xlane.f32.xlu0 %v2627
        %v2659 = vpop.xlane.xlu0 %2658
        %2660 = vadd.xlane.f32.xlu0 %v2629
        %v2661 = vpop.xlane.xlu0 %2660
        %2662 = vadd.xlane.f32.xlu0 %v2631
        %v2663 = vpop.xlane.xlu0 %2662
        %2664 = vadd.xlane.f32.xlu0 %v2633
        %v2665 = vpop.xlane.xlu0 %2664
        %2666 = vadd.xlane.f32.xlu0 %v2635
        %v2667 = vpop.xlane.xlu0 %2666
        %2668 = vadd.xlane.f32.xlu0 %v2637
        %v2669 = vpop.xlane.xlu0 %2668
        %v2670 = vrcp.pop %v2639
        %v2671 = vrcp.pop %v2641
        %v2672 = vrcp.pop %v2643
        %v2673 = vrcp.pop %v2645
        %v2674 = vrcp.pop %v2647
        %v2675 = vrcp.pop %v2649
        %v2676 = vrcp.pop %v2651
        %v2677 = vrcp.pop %v2653
        %v2678 = vrcp.pop %v2655
        %v2679 = vrcp.pop %v2657
        %v2680 = vrcp.pop %v2659
        %v2681 = vrcp.pop %v2661
        %v2682 = vrcp.pop %v2663
        %v2683 = vrcp.pop %v2665
        %v2684 = vrcp.pop %v2667
        %v2685 = vrcp.pop %v2669
        %v2686 = vmul.f32 %v2607, %v2670
        %v2687 = vmul.f32 %v2609, %v2671
        %v2688 = vmul.f32 %v2611, %v2672
        %v2689 = vmul.f32 %v2613, %v2673
        %v2690 = vmul.f32 %v2615, %v2674
        %v2691 = vmul.f32 %v2617, %v2675
        %v2692 = vmul.f32 %v2619, %v2676
        %v2693 = vmul.f32 %v2621, %v2677
        %v2694 = vmul.f32 %v2623, %v2678
        %v2695 = vmul.f32 %v2625, %v2679
        %v2696 = vmul.f32 %v2627, %v2680
        %v2697 = vmul.f32 %v2629, %v2681
        %v2698 = vmul.f32 %v2631, %v2682
        %v2699 = vmul.f32 %v2633, %v2683
        %v2700 = vmul.f32 %v2635, %v2684
        %v2701 = vmul.f32 %v2637, %v2685
        %2702 = vrot.lane.b32.xlu0 %v953, 64
        %v2703 = vpop.permute.xlu0 %2702
        %2704 = vrot.lane.b32.xlu0 %v958, 64
        %v2705 = vpop.permute.xlu0 %2704
        %2706 = vrot.lane.b32.xlu0 %v963, 64
        %v2707 = vpop.permute.xlu0 %2706
        %2708 = vrot.lane.b32.xlu0 %v968, 64
        %v2709 = vpop.permute.xlu0 %2708
        %2710 = vrot.lane.b32.xlu0 %v973, 64
        %v2711 = vpop.permute.xlu0 %2710
        %2712 = vrot.lane.b32.xlu0 %v978, 64
        %v2713 = vpop.permute.xlu0 %2712
        %2714 = vrot.lane.b32.xlu0 %v983, 64
        %v2715 = vpop.permute.xlu0 %2714
        %2716 = vrot.lane.b32.xlu0 %v988, 64
        %v2717 = vpop.permute.xlu0 %2716
        %2718 = vrot.lane.b32.xlu0 %v993, 64
        %v2719 = vpop.permute.xlu0 %2718
        %2720 = vrot.lane.b32.xlu0 %v998, 64
        %v2721 = vpop.permute.xlu0 %2720
        %2722 = vrot.lane.b32.xlu0 %v1003, 64
        %v2723 = vpop.permute.xlu0 %2722
        %2724 = vrot.lane.b32.xlu0 %v1008, 64
        %v2725 = vpop.permute.xlu0 %2724
        %2726 = vrot.lane.b32.xlu0 %v1013, 64
        %v2727 = vpop.permute.xlu0 %2726
        %2728 = vrot.lane.b32.xlu0 %v1018, 64
        %v2729 = vpop.permute.xlu0 %2728
        %2730 = vrot.lane.b32.xlu0 %v1023, 64
        %v2731 = vpop.permute.xlu0 %2730
        %2732 = vrot.lane.b32.xlu0 %v1028, 64
        %v2733 = vpop.permute.xlu0 %2732
        %2750 = vmatprep.subr.mxu0 0.0
        %2751 = vmatpush1.msra.mxu0 %v2703
        %2752 = vmatprep.subr.mxu0 0.0
        %2753 = vmatpush1.msra.mxu0 %v2705
        %2754 = vmatprep.subr.mxu0 0.0
        %2755 = vmatpush1.msra.mxu0 %v2707
        %2756 = vmatprep.subr.mxu0 0.0
        %2757 = vmatpush1.msra.mxu0 %v2709
        %2758 = vmatprep.subr.mxu0 0.0
        %2759 = vmatpush1.msra.mxu0 %v2711
        %2760 = vmatprep.subr.mxu0 0.0
        %2761 = vmatpush1.msra.mxu0 %v2713
        %2762 = vmatprep.subr.mxu0 0.0
        %2763 = vmatpush1.msra.mxu0 %v2715
        %2764 = vmatprep.subr.mxu0 0.0
        %2765 = vmatpush1.msra.mxu0 %v2717
        %2766 = vmatprep.subr.mxu0 0.0
        %2767 = vmatpush1.msra.mxu0 %v2719
        %2768 = vmatprep.subr.mxu0 0.0
        %2769 = vmatpush1.msra.mxu0 %v2721
        %2770 = vmatprep.subr.mxu0 0.0
        %2771 = vmatpush1.msra.mxu0 %v2723
        %2772 = vmatprep.subr.mxu0 0.0
        %2773 = vmatpush1.msra.mxu0 %v2725
        %2774 = vmatprep.subr.mxu0 0.0
        %2775 = vmatpush1.msra.mxu0 %v2727
        %2776 = vmatprep.subr.mxu0 0.0
        %2777 = vmatpush1.msra.mxu0 %v2729
        %2778 = vmatprep.subr.mxu0 0.0
        %2779 = vmatpush1.msra.mxu0 %v2731
        %2780 = vmatprep.subr.mxu0 0.0
        %2781 = vmatpush1.msra.mxu0 %v2733
        %2782 = vmatprep.subr.mxu0 0.0
        %2783 = vmatpush1.msra.mxu0 0.0
        %2784 = vmatprep.subr.mxu0 0.0
        %2785 = vmatpush1.msra.mxu0 0.0
        %2786 = vmatprep.subr.mxu0 0.0
        %2787 = vmatpush1.msra.mxu0 0.0
        %2788 = vmatprep.subr.mxu0 0.0
        %2789 = vmatpush1.msra.mxu0 0.0
        %2790 = vmatprep.subr.mxu0 0.0
        %2791 = vmatpush1.msra.mxu0 0.0
        %2792 = vmatprep.subr.mxu0 0.0
        %2793 = vmatpush1.msra.mxu0 0.0
        %2794 = vmatprep.subr.mxu0 0.0
        %2795 = vmatpush1.msra.mxu0 0.0
        %2796 = vmatprep.subr.mxu0 0.0
        %2797 = vmatpush1.msra.mxu0 0.0
        %2798 = vmatprep.subr.mxu0 0.0
        %2799 = vmatpush1.msra.mxu0 0.0
        %2800 = vmatprep.subr.mxu0 0.0
        %2801 = vmatpush1.msra.mxu0 0.0
        %2802 = vmatprep.subr.mxu0 0.0
        %2803 = vmatpush1.msra.mxu0 0.0
        %2804 = vmatprep.subr.mxu0 0.0
        %2805 = vmatpush1.msra.mxu0 0.0
        %2806 = vmatprep.subr.mxu0 0.0
        %2807 = vmatpush1.msra.mxu0 0.0
        %2808 = vmatprep.subr.mxu0 0.0
        %2809 = vmatpush1.msra.mxu0 0.0
        %2810 = vmatprep.subr.mxu0 0.0
        %2811 = vmatpush1.msra.mxu0 0.0
        %2812 = vmatprep.subr.mxu0 0.0
        %2813 = vmatpush1.msra.mxu0 0.0
        %2814 = vmatprep.mubr.f32.mxu0 0.0
        %2815 = vmatmul.mubr.f32.gmra.mrb[0].mxu0 %v2686
        %v2816 = vpop.f32.mrb[0].mxu0
        %v2817 = vadd.f32 0.0, %v2816
        %v2818 = vpop.f32.mrb[0].mxu0
        %2819 = vmatprep.mubr.f32.mxu0 0.0
        %2820 = vmatmul.mubr.f32.gmra.mrb[0].mxu0 %v2687
        %v2821 = vpop.f32.mrb[0].mxu0
        %v2822 = vadd.f32 0.0, %v2821
        %v2823 = vpop.f32.mrb[0].mxu0
        %2824 = vmatprep.mubr.f32.mxu0 0.0
        %2825 = vmatmul.mubr.f32.gmra.mrb[0].mxu0 %v2688
        %v2826 = vpop.f32.mrb[0].mxu0
        %v2827 = vadd.f32 0.0, %v2826
        %v2828 = vpop.f32.mrb[0].mxu0
        %2829 = vmatprep.mubr.f32.mxu0 0.0
        %2830 = vmatmul.mubr.f32.gmra.mrb[0].mxu0 %v2689
        %v2831 = vpop.f32.mrb[0].mxu0
        %v2832 = vadd.f32 0.0, %v2831
        %v2833 = vpop.f32.mrb[0].mxu0
        %2834 = vmatprep.mubr.f32.mxu0 0.0
        %2835 = vmatmul.mubr.f32.gmra.mrb[0].mxu0 %v2690
        %v2836 = vpop.f32.mrb[0].mxu0
        %v2837 = vadd.f32 0.0, %v2836
        %v2838 = vpop.f32.mrb[0].mxu0
        %2839 = vmatprep.mubr.f32.mxu0 0.0
        %2840 = vmatmul.mubr.f32.gmra.mrb[0].mxu0 %v2691
        %v2841 = vpop.f32.mrb[0].mxu0
        %v2842 = vadd.f32 0.0, %v2841
        %v2843 = vpop.f32.mrb[0].mxu0
        %2844 = vmatprep.mubr.f32.mxu0 0.0
        %2845 = vmatmul.mubr.f32.gmra.mrb[0].mxu0 %v2692
        %v2846 = vpop.f32.mrb[0].mxu0
        %v2847 = vadd.f32 0.0, %v2846
        %v2848 = vpop.f32.mrb[0].mxu0
        %2849 = vmatprep.mubr.f32.mxu0 0.0
        %2850 = vmatmul.mubr.f32.gmra.mrb[0].mxu0 %v2693
        %v2851 = vpop.f32.mrb[0].mxu0
        %v2852 = vadd.f32 0.0, %v2851
        %v2853 = vpop.f32.mrb[0].mxu0
        %2854 = vmatprep.mubr.f32.mxu0 0.0
        %2855 = vmatmul.mubr.f32.gmra.mrb[0].mxu0 %v2694
        %v2856 = vpop.f32.mrb[0].mxu0
        %v2857 = vadd.f32 0.0, %v2856
        %v2858 = vpop.f32.mrb[0].mxu0
        %2859 = vmatprep.mubr.f32.mxu0 0.0
        %2860 = vmatmul.mubr.f32.gmra.mrb[0].mxu0 %v2695
        %v2861 = vpop.f32.mrb[0].mxu0
        %v2862 = vadd.f32 0.0, %v2861
        %v2863 = vpop.f32.mrb[0].mxu0
        %2864 = vmatprep.mubr.f32.mxu0 0.0
        %2865 = vmatmul.mubr.f32.gmra.mrb[0].mxu0 %v2696
        %v2866 = vpop.f32.mrb[0].mxu0
        %v2867 = vadd.f32 0.0, %v2866
        %v2868 = vpop.f32.mrb[0].mxu0
        %2869 = vmatprep.mubr.f32.mxu0 0.0
        %2870 = vmatmul.mubr.f32.gmra.mrb[0].mxu0 %v2697
        %v2871 = vpop.f32.mrb[0].mxu0
        %v2872 = vadd.f32 0.0, %v2871
        %v2873 = vpop.f32.mrb[0].mxu0
        %2874 = vmatprep.mubr.f32.mxu0 0.0
        %2875 = vmatmul.mubr.f32.gmra.mrb[0].mxu0 %v2698
        %v2876 = vpop.f32.mrb[0].mxu0
        %v2877 = vadd.f32 0.0, %v2876
        %v2878 = vpop.f32.mrb[0].mxu0
        %2879 = vmatprep.mubr.f32.mxu0 0.0
        %2880 = vmatmul.mubr.f32.gmra.mrb[0].mxu0 %v2699
        %v2881 = vpop.f32.mrb[0].mxu0
        %v2882 = vadd.f32 0.0, %v2881
        %v2883 = vpop.f32.mrb[0].mxu0
        %2884 = vmatprep.mubr.f32.mxu0 0.0
        %2885 = vmatmul.mubr.f32.gmra.mrb[0].mxu0 %v2700
        %v2886 = vpop.f32.mrb[0].mxu0
        %v2887 = vadd.f32 0.0, %v2886
        %v2888 = vpop.f32.mrb[0].mxu0
        %2889 = vmatprep.mubr.f32.mxu0 0.0
        %2890 = vmatmul.mubr.f32.gmra.mrb[0].mxu0 %v2701
        %v2891 = vpop.f32.mrb[0].mxu0
        %v2892 = vadd.f32 0.0, %v2891
        %v2893 = vpop.f32.mrb[0].mxu0
        %2894 = vdwg.mxu0
        %2911 = vrot.lane.b32.xlu0 %v2817, 64
        %v2912 = vpop.permute.xlu0 %2911
        %2913 = vrot.lane.b32.xlu0 %v2822, 64
        %v2914 = vpop.permute.xlu0 %2913
        %2915 = vrot.lane.b32.xlu0 %v2827, 64
        %v2916 = vpop.permute.xlu0 %2915
        %2917 = vrot.lane.b32.xlu0 %v2832, 64
        %v2918 = vpop.permute.xlu0 %2917
        %2919 = vrot.lane.b32.xlu0 %v2837, 64
        %v2920 = vpop.permute.xlu0 %2919
        %2921 = vrot.lane.b32.xlu0 %v2842, 64
        %v2922 = vpop.permute.xlu0 %2921
        %2923 = vrot.lane.b32.xlu0 %v2847, 64
        %v2924 = vpop.permute.xlu0 %2923
        %2925 = vrot.lane.b32.xlu0 %v2852, 64
        %v2926 = vpop.permute.xlu0 %2925
        %2927 = vrot.lane.b32.xlu0 %v2857, 64
        %v2928 = vpop.permute.xlu0 %2927
        %2929 = vrot.lane.b32.xlu0 %v2862, 64
        %v2930 = vpop.permute.xlu0 %2929
        %2931 = vrot.lane.b32.xlu0 %v2867, 64
        %v2932 = vpop.permute.xlu0 %2931
        %2933 = vrot.lane.b32.xlu0 %v2872, 64
        %v2934 = vpop.permute.xlu0 %2933
        %2935 = vrot.lane.b32.xlu0 %v2877, 64
        %v2936 = vpop.permute.xlu0 %2935
        %2937 = vrot.lane.b32.xlu0 %v2882, 64
        %v2938 = vpop.permute.xlu0 %2937
        %2939 = vrot.lane.b32.xlu0 %v2887, 64
        %v2940 = vpop.permute.xlu0 %2939
        %2941 = vrot.lane.b32.xlu0 %v2892, 64
        %v2942 = vpop.permute.xlu0 %2941
        %vm2959 = vcmask 785920
        %2960 = vst.msk [vmem:[#allocation3] sm:$0xff] %vm2959, %v2912
        %2961 = vst.msk [vmem:[#allocation3 + $0x8] sm:$0xff] %vm2959, %v2914
        %2962 = vst.msk [vmem:[#allocation3 + $0x10] sm:$0xff] %vm2959, %v2916
        %2963 = vst.msk [vmem:[#allocation3 + $0x18] sm:$0xff] %vm2959, %v2918
        %2964 = vst.msk [vmem:[#allocation3 + $0x20] sm:$0xff] %vm2959, %v2920
        %2965 = vst.msk [vmem:[#allocation3 + $0x28] sm:$0xff] %vm2959, %v2922
        %2966 = vst.msk [vmem:[#allocation3 + $0x30] sm:$0xff] %vm2959, %v2924
        %2967 = vst.msk [vmem:[#allocation3 + $0x38] sm:$0xff] %vm2959, %v2926
        %2968 = vst.msk [vmem:[#allocation3 + $0x40] sm:$0xff] %vm2959, %v2928
        %2969 = vst.msk [vmem:[#allocation3 + $0x48] sm:$0xff] %vm2959, %v2930
        %2970 = vst.msk [vmem:[#allocation3 + $0x50] sm:$0xff] %vm2959, %v2932
        %2971 = vst.msk [vmem:[#allocation3 + $0x58] sm:$0xff] %vm2959, %v2934
        %2972 = vst.msk [vmem:[#allocation3 + $0x60] sm:$0xff] %vm2959, %v2936
        %2973 = vst.msk [vmem:[#allocation3 + $0x68] sm:$0xff] %vm2959, %v2938
        %2974 = vst.msk [vmem:[#allocation3 + $0x70] sm:$0xff] %vm2959, %v2940
        %2975 = vst.msk [vmem:[#allocation3 + $0x78] sm:$0xff] %vm2959, %v2942
        %2976 = vrot.lane.b32.xlu0 %v792, 32
        %v2977 = vpop.permute.xlu0 %2976
        %2978 = vrot.lane.b32.xlu0 %v798, 32
        %v2979 = vpop.permute.xlu0 %2978
        %2980 = vrot.lane.b32.xlu0 %v804, 32
        %v2981 = vpop.permute.xlu0 %2980
        %2982 = vrot.lane.b32.xlu0 %v810, 32
        %v2983 = vpop.permute.xlu0 %2982
        %2984 = vrot.lane.b32.xlu0 %v816, 32
        %v2985 = vpop.permute.xlu0 %2984
        %2986 = vrot.lane.b32.xlu0 %v822, 32
        %v2987 = vpop.permute.xlu0 %2986
        %2988 = vrot.lane.b32.xlu0 %v828, 32
        %v2989 = vpop.permute.xlu0 %2988
        %2990 = vrot.lane.b32.xlu0 %v834, 32
        %v2991 = vpop.permute.xlu0 %2990
        %2992 = vrot.lane.b32.xlu0 %v840, 32
        %v2993 = vpop.permute.xlu0 %2992
        %2994 = vrot.lane.b32.xlu0 %v846, 32
        %v2995 = vpop.permute.xlu0 %2994
        %2996 = vrot.lane.b32.xlu0 %v852, 32
        %v2997 = vpop.permute.xlu0 %2996
        %2998 = vrot.lane.b32.xlu0 %v858, 32
        %v2999 = vpop.permute.xlu0 %2998
        %3000 = vrot.lane.b32.xlu0 %v864, 32
        %v3001 = vpop.permute.xlu0 %3000
        %3002 = vrot.lane.b32.xlu0 %v870, 32
        %v3003 = vpop.permute.xlu0 %3002
        %3004 = vrot.lane.b32.xlu0 %v876, 32
        %v3005 = vpop.permute.xlu0 %3004
        %3006 = vrot.lane.b32.xlu0 %v882, 32
        %v3007 = vpop.permute.xlu0 %3006
        %3008 = vrot.lane.b32.xlu0 %v794, 32
        %v3009 = vpop.permute.xlu0 %3008
        %3010 = vrot.lane.b32.xlu0 %v800, 32
        %v3011 = vpop.permute.xlu0 %3010
        %3012 = vrot.lane.b32.xlu0 %v806, 32
        %v3013 = vpop.permute.xlu0 %3012
        %3014 = vrot.lane.b32.xlu0 %v812, 32
        %v3015 = vpop.permute.xlu0 %3014
        %3016 = vrot.lane.b32.xlu0 %v818, 32
        %v3017 = vpop.permute.xlu0 %3016
        %3018 = vrot.lane.b32.xlu0 %v824, 32
        %v3019 = vpop.permute.xlu0 %3018
        %3020 = vrot.lane.b32.xlu0 %v830, 32
        %v3021 = vpop.permute.xlu0 %3020
        %3022 = vrot.lane.b32.xlu0 %v836, 32
        %v3023 = vpop.permute.xlu0 %3022
        %3024 = vrot.lane.b32.xlu0 %v842, 32
        %v3025 = vpop.permute.xlu0 %3024
        %3026 = vrot.lane.b32.xlu0 %v848, 32
        %v3027 = vpop.permute.xlu0 %3026
        %3028 = vrot.lane.b32.xlu0 %v854, 32
        %v3029 = vpop.permute.xlu0 %3028
        %3030 = vrot.lane.b32.xlu0 %v860, 32
        %v3031 = vpop.permute.xlu0 %3030
        %3032 = vrot.lane.b32.xlu0 %v866, 32
        %v3033 = vpop.permute.xlu0 %3032
        %3034 = vrot.lane.b32.xlu0 %v872, 32
        %v3035 = vpop.permute.xlu0 %3034
        %3036 = vrot.lane.b32.xlu0 %v878, 32
        %v3037 = vpop.permute.xlu0 %3036
        %3038 = vrot.lane.b32.xlu0 %v884, 32
        %v3039 = vpop.permute.xlu0 %3038
        %v3040 = vsel %vm1031, %v2977, 0
        %v3042 = vsel %vm1031, %v2979, 0
        %v3044 = vsel %vm1031, %v2981, 0
        %v3046 = vsel %vm1031, %v2983, 0
        %v3048 = vsel %vm1031, %v2985, 0
        %v3050 = vsel %vm1031, %v2987, 0
        %v3052 = vsel %vm1031, %v2989, 0
        %v3054 = vsel %vm1031, %v2991, 0
        %v3056 = vsel %vm1031, %v2993, 0
        %v3058 = vsel %vm1031, %v2995, 0
        %v3060 = vsel %vm1031, %v2997, 0
        %v3062 = vsel %vm1031, %v2999, 0
        %v3064 = vsel %vm1031, %v3001, 0
        %v3066 = vsel %vm1031, %v3003, 0
        %v3068 = vsel %vm1031, %v3005, 0
        %v3070 = vsel %vm1031, %v3007, 0
        %v3072 = vsel %vm1031, %v3009, 0
        %v3074 = vsel %vm1031, %v3011, 0
        %v3076 = vsel %vm1031, %v3013, 0
        %v3078 = vsel %vm1031, %v3015, 0
        %v3080 = vsel %vm1031, %v3017, 0
        %v3082 = vsel %vm1031, %v3019, 0
        %v3084 = vsel %vm1031, %v3021, 0
        %v3086 = vsel %vm1031, %v3023, 0
        %v3088 = vsel %vm1031, %v3025, 0
        %v3090 = vsel %vm1031, %v3027, 0
        %v3092 = vsel %vm1031, %v3029, 0
        %v3094 = vsel %vm1031, %v3031, 0
        %v3096 = vsel %vm1031, %v3033, 0
        %v3098 = vsel %vm1031, %v3035, 0
        %v3100 = vsel %vm1031, %v3037, 0
        %v3102 = vsel %vm1031, %v3039, 0
        %3104 = vmatprep.subr.mxu0 0.0
        %3105 = vmatpush1.xpose.msra.mxu0 %v3072
        %3106 = vmatprep.subr.mxu0 0.0
        %3107 = vmatpush1.xpose.msra.mxu0 %v3074
        %3108 = vmatprep.subr.mxu0 0.0
        %3109 = vmatpush1.xpose.msra.mxu0 %v3076
        %3110 = vmatprep.subr.mxu0 0.0
        %3111 = vmatpush1.xpose.msra.mxu0 %v3078
        %3112 = vmatprep.subr.mxu0 0.0
        %3113 = vmatpush1.xpose.msra.mxu0 %v3080
        %3114 = vmatprep.subr.mxu0 0.0
        %3115 = vmatpush1.xpose.msra.mxu0 %v3082
        %3116 = vmatprep.subr.mxu0 0.0
        %3117 = vmatpush1.xpose.msra.mxu0 %v3084
        %3118 = vmatprep.subr.mxu0 0.0
        %3119 = vmatpush1.xpose.msra.mxu0 %v3086
        %3120 = vmatprep.subr.mxu0 0.0
        %3121 = vmatpush1.xpose.msra.mxu0 %v3088
        %3122 = vmatprep.subr.mxu0 0.0
        %3123 = vmatpush1.xpose.msra.mxu0 %v3090
        %3124 = vmatprep.subr.mxu0 0.0
        %3125 = vmatpush1.xpose.msra.mxu0 %v3092
        %3126 = vmatprep.subr.mxu0 0.0
        %3127 = vmatpush1.xpose.msra.mxu0 %v3094
        %3128 = vmatprep.subr.mxu0 0.0
        %3129 = vmatpush1.xpose.msra.mxu0 %v3096
        %3130 = vmatprep.subr.mxu0 0.0
        %3131 = vmatpush1.xpose.msra.mxu0 %v3098
        %3132 = vmatprep.subr.mxu0 0.0
        %3133 = vmatpush1.xpose.msra.mxu0 %v3100
        %3134 = vmatprep.subr.mxu0 0.0
        %3135 = vmatpush1.xpose.msra.mxu0 %v3102
        %3136 = vmatprep.subr.mxu0 0.0
        %3137 = vmatpush1.xpose.msra.mxu0 0.0
        %3138 = vmatprep.subr.mxu0 0.0
        %3139 = vmatpush1.xpose.msra.mxu0 0.0
        %3140 = vmatprep.subr.mxu0 0.0
        %3141 = vmatpush1.xpose.msra.mxu0 0.0
        %3142 = vmatprep.subr.mxu0 0.0
        %3143 = vmatpush1.xpose.msra.mxu0 0.0
        %3144 = vmatprep.subr.mxu0 0.0
        %3145 = vmatpush1.xpose.msra.mxu0 0.0
        %3146 = vmatprep.subr.mxu0 0.0
        %3147 = vmatpush1.xpose.msra.mxu0 0.0
        %3148 = vmatprep.subr.mxu0 0.0
        %3149 = vmatpush1.xpose.msra.mxu0 0.0
        %3150 = vmatprep.subr.mxu0 0.0
        %3151 = vmatpush1.xpose.msra.mxu0 0.0
        %3152 = vmatprep.subr.mxu0 0.0
        %3153 = vmatpush1.xpose.msra.mxu0 0.0
        %3154 = vmatprep.subr.mxu0 0.0
        %3155 = vmatpush1.xpose.msra.mxu0 0.0
        %3156 = vmatprep.subr.mxu0 0.0
        %3157 = vmatpush1.xpose.msra.mxu0 0.0
        %3158 = vmatprep.subr.mxu0 0.0
        %3159 = vmatpush1.xpose.msra.mxu0 0.0
        %3160 = vmatprep.subr.mxu0 0.0
        %3161 = vmatpush1.xpose.msra.mxu0 0.0
        %3162 = vmatprep.subr.mxu0 0.0
        %3163 = vmatpush1.xpose.msra.mxu0 0.0
        %3164 = vmatprep.subr.mxu0 0.0
        %3165 = vmatpush1.xpose.msra.mxu0 0.0
        %3166 = vmatprep.subr.mxu0 0.0
        %3167 = vmatpush1.xpose.msra.mxu0 0.0
        %3168 = vmatprep.mubr.f32.mxu0 0.0
        %3169 = vmatmul.mubr.f32.gmra.mrb[0].mxu0 %v3040
        %v3170 = vpop.f32.mrb[0].mxu0
        %v3171 = vadd.f32 0.0, %v3170
        %v3172 = vpop.f32.mrb[0].mxu0
        %3173 = vmatprep.mubr.f32.mxu0 0.0
        %3174 = vmatmul.mubr.f32.gmra.mrb[0].mxu0 %v3042
        %v3175 = vpop.f32.mrb[0].mxu0
        %v3176 = vadd.f32 0.0, %v3175
        %v3177 = vpop.f32.mrb[0].mxu0
        %3178 = vmatprep.mubr.f32.mxu0 0.0
        %3179 = vmatmul.mubr.f32.gmra.mrb[0].mxu0 %v3044
        %v3180 = vpop.f32.mrb[0].mxu0
        %v3181 = vadd.f32 0.0, %v3180
        %v3182 = vpop.f32.mrb[0].mxu0
        %3183 = vmatprep.mubr.f32.mxu0 0.0
        %3184 = vmatmul.mubr.f32.gmra.mrb[0].mxu0 %v3046
        %v3185 = vpop.f32.mrb[0].mxu0
        %v3186 = vadd.f32 0.0, %v3185
        %v3187 = vpop.f32.mrb[0].mxu0
        %3188 = vmatprep.mubr.f32.mxu0 0.0
        %3189 = vmatmul.mubr.f32.gmra.mrb[0].mxu0 %v3048
        %v3190 = vpop.f32.mrb[0].mxu0
        %v3191 = vadd.f32 0.0, %v3190
        %v3192 = vpop.f32.mrb[0].mxu0
        %3193 = vmatprep.mubr.f32.mxu0 0.0
        %3194 = vmatmul.mubr.f32.gmra.mrb[0].mxu0 %v3050
        %v3195 = vpop.f32.mrb[0].mxu0
        %v3196 = vadd.f32 0.0, %v3195
        %v3197 = vpop.f32.mrb[0].mxu0
        %3198 = vmatprep.mubr.f32.mxu0 0.0
        %3199 = vmatmul.mubr.f32.gmra.mrb[0].mxu0 %v3052
        %v3200 = vpop.f32.mrb[0].mxu0
        %v3201 = vadd.f32 0.0, %v3200
        %v3202 = vpop.f32.mrb[0].mxu0
        %3203 = vmatprep.mubr.f32.mxu0 0.0
        %3204 = vmatmul.mubr.f32.gmra.mrb[0].mxu0 %v3054
        %v3205 = vpop.f32.mrb[0].mxu0
        %v3206 = vadd.f32 0.0, %v3205
        %v3207 = vpop.f32.mrb[0].mxu0
        %3208 = vmatprep.mubr.f32.mxu0 0.0
        %3209 = vmatmul.mubr.f32.gmra.mrb[0].mxu0 %v3056
        %v3210 = vpop.f32.mrb[0].mxu0
        %v3211 = vadd.f32 0.0, %v3210
        %v3212 = vpop.f32.mrb[0].mxu0
        %3213 = vmatprep.mubr.f32.mxu0 0.0
        %3214 = vmatmul.mubr.f32.gmra.mrb[0].mxu0 %v3058
        %v3215 = vpop.f32.mrb[0].mxu0
        %v3216 = vadd.f32 0.0, %v3215
        %v3217 = vpop.f32.mrb[0].mxu0
        %3218 = vmatprep.mubr.f32.mxu0 0.0
        %3219 = vmatmul.mubr.f32.gmra.mrb[0].mxu0 %v3060
        %v3220 = vpop.f32.mrb[0].mxu0
        %v3221 = vadd.f32 0.0, %v3220
        %v3222 = vpop.f32.mrb[0].mxu0
        %3223 = vmatprep.mubr.f32.mxu0 0.0
        %3224 = vmatmul.mubr.f32.gmra.mrb[0].mxu0 %v3062
        %v3225 = vpop.f32.mrb[0].mxu0
        %v3226 = vadd.f32 0.0, %v3225
        %v3227 = vpop.f32.mrb[0].mxu0
        %3228 = vmatprep.mubr.f32.mxu0 0.0
        %3229 = vmatmul.mubr.f32.gmra.mrb[0].mxu0 %v3064
        %v3230 = vpop.f32.mrb[0].mxu0
        %v3231 = vadd.f32 0.0, %v3230
        %v3232 = vpop.f32.mrb[0].mxu0
        %3233 = vmatprep.mubr.f32.mxu0 0.0
        %3234 = vmatmul.mubr.f32.gmra.mrb[0].mxu0 %v3066
        %v3235 = vpop.f32.mrb[0].mxu0
        %v3236 = vadd.f32 0.0, %v3235
        %v3237 = vpop.f32.mrb[0].mxu0
        %3238 = vmatprep.mubr.f32.mxu0 0.0
        %3239 = vmatmul.mubr.f32.gmra.mrb[0].mxu0 %v3068
        %v3240 = vpop.f32.mrb[0].mxu0
        %v3241 = vadd.f32 0.0, %v3240
        %v3242 = vpop.f32.mrb[0].mxu0
        %3243 = vmatprep.mubr.f32.mxu0 0.0
        %3244 = vmatmul.mubr.f32.gmra.mrb[0].mxu0 %v3070
        %v3245 = vpop.f32.mrb[0].mxu0
        %v3246 = vadd.f32 0.0, %v3245
        %v3247 = vpop.f32.mrb[0].mxu0
        %3248 = vdwg.mxu0
        %3249 = vmax.xlane.f32.xlu0 %v3171
        %v3250 = vpop.xlane.xlu0 %3249
        %3251 = vmax.xlane.f32.xlu0 %v3176
        %v3252 = vpop.xlane.xlu0 %3251
        %3253 = vmax.xlane.f32.xlu0 %v3181
        %v3254 = vpop.xlane.xlu0 %3253
        %3255 = vmax.xlane.f32.xlu0 %v3186
        %v3256 = vpop.xlane.xlu0 %3255
        %3257 = vmax.xlane.f32.xlu0 %v3191
        %v3258 = vpop.xlane.xlu0 %3257
        %3259 = vmax.xlane.f32.xlu0 %v3196
        %v3260 = vpop.xlane.xlu0 %3259
        %3261 = vmax.xlane.f32.xlu0 %v3201
        %v3262 = vpop.xlane.xlu0 %3261
        %3263 = vmax.xlane.f32.xlu0 %v3206
        %v3264 = vpop.xlane.xlu0 %3263
        %3265 = vmax.xlane.f32.xlu0 %v3211
        %v3266 = vpop.xlane.xlu0 %3265
        %3267 = vmax.xlane.f32.xlu0 %v3216
        %v3268 = vpop.xlane.xlu0 %3267
        %3269 = vmax.xlane.f32.xlu0 %v3221
        %v3270 = vpop.xlane.xlu0 %3269
        %3271 = vmax.xlane.f32.xlu0 %v3226
        %v3272 = vpop.xlane.xlu0 %3271
        %3273 = vmax.xlane.f32.xlu0 %v3231
        %v3274 = vpop.xlane.xlu0 %3273
        %3275 = vmax.xlane.f32.xlu0 %v3236
        %v3276 = vpop.xlane.xlu0 %3275
        %3277 = vmax.xlane.f32.xlu0 %v3241
        %v3278 = vpop.xlane.xlu0 %3277
        %3279 = vmax.xlane.f32.xlu0 %v3246
        %v3280 = vpop.xlane.xlu0 %3279
        %v3281 = vsub.f32 %v3171, %v3250
        %v3282 = vsub.f32 %v3176, %v3252
        %v3283 = vsub.f32 %v3181, %v3254
        %v3284 = vsub.f32 %v3186, %v3256
        %v3285 = vsub.f32 %v3191, %v3258
        %v3286 = vsub.f32 %v3196, %v3260
        %v3287 = vsub.f32 %v3201, %v3262
        %v3288 = vsub.f32 %v3206, %v3264
        %v3289 = vsub.f32 %v3211, %v3266
        %v3290 = vsub.f32 %v3216, %v3268
        %v3291 = vsub.f32 %v3221, %v3270
        %v3292 = vsub.f32 %v3226, %v3272
        %v3293 = vsub.f32 %v3231, %v3274
        %v3294 = vsub.f32 %v3236, %v3276
        %v3295 = vsub.f32 %v3241, %v3278
        %v3296 = vsub.f32 %v3246, %v3280
        %v3297 = vmul.f32 %v3281, 1.442695
        %v3298 = vpow.pop %v3297
        %v3299 = vmul.f32 %v3282, 1.442695
        %v3300 = vpow.pop %v3299
        %v3301 = vmul.f32 %v3283, 1.442695
        %v3302 = vpow.pop %v3301
        %v3303 = vmul.f32 %v3284, 1.442695
        %v3304 = vpow.pop %v3303
        %v3305 = vmul.f32 %v3285, 1.442695
        %v3306 = vpow.pop %v3305
        %v3307 = vmul.f32 %v3286, 1.442695
        %v3308 = vpow.pop %v3307
        %v3309 = vmul.f32 %v3287, 1.442695
        %v3310 = vpow.pop %v3309
        %v3311 = vmul.f32 %v3288, 1.442695
        %v3312 = vpow.pop %v3311
        %v3313 = vmul.f32 %v3289, 1.442695
        %v3314 = vpow.pop %v3313
        %v3315 = vmul.f32 %v3290, 1.442695
        %v3316 = vpow.pop %v3315
        %v3317 = vmul.f32 %v3291, 1.442695
        %v3318 = vpow.pop %v3317
        %v3319 = vmul.f32 %v3292, 1.442695
        %v3320 = vpow.pop %v3319
        %v3321 = vmul.f32 %v3293, 1.442695
        %v3322 = vpow.pop %v3321
        %v3323 = vmul.f32 %v3294, 1.442695
        %v3324 = vpow.pop %v3323
        %v3325 = vmul.f32 %v3295, 1.442695
        %v3326 = vpow.pop %v3325
        %v3327 = vmul.f32 %v3296, 1.442695
        %v3328 = vpow.pop %v3327
        %3329 = vadd.xlane.f32.xlu0 %v3298
        %v3330 = vpop.xlane.xlu0 %3329
        %3331 = vadd.xlane.f32.xlu0 %v3300
        %v3332 = vpop.xlane.xlu0 %3331
        %3333 = vadd.xlane.f32.xlu0 %v3302
        %v3334 = vpop.xlane.xlu0 %3333
        %3335 = vadd.xlane.f32.xlu0 %v3304
        %v3336 = vpop.xlane.xlu0 %3335
        %3337 = vadd.xlane.f32.xlu0 %v3306
        %v3338 = vpop.xlane.xlu0 %3337
        %3339 = vadd.xlane.f32.xlu0 %v3308
        %v3340 = vpop.xlane.xlu0 %3339
        %3341 = vadd.xlane.f32.xlu0 %v3310
        %v3342 = vpop.xlane.xlu0 %3341
        %3343 = vadd.xlane.f32.xlu0 %v3312
        %v3344 = vpop.xlane.xlu0 %3343
        %3345 = vadd.xlane.f32.xlu0 %v3314
        %v3346 = vpop.xlane.xlu0 %3345
        %3347 = vadd.xlane.f32.xlu0 %v3316
        %v3348 = vpop.xlane.xlu0 %3347
        %3349 = vadd.xlane.f32.xlu0 %v3318
        %v3350 = vpop.xlane.xlu0 %3349
        %3351 = vadd.xlane.f32.xlu0 %v3320
        %v3352 = vpop.xlane.xlu0 %3351
        %3353 = vadd.xlane.f32.xlu0 %v3322
        %v3354 = vpop.xlane.xlu0 %3353
        %3355 = vadd.xlane.f32.xlu0 %v3324
        %v3356 = vpop.xlane.xlu0 %3355
        %3357 = vadd.xlane.f32.xlu0 %v3326
        %v3358 = vpop.xlane.xlu0 %3357
        %3359 = vadd.xlane.f32.xlu0 %v3328
        %v3360 = vpop.xlane.xlu0 %3359
        %v3361 = vrcp.pop %v3330
        %v3362 = vrcp.pop %v3332
        %v3363 = vrcp.pop %v3334
        %v3364 = vrcp.pop %v3336
        %v3365 = vrcp.pop %v3338
        %v3366 = vrcp.pop %v3340
        %v3367 = vrcp.pop %v3342
        %v3368 = vrcp.pop %v3344
        %v3369 = vrcp.pop %v3346
        %v3370 = vrcp.pop %v3348
        %v3371 = vrcp.pop %v3350
        %v3372 = vrcp.pop %v3352
        %v3373 = vrcp.pop %v3354
        %v3374 = vrcp.pop %v3356
        %v3375 = vrcp.pop %v3358
        %v3376 = vrcp.pop %v3360
        %v3377 = vmul.f32 %v3298, %v3361
        %v3378 = vmul.f32 %v3300, %v3362
        %v3379 = vmul.f32 %v3302, %v3363
        %v3380 = vmul.f32 %v3304, %v3364
        %v3381 = vmul.f32 %v3306, %v3365
        %v3382 = vmul.f32 %v3308, %v3366
        %v3383 = vmul.f32 %v3310, %v3367
        %v3384 = vmul.f32 %v3312, %v3368
        %v3385 = vmul.f32 %v3314, %v3369
        %v3386 = vmul.f32 %v3316, %v3370
        %v3387 = vmul.f32 %v3318, %v3371
        %v3388 = vmul.f32 %v3320, %v3372
        %v3389 = vmul.f32 %v3322, %v3373
        %v3390 = vmul.f32 %v3324, %v3374
        %v3391 = vmul.f32 %v3326, %v3375
        %v3392 = vmul.f32 %v3328, %v3376
        %3393 = vrot.lane.b32.xlu0 %v953, 32
        %v3394 = vpop.permute.xlu0 %3393
        %3395 = vrot.lane.b32.xlu0 %v958, 32
        %v3396 = vpop.permute.xlu0 %3395
        %3397 = vrot.lane.b32.xlu0 %v963, 32
        %v3398 = vpop.permute.xlu0 %3397
        %3399 = vrot.lane.b32.xlu0 %v968, 32
        %v3400 = vpop.permute.xlu0 %3399
        %3401 = vrot.lane.b32.xlu0 %v973, 32
        %v3402 = vpop.permute.xlu0 %3401
        %3403 = vrot.lane.b32.xlu0 %v978, 32
        %v3404 = vpop.permute.xlu0 %3403
        %3405 = vrot.lane.b32.xlu0 %v983, 32
        %v3406 = vpop.permute.xlu0 %3405
        %3407 = vrot.lane.b32.xlu0 %v988, 32
        %v3408 = vpop.permute.xlu0 %3407
        %3409 = vrot.lane.b32.xlu0 %v993, 32
        %v3410 = vpop.permute.xlu0 %3409
        %3411 = vrot.lane.b32.xlu0 %v998, 32
        %v3412 = vpop.permute.xlu0 %3411
        %3413 = vrot.lane.b32.xlu0 %v1003, 32
        %v3414 = vpop.permute.xlu0 %3413
        %3415 = vrot.lane.b32.xlu0 %v1008, 32
        %v3416 = vpop.permute.xlu0 %3415
        %3417 = vrot.lane.b32.xlu0 %v1013, 32
        %v3418 = vpop.permute.xlu0 %3417
        %3419 = vrot.lane.b32.xlu0 %v1018, 32
        %v3420 = vpop.permute.xlu0 %3419
        %3421 = vrot.lane.b32.xlu0 %v1023, 32
        %v3422 = vpop.permute.xlu0 %3421
        %3423 = vrot.lane.b32.xlu0 %v1028, 32
        %v3424 = vpop.permute.xlu0 %3423
        %3441 = vmatprep.subr.mxu0 0.0
        %3442 = vmatpush1.msra.mxu0 %v3394
        %3443 = vmatprep.subr.mxu0 0.0
        %3444 = vmatpush1.msra.mxu0 %v3396
        %3445 = vmatprep.subr.mxu0 0.0
        %3446 = vmatpush1.msra.mxu0 %v3398
        %3447 = vmatprep.subr.mxu0 0.0
        %3448 = vmatpush1.msra.mxu0 %v3400
        %3449 = vmatprep.subr.mxu0 0.0
        %3450 = vmatpush1.msra.mxu0 %v3402
        %3451 = vmatprep.subr.mxu0 0.0
        %3452 = vmatpush1.msra.mxu0 %v3404
        %3453 = vmatprep.subr.mxu0 0.0
        %3454 = vmatpush1.msra.mxu0 %v3406
        %3455 = vmatprep.subr.mxu0 0.0
        %3456 = vmatpush1.msra.mxu0 %v3408
        %3457 = vmatprep.subr.mxu0 0.0
        %3458 = vmatpush1.msra.mxu0 %v3410
        %3459 = vmatprep.subr.mxu0 0.0
        %3460 = vmatpush1.msra.mxu0 %v3412
        %3461 = vmatprep.subr.mxu0 0.0
        %3462 = vmatpush1.msra.mxu0 %v3414
        %3463 = vmatprep.subr.mxu0 0.0
        %3464 = vmatpush1.msra.mxu0 %v3416
        %3465 = vmatprep.subr.mxu0 0.0
        %3466 = vmatpush1.msra.mxu0 %v3418
        %3467 = vmatprep.subr.mxu0 0.0
        %3468 = vmatpush1.msra.mxu0 %v3420
        %3469 = vmatprep.subr.mxu0 0.0
        %3470 = vmatpush1.msra.mxu0 %v3422
        %3471 = vmatprep.subr.mxu0 0.0
        %3472 = vmatpush1.msra.mxu0 %v3424
        %3473 = vmatprep.subr.mxu0 0.0
        %3474 = vmatpush1.msra.mxu0 0.0
        %3475 = vmatprep.subr.mxu0 0.0
        %3476 = vmatpush1.msra.mxu0 0.0
        %3477 = vmatprep.subr.mxu0 0.0
        %3478 = vmatpush1.msra.mxu0 0.0
        %3479 = vmatprep.subr.mxu0 0.0
        %3480 = vmatpush1.msra.mxu0 0.0
        %3481 = vmatprep.subr.mxu0 0.0
        %3482 = vmatpush1.msra.mxu0 0.0
        %3483 = vmatprep.subr.mxu0 0.0
        %3484 = vmatpush1.msra.mxu0 0.0
        %3485 = vmatprep.subr.mxu0 0.0
        %3486 = vmatpush1.msra.mxu0 0.0
        %3487 = vmatprep.subr.mxu0 0.0
        %3488 = vmatpush1.msra.mxu0 0.0
        %3489 = vmatprep.subr.mxu0 0.0
        %3490 = vmatpush1.msra.mxu0 0.0
        %3491 = vmatprep.subr.mxu0 0.0
        %3492 = vmatpush1.msra.mxu0 0.0
        %3493 = vmatprep.subr.mxu0 0.0
        %3494 = vmatpush1.msra.mxu0 0.0
        %3495 = vmatprep.subr.mxu0 0.0
        %3496 = vmatpush1.msra.mxu0 0.0
        %3497 = vmatprep.subr.mxu0 0.0
        %3498 = vmatpush1.msra.mxu0 0.0
        %3499 = vmatprep.subr.mxu0 0.0
        %3500 = vmatpush1.msra.mxu0 0.0
        %3501 = vmatprep.subr.mxu0 0.0
        %3502 = vmatpush1.msra.mxu0 0.0
        %3503 = vmatprep.subr.mxu0 0.0
        %3504 = vmatpush1.msra.mxu0 0.0
        %3505 = vmatprep.mubr.f32.mxu0 0.0
        %3506 = vmatmul.mubr.f32.gmra.mrb[0].mxu0 %v3377
        %v3507 = vpop.f32.mrb[0].mxu0
        %v3508 = vadd.f32 0.0, %v3507
        %v3509 = vpop.f32.mrb[0].mxu0
        %3510 = vmatprep.mubr.f32.mxu0 0.0
        %3511 = vmatmul.mubr.f32.gmra.mrb[0].mxu0 %v3378
        %v3512 = vpop.f32.mrb[0].mxu0
        %v3513 = vadd.f32 0.0, %v3512
        %v3514 = vpop.f32.mrb[0].mxu0
        %3515 = vmatprep.mubr.f32.mxu0 0.0
        %3516 = vmatmul.mubr.f32.gmra.mrb[0].mxu0 %v3379
        %v3517 = vpop.f32.mrb[0].mxu0
        %v3518 = vadd.f32 0.0, %v3517
        %v3519 = vpop.f32.mrb[0].mxu0
        %3520 = vmatprep.mubr.f32.mxu0 0.0
        %3521 = vmatmul.mubr.f32.gmra.mrb[0].mxu0 %v3380
        %v3522 = vpop.f32.mrb[0].mxu0
        %v3523 = vadd.f32 0.0, %v3522
        %v3524 = vpop.f32.mrb[0].mxu0
        %3525 = vmatprep.mubr.f32.mxu0 0.0
        %3526 = vmatmul.mubr.f32.gmra.mrb[0].mxu0 %v3381
        %v3527 = vpop.f32.mrb[0].mxu0
        %v3528 = vadd.f32 0.0, %v3527
        %v3529 = vpop.f32.mrb[0].mxu0
        %3530 = vmatprep.mubr.f32.mxu0 0.0
        %3531 = vmatmul.mubr.f32.gmra.mrb[0].mxu0 %v3382
        %v3532 = vpop.f32.mrb[0].mxu0
        %v3533 = vadd.f32 0.0, %v3532
        %v3534 = vpop.f32.mrb[0].mxu0
        %3535 = vmatprep.mubr.f32.mxu0 0.0
        %3536 = vmatmul.mubr.f32.gmra.mrb[0].mxu0 %v3383
        %v3537 = vpop.f32.mrb[0].mxu0
        %v3538 = vadd.f32 0.0, %v3537
        %v3539 = vpop.f32.mrb[0].mxu0
        %3540 = vmatprep.mubr.f32.mxu0 0.0
        %3541 = vmatmul.mubr.f32.gmra.mrb[0].mxu0 %v3384
        %v3542 = vpop.f32.mrb[0].mxu0
        %v3543 = vadd.f32 0.0, %v3542
        %v3544 = vpop.f32.mrb[0].mxu0
        %3545 = vmatprep.mubr.f32.mxu0 0.0
        %3546 = vmatmul.mubr.f32.gmra.mrb[0].mxu0 %v3385
        %v3547 = vpop.f32.mrb[0].mxu0
        %v3548 = vadd.f32 0.0, %v3547
        %v3549 = vpop.f32.mrb[0].mxu0
        %3550 = vmatprep.mubr.f32.mxu0 0.0
        %3551 = vmatmul.mubr.f32.gmra.mrb[0].mxu0 %v3386
        %v3552 = vpop.f32.mrb[0].mxu0
        %v3553 = vadd.f32 0.0, %v3552
        %v3554 = vpop.f32.mrb[0].mxu0
        %3555 = vmatprep.mubr.f32.mxu0 0.0
        %3556 = vmatmul.mubr.f32.gmra.mrb[0].mxu0 %v3387
        %v3557 = vpop.f32.mrb[0].mxu0
        %v3558 = vadd.f32 0.0, %v3557
        %v3559 = vpop.f32.mrb[0].mxu0
        %3560 = vmatprep.mubr.f32.mxu0 0.0
        %3561 = vmatmul.mubr.f32.gmra.mrb[0].mxu0 %v3388
        %v3562 = vpop.f32.mrb[0].mxu0
        %v3563 = vadd.f32 0.0, %v3562
        %v3564 = vpop.f32.mrb[0].mxu0
        %3565 = vmatprep.mubr.f32.mxu0 0.0
        %3566 = vmatmul.mubr.f32.gmra.mrb[0].mxu0 %v3389
        %v3567 = vpop.f32.mrb[0].mxu0
        %v3568 = vadd.f32 0.0, %v3567
        %v3569 = vpop.f32.mrb[0].mxu0
        %3570 = vmatprep.mubr.f32.mxu0 0.0
        %3571 = vmatmul.mubr.f32.gmra.mrb[0].mxu0 %v3390
        %v3572 = vpop.f32.mrb[0].mxu0
        %v3573 = vadd.f32 0.0, %v3572
        %v3574 = vpop.f32.mrb[0].mxu0
        %3575 = vmatprep.mubr.f32.mxu0 0.0
        %3576 = vmatmul.mubr.f32.gmra.mrb[0].mxu0 %v3391
        %v3577 = vpop.f32.mrb[0].mxu0
        %v3578 = vadd.f32 0.0, %v3577
        %v3579 = vpop.f32.mrb[0].mxu0
        %3580 = vmatprep.mubr.f32.mxu0 0.0
        %3581 = vmatmul.mubr.f32.gmra.mrb[0].mxu0 %v3392
        %v3582 = vpop.f32.mrb[0].mxu0
        %v3583 = vadd.f32 0.0, %v3582
        %v3584 = vpop.f32.mrb[0].mxu0
        %3585 = vdwg.mxu0
        %3602 = vrot.lane.b32.xlu0 %v3508, 96
        %v3603 = vpop.permute.xlu0 %3602
        %3604 = vrot.lane.b32.xlu0 %v3513, 96
        %v3605 = vpop.permute.xlu0 %3604
        %3606 = vrot.lane.b32.xlu0 %v3518, 96
        %v3607 = vpop.permute.xlu0 %3606
        %3608 = vrot.lane.b32.xlu0 %v3523, 96
        %v3609 = vpop.permute.xlu0 %3608
        %3610 = vrot.lane.b32.xlu0 %v3528, 96
        %v3611 = vpop.permute.xlu0 %3610
        %3612 = vrot.lane.b32.xlu0 %v3533, 96
        %v3613 = vpop.permute.xlu0 %3612
        %3614 = vrot.lane.b32.xlu0 %v3538, 96
        %v3615 = vpop.permute.xlu0 %3614
        %3616 = vrot.lane.b32.xlu0 %v3543, 96
        %v3617 = vpop.permute.xlu0 %3616
        %3618 = vrot.lane.b32.xlu0 %v3548, 96
        %v3619 = vpop.permute.xlu0 %3618
        %3620 = vrot.lane.b32.xlu0 %v3553, 96
        %v3621 = vpop.permute.xlu0 %3620
        %3622 = vrot.lane.b32.xlu0 %v3558, 96
        %v3623 = vpop.permute.xlu0 %3622
        %3624 = vrot.lane.b32.xlu0 %v3563, 96
        %v3625 = vpop.permute.xlu0 %3624
        %3626 = vrot.lane.b32.xlu0 %v3568, 96
        %v3627 = vpop.permute.xlu0 %3626
        %3628 = vrot.lane.b32.xlu0 %v3573, 96
        %v3629 = vpop.permute.xlu0 %3628
        %3630 = vrot.lane.b32.xlu0 %v3578, 96
        %v3631 = vpop.permute.xlu0 %3630
        %3632 = vrot.lane.b32.xlu0 %v3583, 96
        %v3633 = vpop.permute.xlu0 %3632
        %vm3650 = vcmask 1048320
        %3651 = vst.msk [vmem:[#allocation3] sm:$0xff] %vm3650, %v3603
        %3652 = vst.msk [vmem:[#allocation3 + $0x8] sm:$0xff] %vm3650, %v3605
        %3653 = vst.msk [vmem:[#allocation3 + $0x10] sm:$0xff] %vm3650, %v3607
        %3654 = vst.msk [vmem:[#allocation3 + $0x18] sm:$0xff] %vm3650, %v3609
        %3655 = vst.msk [vmem:[#allocation3 + $0x20] sm:$0xff] %vm3650, %v3611
        %3656 = vst.msk [vmem:[#allocation3 + $0x28] sm:$0xff] %vm3650, %v3613
        %3657 = vst.msk [vmem:[#allocation3 + $0x30] sm:$0xff] %vm3650, %v3615
        %3658 = vst.msk [vmem:[#allocation3 + $0x38] sm:$0xff] %vm3650, %v3617
        %3659 = vst.msk [vmem:[#allocation3 + $0x40] sm:$0xff] %vm3650, %v3619
        %3660 = vst.msk [vmem:[#allocation3 + $0x48] sm:$0xff] %vm3650, %v3621
        %3661 = vst.msk [vmem:[#allocation3 + $0x50] sm:$0xff] %vm3650, %v3623
        %3662 = vst.msk [vmem:[#allocation3 + $0x58] sm:$0xff] %vm3650, %v3625
        %3663 = vst.msk [vmem:[#allocation3 + $0x60] sm:$0xff] %vm3650, %v3627
        %3664 = vst.msk [vmem:[#allocation3 + $0x68] sm:$0xff] %vm3650, %v3629
        %3665 = vst.msk [vmem:[#allocation3 + $0x70] sm:$0xff] %vm3650, %v3631
        %3666 = vst.msk [vmem:[#allocation3 + $0x78] sm:$0xff] %vm3650, %v3633
        %v3667 = vld [vmem:[#allocation3] sm:$0xff]
        %v3668 = vld [vmem:[#allocation3 + $0x8] sm:$0xff]
        %v3669 = vld [vmem:[#allocation3 + $0x10] sm:$0xff]
        %v3670 = vld [vmem:[#allocation3 + $0x18] sm:$0xff]
        %v3671 = vld [vmem:[#allocation3 + $0x20] sm:$0xff]
        %v3672 = vld [vmem:[#allocation3 + $0x28] sm:$0xff]
        %v3673 = vld [vmem:[#allocation3 + $0x30] sm:$0xff]
        %v3674 = vld [vmem:[#allocation3 + $0x38] sm:$0xff]
        %v3675 = vld [vmem:[#allocation3 + $0x40] sm:$0xff]
        %v3676 = vld [vmem:[#allocation3 + $0x48] sm:$0xff]
        %v3677 = vld [vmem:[#allocation3 + $0x50] sm:$0xff]
        %v3678 = vld [vmem:[#allocation3 + $0x58] sm:$0xff]
        %v3679 = vld [vmem:[#allocation3 + $0x60] sm:$0xff]
        %v3680 = vld [vmem:[#allocation3 + $0x68] sm:$0xff]
        %v3681 = vld [vmem:[#allocation3 + $0x70] sm:$0xff]
        %v3682 = vld [vmem:[#allocation3 + $0x78] sm:$0xff]
        %s3683 = smul.u32 %s39, 128
        %s3684 = scalar_lea.vmem [#allocation10], %s3683
        %v3685 = vld [vmem:[%s3684] sm:$0xff]
        %v3686 = vld [vmem:[%s3684 + $0x8] sm:$0xff]
        %v3687 = vld [vmem:[%s3684 + $0x10] sm:$0xff]
        %v3688 = vld [vmem:[%s3684 + $0x18] sm:$0xff]
        %v3689 = vld [vmem:[%s3684 + $0x20] sm:$0xff]
        %v3690 = vld [vmem:[%s3684 + $0x28] sm:$0xff]
        %v3691 = vld [vmem:[%s3684 + $0x30] sm:$0xff]
        %v3692 = vld [vmem:[%s3684 + $0x38] sm:$0xff]
        %v3693 = vld [vmem:[%s3684 + $0x40] sm:$0xff]
        %v3694 = vld [vmem:[%s3684 + $0x48] sm:$0xff]
        %v3695 = vld [vmem:[%s3684 + $0x50] sm:$0xff]
        %v3696 = vld [vmem:[%s3684 + $0x58] sm:$0xff]
        %v3697 = vld [vmem:[%s3684 + $0x60] sm:$0xff]
        %v3698 = vld [vmem:[%s3684 + $0x68] sm:$0xff]
        %v3699 = vld [vmem:[%s3684 + $0x70] sm:$0xff]
        %v3700 = vld [vmem:[%s3684 + $0x78] sm:$0xff]
        %s3701 = scalar_lea.vmem %s5, %s39
        %v3702 = vld [vmem:[%s3701] sm:$0x1]
        %v3704 = vlaneseq
        %v3705 = vshrl.u32 %v3704, 7
        %v3706 = vsub.s32 0, %v3705
        %v3707 = vrot.slane %v3702, %v3706
        %3709 = vmatprep.subr.mxu0 0.0
        %3710 = vmatpush1.msra.mxu0 %v3685
        %3711 = vmatprep.subr.mxu0 0.0
        %3712 = vmatpush1.msra.mxu0 %v3686
        %3713 = vmatprep.subr.mxu0 0.0
        %3714 = vmatpush1.msra.mxu0 %v3687
        %3715 = vmatprep.subr.mxu0 0.0
        %3716 = vmatpush1.msra.mxu0 %v3688
        %3717 = vmatprep.subr.mxu0 0.0
        %3718 = vmatpush1.msra.mxu0 %v3689
        %3719 = vmatprep.subr.mxu0 0.0
        %3720 = vmatpush1.msra.mxu0 %v3690
        %3721 = vmatprep.subr.mxu0 0.0
        %3722 = vmatpush1.msra.mxu0 %v3691
        %3723 = vmatprep.subr.mxu0 0.0
        %3724 = vmatpush1.msra.mxu0 %v3692
        %3725 = vmatprep.subr.mxu0 0.0
        %3726 = vmatpush1.msra.mxu0 %v3693
        %3727 = vmatprep.subr.mxu0 0.0
        %3728 = vmatpush1.msra.mxu0 %v3694
        %3729 = vmatprep.subr.mxu0 0.0
        %3730 = vmatpush1.msra.mxu0 %v3695
        %3731 = vmatprep.subr.mxu0 0.0
        %3732 = vmatpush1.msra.mxu0 %v3696
        %3733 = vmatprep.subr.mxu0 0.0
        %3734 = vmatpush1.msra.mxu0 %v3697
        %3735 = vmatprep.subr.mxu0 0.0
        %3736 = vmatpush1.msra.mxu0 %v3698
        %3737 = vmatprep.subr.mxu0 0.0
        %3738 = vmatpush1.msra.mxu0 %v3699
        %3739 = vmatprep.subr.mxu0 0.0
        %3740 = vmatpush1.msra.mxu0 %v3700
        %3741 = vmatprep.subr.mxu0 0.0
        %3742 = vmatpush1.msra.mxu0 0.0
        %3743 = vmatprep.subr.mxu0 0.0
        %3744 = vmatpush1.msra.mxu0 0.0
        %3745 = vmatprep.subr.mxu0 0.0
        %3746 = vmatpush1.msra.mxu0 0.0
        %3747 = vmatprep.subr.mxu0 0.0
        %3748 = vmatpush1.msra.mxu0 0.0
        %3749 = vmatprep.subr.mxu0 0.0
        %3750 = vmatpush1.msra.mxu0 0.0
        %3751 = vmatprep.subr.mxu0 0.0
        %3752 = vmatpush1.msra.mxu0 0.0
        %3753 = vmatprep.subr.mxu0 0.0
        %3754 = vmatpush1.msra.mxu0 0.0
        %3755 = vmatprep.subr.mxu0 0.0
        %3756 = vmatpush1.msra.mxu0 0.0
        %3757 = vmatprep.subr.mxu0 0.0
        %3758 = vmatpush1.msra.mxu0 0.0
        %3759 = vmatprep.subr.mxu0 0.0
        %3760 = vmatpush1.msra.mxu0 0.0
        %3761 = vmatprep.subr.mxu0 0.0
        %3762 = vmatpush1.msra.mxu0 0.0
        %3763 = vmatprep.subr.mxu0 0.0
        %3764 = vmatpush1.msra.mxu0 0.0
        %3765 = vmatprep.subr.mxu0 0.0
        %3766 = vmatpush1.msra.mxu0 0.0
        %3767 = vmatprep.subr.mxu0 0.0
        %3768 = vmatpush1.msra.mxu0 0.0
        %3769 = vmatprep.subr.mxu0 0.0
        %3770 = vmatpush1.msra.mxu0 0.0
        %3771 = vmatprep.subr.mxu0 0.0
        %3772 = vmatpush1.msra.mxu0 0.0
        %3773 = vmatprep.mubr.f32.mxu0 0.0
        %3774 = vmatmul.mubr.f32.gmra.mrb[0].mxu0 %v3667
        %v3775 = vpop.f32.mrb[0].mxu0
        %v3776 = vadd.f32 %v3707, %v3775
        %v3777 = vpop.f32.mrb[0].mxu0
        %3778 = vmatprep.mubr.f32.mxu0 0.0
        %3779 = vmatmul.mubr.f32.gmra.mrb[0].mxu0 %v3668
        %v3780 = vpop.f32.mrb[0].mxu0
        %v3781 = vadd.f32 %v3707, %v3780
        %v3782 = vpop.f32.mrb[0].mxu0
        %3783 = vmatprep.mubr.f32.mxu0 0.0
        %3784 = vmatmul.mubr.f32.gmra.mrb[0].mxu0 %v3669
        %v3785 = vpop.f32.mrb[0].mxu0
        %v3786 = vadd.f32 %v3707, %v3785
        %v3787 = vpop.f32.mrb[0].mxu0
        %3788 = vmatprep.mubr.f32.mxu0 0.0
        %3789 = vmatmul.mubr.f32.gmra.mrb[0].mxu0 %v3670
        %v3790 = vpop.f32.mrb[0].mxu0
        %v3791 = vadd.f32 %v3707, %v3790
        %v3792 = vpop.f32.mrb[0].mxu0
        %3793 = vmatprep.mubr.f32.mxu0 0.0
        %3794 = vmatmul.mubr.f32.gmra.mrb[0].mxu0 %v3671
        %v3795 = vpop.f32.mrb[0].mxu0
        %v3796 = vadd.f32 %v3707, %v3795
        %v3797 = vpop.f32.mrb[0].mxu0
        %3798 = vmatprep.mubr.f32.mxu0 0.0
        %3799 = vmatmul.mubr.f32.gmra.mrb[0].mxu0 %v3672
        %v3800 = vpop.f32.mrb[0].mxu0
        %v3801 = vadd.f32 %v3707, %v3800
        %v3802 = vpop.f32.mrb[0].mxu0
        %3803 = vmatprep.mubr.f32.mxu0 0.0
        %3804 = vmatmul.mubr.f32.gmra.mrb[0].mxu0 %v3673
        %v3805 = vpop.f32.mrb[0].mxu0
        %v3806 = vadd.f32 %v3707, %v3805
        %v3807 = vpop.f32.mrb[0].mxu0
        %3808 = vmatprep.mubr.f32.mxu0 0.0
        %3809 = vmatmul.mubr.f32.gmra.mrb[0].mxu0 %v3674
        %v3810 = vpop.f32.mrb[0].mxu0
        %v3811 = vadd.f32 %v3707, %v3810
        %v3812 = vpop.f32.mrb[0].mxu0
        %3813 = vmatprep.mubr.f32.mxu0 0.0
        %3814 = vmatmul.mubr.f32.gmra.mrb[0].mxu0 %v3675
        %v3815 = vpop.f32.mrb[0].mxu0
        %v3816 = vadd.f32 %v3707, %v3815
        %v3817 = vpop.f32.mrb[0].mxu0
        %3818 = vmatprep.mubr.f32.mxu0 0.0
        %3819 = vmatmul.mubr.f32.gmra.mrb[0].mxu0 %v3676
        %v3820 = vpop.f32.mrb[0].mxu0
        %v3821 = vadd.f32 %v3707, %v3820
        %v3822 = vpop.f32.mrb[0].mxu0
        %3823 = vmatprep.mubr.f32.mxu0 0.0
        %3824 = vmatmul.mubr.f32.gmra.mrb[0].mxu0 %v3677
        %v3825 = vpop.f32.mrb[0].mxu0
        %v3826 = vadd.f32 %v3707, %v3825
        %v3827 = vpop.f32.mrb[0].mxu0
        %3828 = vmatprep.mubr.f32.mxu0 0.0
        %3829 = vmatmul.mubr.f32.gmra.mrb[0].mxu0 %v3678
        %v3830 = vpop.f32.mrb[0].mxu0
        %v3831 = vadd.f32 %v3707, %v3830
        %v3832 = vpop.f32.mrb[0].mxu0
        %3833 = vmatprep.mubr.f32.mxu0 0.0
        %3834 = vmatmul.mubr.f32.gmra.mrb[0].mxu0 %v3679
        %v3835 = vpop.f32.mrb[0].mxu0
        %v3836 = vadd.f32 %v3707, %v3835
        %v3837 = vpop.f32.mrb[0].mxu0
        %3838 = vmatprep.mubr.f32.mxu0 0.0
        %3839 = vmatmul.mubr.f32.gmra.mrb[0].mxu0 %v3680
        %v3840 = vpop.f32.mrb[0].mxu0
        %v3841 = vadd.f32 %v3707, %v3840
        %v3842 = vpop.f32.mrb[0].mxu0
        %3843 = vmatprep.mubr.f32.mxu0 0.0
        %3844 = vmatmul.mubr.f32.gmra.mrb[0].mxu0 %v3681
        %v3845 = vpop.f32.mrb[0].mxu0
        %v3846 = vadd.f32 %v3707, %v3845
        %v3847 = vpop.f32.mrb[0].mxu0
        %3848 = vmatprep.mubr.f32.mxu0 0.0
        %3849 = vmatmul.mubr.f32.gmra.mrb[0].mxu0 %v3682
        %v3850 = vpop.f32.mrb[0].mxu0
        %v3851 = vadd.f32 %v3707, %v3850
        %v3852 = vpop.f32.mrb[0].mxu0
        %3853 = vdwg.mxu0
        %v3854 = vadd.f32 %v639, %v3776
        %v3855 = vadd.f32 %v640, %v3781
        %v3856 = vadd.f32 %v641, %v3786
        %v3857 = vadd.f32 %v642, %v3791
        %v3858 = vadd.f32 %v643, %v3796
        %v3859 = vadd.f32 %v644, %v3801
        %v3860 = vadd.f32 %v645, %v3806
        %v3861 = vadd.f32 %v646, %v3811
        %v3862 = vadd.f32 %v647, %v3816
        %v3863 = vadd.f32 %v648, %v3821
        %v3864 = vadd.f32 %v649, %v3826
        %v3865 = vadd.f32 %v650, %v3831
        %v3866 = vadd.f32 %v651, %v3836
        %v3867 = vadd.f32 %v652, %v3841
        %v3868 = vadd.f32 %v653, %v3846
        %v3869 = vadd.f32 %v654, %v3851
        %s3870 = scalar_lea.vmem %s6, %s39
        %v3871 = vld [vmem:[%s3870] sm:$0x1]
        %s3872 = scalar_lea.vmem %s7, %s39
        %v3873 = vld [vmem:[%s3872] sm:$0x1]
        %3874 = vadd.xlane.f32.xlu0 %v3854
        %v3875 = vpop.xlane.xlu0 %3874
        %3876 = vadd.xlane.f32.xlu0 %v3855
        %v3877 = vpop.xlane.xlu0 %3876
        %3878 = vadd.xlane.f32.xlu0 %v3856
        %v3879 = vpop.xlane.xlu0 %3878
        %3880 = vadd.xlane.f32.xlu0 %v3857
        %v3881 = vpop.xlane.xlu0 %3880
        %3882 = vadd.xlane.f32.xlu0 %v3858
        %v3883 = vpop.xlane.xlu0 %3882
        %3884 = vadd.xlane.f32.xlu0 %v3859
        %v3885 = vpop.xlane.xlu0 %3884
        %3886 = vadd.xlane.f32.xlu0 %v3860
        %v3887 = vpop.xlane.xlu0 %3886
        %3888 = vadd.xlane.f32.xlu0 %v3861
        %v3889 = vpop.xlane.xlu0 %3888
        %3890 = vadd.xlane.f32.xlu0 %v3862
        %v3891 = vpop.xlane.xlu0 %3890
        %3892 = vadd.xlane.f32.xlu0 %v3863
        %v3893 = vpop.xlane.xlu0 %3892
        %3894 = vadd.xlane.f32.xlu0 %v3864
        %v3895 = vpop.xlane.xlu0 %3894
        %3896 = vadd.xlane.f32.xlu0 %v3865
        %v3897 = vpop.xlane.xlu0 %3896
        %3898 = vadd.xlane.f32.xlu0 %v3866
        %v3899 = vpop.xlane.xlu0 %3898
        %3900 = vadd.xlane.f32.xlu0 %v3867
        %v3901 = vpop.xlane.xlu0 %3900
        %3902 = vadd.xlane.f32.xlu0 %v3868
        %v3903 = vpop.xlane.xlu0 %3902
        %3904 = vadd.xlane.f32.xlu0 %v3869
        %v3905 = vpop.xlane.xlu0 %3904
        %v3906 = vrcp.pop 128.0
        %v3907 = vmul.f32 %v3875, %v3906
        %v3908 = vmul.f32 %v3877, %v3906
        %v3909 = vmul.f32 %v3879, %v3906
        %v3910 = vmul.f32 %v3881, %v3906
        %v3911 = vmul.f32 %v3883, %v3906
        %v3912 = vmul.f32 %v3885, %v3906
        %v3913 = vmul.f32 %v3887, %v3906
        %v3914 = vmul.f32 %v3889, %v3906
        %v3915 = vmul.f32 %v3891, %v3906
        %v3916 = vmul.f32 %v3893, %v3906
        %v3917 = vmul.f32 %v3895, %v3906
        %v3918 = vmul.f32 %v3897, %v3906
        %v3919 = vmul.f32 %v3899, %v3906
        %v3920 = vmul.f32 %v3901, %v3906
        %v3921 = vmul.f32 %v3903, %v3906
        %v3922 = vmul.f32 %v3905, %v3906
        %v3923 = vsub.f32 %v3854, %v3907
        %v3924 = vsub.f32 %v3855, %v3908
        %v3925 = vsub.f32 %v3856, %v3909
        %v3926 = vsub.f32 %v3857, %v3910
        %v3927 = vsub.f32 %v3858, %v3911
        %v3928 = vsub.f32 %v3859, %v3912
        %v3929 = vsub.f32 %v3860, %v3913
        %v3930 = vsub.f32 %v3861, %v3914
        %v3931 = vsub.f32 %v3862, %v3915
        %v3932 = vsub.f32 %v3863, %v3916
        %v3933 = vsub.f32 %v3864, %v3917
        %v3934 = vsub.f32 %v3865, %v3918
        %v3935 = vsub.f32 %v3866, %v3919
        %v3936 = vsub.f32 %v3867, %v3920
        %v3937 = vsub.f32 %v3868, %v3921
        %v3938 = vsub.f32 %v3869, %v3922
        %v3939 = vmul.f32 %v3923, %v3923
        %v3940 = vmul.f32 %v3924, %v3924
        %v3941 = vmul.f32 %v3925, %v3925
        %v3942 = vmul.f32 %v3926, %v3926
        %v3943 = vmul.f32 %v3927, %v3927
        %v3944 = vmul.f32 %v3928, %v3928
        %v3945 = vmul.f32 %v3929, %v3929
        %v3946 = vmul.f32 %v3930, %v3930
        %v3947 = vmul.f32 %v3931, %v3931
        %v3948 = vmul.f32 %v3932, %v3932
        %v3949 = vmul.f32 %v3933, %v3933
        %v3950 = vmul.f32 %v3934, %v3934
        %v3951 = vmul.f32 %v3935, %v3935
        %v3952 = vmul.f32 %v3936, %v3936
        %v3953 = vmul.f32 %v3937, %v3937
        %v3954 = vmul.f32 %v3938, %v3938
        %3955 = vadd.xlane.f32.xlu0 %v3939
        %v3956 = vpop.xlane.xlu0 %3955
        %3957 = vadd.xlane.f32.xlu0 %v3940
        %v3958 = vpop.xlane.xlu0 %3957
        %3959 = vadd.xlane.f32.xlu0 %v3941
        %v3960 = vpop.xlane.xlu0 %3959
        %3961 = vadd.xlane.f32.xlu0 %v3942
        %v3962 = vpop.xlane.xlu0 %3961
        %3963 = vadd.xlane.f32.xlu0 %v3943
        %v3964 = vpop.xlane.xlu0 %3963
        %3965 = vadd.xlane.f32.xlu0 %v3944
        %v3966 = vpop.xlane.xlu0 %3965
        %3967 = vadd.xlane.f32.xlu0 %v3945
        %v3968 = vpop.xlane.xlu0 %3967
        %3969 = vadd.xlane.f32.xlu0 %v3946
        %v3970 = vpop.xlane.xlu0 %3969
        %3971 = vadd.xlane.f32.xlu0 %v3947
        %v3972 = vpop.xlane.xlu0 %3971
        %3973 = vadd.xlane.f32.xlu0 %v3948
        %v3974 = vpop.xlane.xlu0 %3973
        %3975 = vadd.xlane.f32.xlu0 %v3949
        %v3976 = vpop.xlane.xlu0 %3975
        %3977 = vadd.xlane.f32.xlu0 %v3950
        %v3978 = vpop.xlane.xlu0 %3977
        %3979 = vadd.xlane.f32.xlu0 %v3951
        %v3980 = vpop.xlane.xlu0 %3979
        %3981 = vadd.xlane.f32.xlu0 %v3952
        %v3982 = vpop.xlane.xlu0 %3981
        %3983 = vadd.xlane.f32.xlu0 %v3953
        %v3984 = vpop.xlane.xlu0 %3983
        %3985 = vadd.xlane.f32.xlu0 %v3954
        %v3986 = vpop.xlane.xlu0 %3985
        %v3987 = vmul.f32 %v3956, %v3906
        %v3988 = vmul.f32 %v3958, %v3906
        %v3989 = vmul.f32 %v3960, %v3906
        %v3990 = vmul.f32 %v3962, %v3906
        %v3991 = vmul.f32 %v3964, %v3906
        %v3992 = vmul.f32 %v3966, %v3906
        %v3993 = vmul.f32 %v3968, %v3906
        %v3994 = vmul.f32 %v3970, %v3906
        %v3995 = vmul.f32 %v3972, %v3906
        %v3996 = vmul.f32 %v3974, %v3906
        %v3997 = vmul.f32 %v3976, %v3906
        %v3998 = vmul.f32 %v3978, %v3906
        %v3999 = vmul.f32 %v3980, %v3906
        %v4000 = vmul.f32 %v3982, %v3906
        %v4001 = vmul.f32 %v3984, %v3906
        %v4002 = vmul.f32 %v3986, %v3906
        %v4003 = vadd.f32 %v3987, 1e-05
        %v4004 = vadd.f32 %v3988, 1e-05
        %v4005 = vadd.f32 %v3989, 1e-05
        %v4006 = vadd.f32 %v3990, 1e-05
        %v4007 = vadd.f32 %v3991, 1e-05
        %v4008 = vadd.f32 %v3992, 1e-05
        %v4009 = vadd.f32 %v3993, 1e-05
        %v4010 = vadd.f32 %v3994, 1e-05
        %v4011 = vadd.f32 %v3995, 1e-05
        %v4012 = vadd.f32 %v3996, 1e-05
        %v4013 = vadd.f32 %v3997, 1e-05
        %v4014 = vadd.f32 %v3998, 1e-05
        %v4015 = vadd.f32 %v3999, 1e-05
        %v4016 = vadd.f32 %v4000, 1e-05
        %v4017 = vadd.f32 %v4001, 1e-05
        %v4018 = vadd.f32 %v4002, 1e-05
        %v4019 = vrsqrt.pop %v4003
        %v4020 = vrsqrt.pop %v4004
        %v4021 = vrsqrt.pop %v4005
        %v4022 = vrsqrt.pop %v4006
        %v4023 = vrsqrt.pop %v4007
        %v4024 = vrsqrt.pop %v4008
        %v4025 = vrsqrt.pop %v4009
        %v4026 = vrsqrt.pop %v4010
        %v4027 = vrsqrt.pop %v4011
        %v4028 = vrsqrt.pop %v4012
        %v4029 = vrsqrt.pop %v4013
        %v4030 = vrsqrt.pop %v4014
        %v4031 = vrsqrt.pop %v4015
        %v4032 = vrsqrt.pop %v4016
        %v4033 = vrsqrt.pop %v4017
        %v4034 = vrsqrt.pop %v4018
        %v4035 = vmul.f32 %v3923, %v4019
        %v4036 = vmul.f32 %v3924, %v4020
        %v4037 = vmul.f32 %v3925, %v4021
        %v4038 = vmul.f32 %v3926, %v4022
        %v4039 = vmul.f32 %v3927, %v4023
        %v4040 = vmul.f32 %v3928, %v4024
        %v4041 = vmul.f32 %v3929, %v4025
        %v4042 = vmul.f32 %v3930, %v4026
        %v4043 = vmul.f32 %v3931, %v4027
        %v4044 = vmul.f32 %v3932, %v4028
        %v4045 = vmul.f32 %v3933, %v4029
        %v4046 = vmul.f32 %v3934, %v4030
        %v4047 = vmul.f32 %v3935, %v4031
        %v4048 = vmul.f32 %v3936, %v4032
        %v4049 = vmul.f32 %v3937, %v4033
        %v4050 = vmul.f32 %v3938, %v4034
        %v4052 = vlaneseq
        %v4053 = vshrl.u32 %v4052, 7
        %v4054 = vsub.s32 0, %v4053
        %v4055 = vrot.slane %v3871, %v4054
        %v4057 = vmul.f32 %v4035, %v4055
        %v4058 = vmul.f32 %v4036, %v4055
        %v4059 = vmul.f32 %v4037, %v4055
        %v4060 = vmul.f32 %v4038, %v4055
        %v4061 = vmul.f32 %v4039, %v4055
        %v4062 = vmul.f32 %v4040, %v4055
        %v4063 = vmul.f32 %v4041, %v4055
        %v4064 = vmul.f32 %v4042, %v4055
        %v4065 = vmul.f32 %v4043, %v4055
        %v4066 = vmul.f32 %v4044, %v4055
        %v4067 = vmul.f32 %v4045, %v4055
        %v4068 = vmul.f32 %v4046, %v4055
        %v4069 = vmul.f32 %v4047, %v4055
        %v4070 = vmul.f32 %v4048, %v4055
        %v4071 = vmul.f32 %v4049, %v4055
        %v4072 = vmul.f32 %v4050, %v4055
        %v4074 = vlaneseq
        %v4075 = vshrl.u32 %v4074, 7
        %v4076 = vsub.s32 0, %v4075
        %v4077 = vrot.slane %v3873, %v4076
        %v4079 = vadd.f32 %v4057, %v4077
        %v4080 = vadd.f32 %v4058, %v4077
        %v4081 = vadd.f32 %v4059, %v4077
        %v4082 = vadd.f32 %v4060, %v4077
        %v4083 = vadd.f32 %v4061, %v4077
        %v4084 = vadd.f32 %v4062, %v4077
        %v4085 = vadd.f32 %v4063, %v4077
        %v4086 = vadd.f32 %v4064, %v4077
        %v4087 = vadd.f32 %v4065, %v4077
        %v4088 = vadd.f32 %v4066, %v4077
        %v4089 = vadd.f32 %v4067, %v4077
        %v4090 = vadd.f32 %v4068, %v4077
        %v4091 = vadd.f32 %v4069, %v4077
        %v4092 = vadd.f32 %v4070, %v4077
        %v4093 = vadd.f32 %v4071, %v4077
        %v4094 = vadd.f32 %v4072, %v4077
        %s4095 = smul.u32 %s39, 32
        %s4096 = smul.addr %s4095, 8
        %s4097 = scalar_lea.vmem [#allocation12], %s4096
        %v4098 = vld [vmem:[%s4097] sm:$0xff]
        %v4099 = vld [vmem:[%s4097 + $0x8] sm:$0xff]
        %v4100 = vld [vmem:[%s4097 + $0x10] sm:$0xff]
        %v4101 = vld [vmem:[%s4097 + $0x18] sm:$0xff]
        %v4102 = vld [vmem:[%s4097 + $0x20] sm:$0xff]
        %v4103 = vld [vmem:[%s4097 + $0x28] sm:$0xff]
        %v4104 = vld [vmem:[%s4097 + $0x30] sm:$0xff]
        %v4105 = vld [vmem:[%s4097 + $0x38] sm:$0xff]
        %v4106 = vld [vmem:[%s4097 + $0x40] sm:$0xff]
        %v4107 = vld [vmem:[%s4097 + $0x48] sm:$0xff]
        %v4108 = vld [vmem:[%s4097 + $0x50] sm:$0xff]
        %v4109 = vld [vmem:[%s4097 + $0x58] sm:$0xff]
        %v4110 = vld [vmem:[%s4097 + $0x60] sm:$0xff]
        %v4111 = vld [vmem:[%s4097 + $0x68] sm:$0xff]
        %v4112 = vld [vmem:[%s4097 + $0x70] sm:$0xff]
        %v4113 = vld [vmem:[%s4097 + $0x78] sm:$0xff]
        %v4114 = vld [vmem:[%s4097 + $0x80] sm:$0xff]
        %v4115 = vld [vmem:[%s4097 + $0x88] sm:$0xff]
        %v4116 = vld [vmem:[%s4097 + $0x90] sm:$0xff]
        %v4117 = vld [vmem:[%s4097 + $0x98] sm:$0xff]
        %v4118 = vld [vmem:[%s4097 + $0xa0] sm:$0xff]
        %v4119 = vld [vmem:[%s4097 + $0xa8] sm:$0xff]
        %v4120 = vld [vmem:[%s4097 + $0xb0] sm:$0xff]
        %v4121 = vld [vmem:[%s4097 + $0xb8] sm:$0xff]
        %v4122 = vld [vmem:[%s4097 + $0xc0] sm:$0xff]
        %v4123 = vld [vmem:[%s4097 + $0xc8] sm:$0xff]
        %v4124 = vld [vmem:[%s4097 + $0xd0] sm:$0xff]
        %v4125 = vld [vmem:[%s4097 + $0xd8] sm:$0xff]
        %v4126 = vld [vmem:[%s4097 + $0xe0] sm:$0xff]
        %v4127 = vld [vmem:[%s4097 + $0xe8] sm:$0xff]
        %v4128 = vld [vmem:[%s4097 + $0xf0] sm:$0xff]
        %v4129 = vld [vmem:[%s4097 + $0xf8] sm:$0xff]
        %s4130 = smul.u32 %s39, 2
        %s4131 = scalar_lea.vmem %s9, %s4130
        %v4132 = vld [vmem:[%s4131] sm:$0x3]
        %v4134 = vlaneseq
        %v4135 = vshrl.u32 %v4134, 7
        %v4136 = vsub.s32 0, %v4135
        %v4137 = vrot.slane %v4132, %v4136
        %v4138 = vlaneseq
        %v4139 = vshrl.u32 %v4138, 7
        %v4140 = vsub.s32 1, %v4139
        %v4141 = vrot.slane %v4132, %v4140
        %4144 = vmatprep.subr.mxu0 %v4099
        %4145 = vmatpush1.msra.mxu0 %v4098
        %4146 = vmatprep.subr.mxu0 %v4101
        %4147 = vmatpush1.msra.mxu0 %v4100
        %4148 = vmatprep.subr.mxu0 %v4103
        %4149 = vmatpush1.msra.mxu0 %v4102
        %4150 = vmatprep.subr.mxu0 %v4105
        %4151 = vmatpush1.msra.mxu0 %v4104
        %4152 = vmatprep.subr.mxu0 %v4107
        %4153 = vmatpush1.msra.mxu0 %v4106
        %4154 = vmatprep.subr.mxu0 %v4109
        %4155 = vmatpush1.msra.mxu0 %v4108
        %4156 = vmatprep.subr.mxu0 %v4111
        %4157 = vmatpush1.msra.mxu0 %v4110
        %4158 = vmatprep.subr.mxu0 %v4113
        %4159 = vmatpush1.msra.mxu0 %v4112
        %4160 = vmatprep.subr.mxu0 %v4115
        %4161 = vmatpush1.msra.mxu0 %v4114
        %4162 = vmatprep.subr.mxu0 %v4117
        %4163 = vmatpush1.msra.mxu0 %v4116
        %4164 = vmatprep.subr.mxu0 %v4119
        %4165 = vmatpush1.msra.mxu0 %v4118
        %4166 = vmatprep.subr.mxu0 %v4121
        %4167 = vmatpush1.msra.mxu0 %v4120
        %4168 = vmatprep.subr.mxu0 %v4123
        %4169 = vmatpush1.msra.mxu0 %v4122
        %4170 = vmatprep.subr.mxu0 %v4125
        %4171 = vmatpush1.msra.mxu0 %v4124
        %4172 = vmatprep.subr.mxu0 %v4127
        %4173 = vmatpush1.msra.mxu0 %v4126
        %4174 = vmatprep.subr.mxu0 %v4129
        %4175 = vmatpush1.msra.mxu0 %v4128
        %4176 = vmatprep.subr.mxu0 0.0
        %4177 = vmatpush1.msra.mxu0 0.0
        %4178 = vmatprep.subr.mxu0 0.0
        %4179 = vmatpush1.msra.mxu0 0.0
        %4180 = vmatprep.subr.mxu0 0.0
        %4181 = vmatpush1.msra.mxu0 0.0
        %4182 = vmatprep.subr.mxu0 0.0
        %4183 = vmatpush1.msra.mxu0 0.0
        %4184 = vmatprep.subr.mxu0 0.0
        %4185 = vmatpush1.msra.mxu0 0.0
        %4186 = vmatprep.subr.mxu0 0.0
        %4187 = vmatpush1.msra.mxu0 0.0
        %4188 = vmatprep.subr.mxu0 0.0
        %4189 = vmatpush1.msra.mxu0 0.0
        %4190 = vmatprep.subr.mxu0 0.0
        %4191 = vmatpush1.msra.mxu0 0.0
        %4192 = vmatprep.subr.mxu0 0.0
        %4193 = vmatpush1.msra.mxu0 0.0
        %4194 = vmatprep.subr.mxu0 0.0
        %4195 = vmatpush1.msra.mxu0 0.0
        %4196 = vmatprep.subr.mxu0 0.0
        %4197 = vmatpush1.msra.mxu0 0.0
        %4198 = vmatprep.subr.mxu0 0.0
        %4199 = vmatpush1.msra.mxu0 0.0
        %4200 = vmatprep.subr.mxu0 0.0
        %4201 = vmatpush1.msra.mxu0 0.0
        %4202 = vmatprep.subr.mxu0 0.0
        %4203 = vmatpush1.msra.mxu0 0.0
        %4204 = vmatprep.subr.mxu0 0.0
        %4205 = vmatpush1.msra.mxu0 0.0
        %4206 = vmatprep.subr.mxu0 0.0
        %4207 = vmatpush1.msra.mxu0 0.0
        %4208 = vmatprep.mubr.f32.mxu0 0.0
        %4209 = vmatmul.mubr.f32.gmra.mrb[0].mxu0 %v4079
        %v4210 = vpop.f32.mrb[0].mxu0
        %v4211 = vadd.f32 %v4137, %v4210
        %v4212 = vpop.f32.mrb[0].mxu0
        %v4213 = vadd.f32 %v4141, %v4212
        %4214 = vmatprep.mubr.f32.mxu0 0.0
        %4215 = vmatmul.mubr.f32.gmra.mrb[0].mxu0 %v4080
        %v4216 = vpop.f32.mrb[0].mxu0
        %v4217 = vadd.f32 %v4137, %v4216
        %v4218 = vpop.f32.mrb[0].mxu0
        %v4219 = vadd.f32 %v4141, %v4218
        %4220 = vmatprep.mubr.f32.mxu0 0.0
        %4221 = vmatmul.mubr.f32.gmra.mrb[0].mxu0 %v4081
        %v4222 = vpop.f32.mrb[0].mxu0
        %v4223 = vadd.f32 %v4137, %v4222
        %v4224 = vpop.f32.mrb[0].mxu0
        %v4225 = vadd.f32 %v4141, %v4224
        %4226 = vmatprep.mubr.f32.mxu0 0.0
        %4227 = vmatmul.mubr.f32.gmra.mrb[0].mxu0 %v4082
        %v4228 = vpop.f32.mrb[0].mxu0
        %v4229 = vadd.f32 %v4137, %v4228
        %v4230 = vpop.f32.mrb[0].mxu0
        %v4231 = vadd.f32 %v4141, %v4230
        %4232 = vmatprep.mubr.f32.mxu0 0.0
        %4233 = vmatmul.mubr.f32.gmra.mrb[0].mxu0 %v4083
        %v4234 = vpop.f32.mrb[0].mxu0
        %v4235 = vadd.f32 %v4137, %v4234
        %v4236 = vpop.f32.mrb[0].mxu0
        %v4237 = vadd.f32 %v4141, %v4236
        %4238 = vmatprep.mubr.f32.mxu0 0.0
        %4239 = vmatmul.mubr.f32.gmra.mrb[0].mxu0 %v4084
        %v4240 = vpop.f32.mrb[0].mxu0
        %v4241 = vadd.f32 %v4137, %v4240
        %v4242 = vpop.f32.mrb[0].mxu0
        %v4243 = vadd.f32 %v4141, %v4242
        %4244 = vmatprep.mubr.f32.mxu0 0.0
        %4245 = vmatmul.mubr.f32.gmra.mrb[0].mxu0 %v4085
        %v4246 = vpop.f32.mrb[0].mxu0
        %v4247 = vadd.f32 %v4137, %v4246
        %v4248 = vpop.f32.mrb[0].mxu0
        %v4249 = vadd.f32 %v4141, %v4248
        %4250 = vmatprep.mubr.f32.mxu0 0.0
        %4251 = vmatmul.mubr.f32.gmra.mrb[0].mxu0 %v4086
        %v4252 = vpop.f32.mrb[0].mxu0
        %v4253 = vadd.f32 %v4137, %v4252
        %v4254 = vpop.f32.mrb[0].mxu0
        %v4255 = vadd.f32 %v4141, %v4254
        %4256 = vmatprep.mubr.f32.mxu0 0.0
        %4257 = vmatmul.mubr.f32.gmra.mrb[0].mxu0 %v4087
        %v4258 = vpop.f32.mrb[0].mxu0
        %v4259 = vadd.f32 %v4137, %v4258
        %v4260 = vpop.f32.mrb[0].mxu0
        %v4261 = vadd.f32 %v4141, %v4260
        %4262 = vmatprep.mubr.f32.mxu0 0.0
        %4263 = vmatmul.mubr.f32.gmra.mrb[0].mxu0 %v4088
        %v4264 = vpop.f32.mrb[0].mxu0
        %v4265 = vadd.f32 %v4137, %v4264
        %v4266 = vpop.f32.mrb[0].mxu0
        %v4267 = vadd.f32 %v4141, %v4266
        %4268 = vmatprep.mubr.f32.mxu0 0.0
        %4269 = vmatmul.mubr.f32.gmra.mrb[0].mxu0 %v4089
        %v4270 = vpop.f32.mrb[0].mxu0
        %v4271 = vadd.f32 %v4137, %v4270
        %v4272 = vpop.f32.mrb[0].mxu0
        %v4273 = vadd.f32 %v4141, %v4272
        %4274 = vmatprep.mubr.f32.mxu0 0.0
        %4275 = vmatmul.mubr.f32.gmra.mrb[0].mxu0 %v4090
        %v4276 = vpop.f32.mrb[0].mxu0
        %v4277 = vadd.f32 %v4137, %v4276
        %v4278 = vpop.f32.mrb[0].mxu0
        %v4279 = vadd.f32 %v4141, %v4278
        %4280 = vmatprep.mubr.f32.mxu0 0.0
        %4281 = vmatmul.mubr.f32.gmra.mrb[0].mxu0 %v4091
        %v4282 = vpop.f32.mrb[0].mxu0
        %v4283 = vadd.f32 %v4137, %v4282
        %v4284 = vpop.f32.mrb[0].mxu0
        %v4285 = vadd.f32 %v4141, %v4284
        %4286 = vmatprep.mubr.f32.mxu0 0.0
        %4287 = vmatmul.mubr.f32.gmra.mrb[0].mxu0 %v4092
        %v4288 = vpop.f32.mrb[0].mxu0
        %v4289 = vadd.f32 %v4137, %v4288
        %v4290 = vpop.f32.mrb[0].mxu0
        %v4291 = vadd.f32 %v4141, %v4290
        %4292 = vmatprep.mubr.f32.mxu0 0.0
        %4293 = vmatmul.mubr.f32.gmra.mrb[0].mxu0 %v4093
        %v4294 = vpop.f32.mrb[0].mxu0
        %v4295 = vadd.f32 %v4137, %v4294
        %v4296 = vpop.f32.mrb[0].mxu0
        %v4297 = vadd.f32 %v4141, %v4296
        %4298 = vmatprep.mubr.f32.mxu0 0.0
        %4299 = vmatmul.mubr.f32.gmra.mrb[0].mxu0 %v4094
        %v4300 = vpop.f32.mrb[0].mxu0
        %v4301 = vadd.f32 %v4137, %v4300
        %v4302 = vpop.f32.mrb[0].mxu0
        %v4303 = vadd.f32 %v4141, %v4302
        %4304 = vdwg.mxu0
        %v4305 = vmax.f32 %v4211, 0.0
        %v4306 = vmax.f32 %v4213, 0.0
        %v4307 = vmax.f32 %v4217, 0.0
        %v4308 = vmax.f32 %v4219, 0.0
        %v4309 = vmax.f32 %v4223, 0.0
        %v4310 = vmax.f32 %v4225, 0.0
        %v4311 = vmax.f32 %v4229, 0.0
        %v4312 = vmax.f32 %v4231, 0.0
        %v4313 = vmax.f32 %v4235, 0.0
        %v4314 = vmax.f32 %v4237, 0.0
        %v4315 = vmax.f32 %v4241, 0.0
        %v4316 = vmax.f32 %v4243, 0.0
        %v4317 = vmax.f32 %v4247, 0.0
        %v4318 = vmax.f32 %v4249, 0.0
        %v4319 = vmax.f32 %v4253, 0.0
        %v4320 = vmax.f32 %v4255, 0.0
        %v4321 = vmax.f32 %v4259, 0.0
        %v4322 = vmax.f32 %v4261, 0.0
        %v4323 = vmax.f32 %v4265, 0.0
        %v4324 = vmax.f32 %v4267, 0.0
        %v4325 = vmax.f32 %v4271, 0.0
        %v4326 = vmax.f32 %v4273, 0.0
        %v4327 = vmax.f32 %v4277, 0.0
        %v4328 = vmax.f32 %v4279, 0.0
        %v4329 = vmax.f32 %v4283, 0.0
        %v4330 = vmax.f32 %v4285, 0.0
        %v4331 = vmax.f32 %v4289, 0.0
        %v4332 = vmax.f32 %v4291, 0.0
        %v4333 = vmax.f32 %v4295, 0.0
        %v4334 = vmax.f32 %v4297, 0.0
        %v4335 = vmax.f32 %v4301, 0.0
        %v4336 = vmax.f32 %v4303, 0.0
        %s4337 = smul.u32 %s39, 256
        %s4338 = scalar_lea.vmem [#allocation13], %s4337
        %v4339 = vld [vmem:[%s4338] sm:$0xff]
        %v4340 = vld [vmem:[%s4338 + $0x8] sm:$0xff]
        %v4341 = vld [vmem:[%s4338 + $0x10] sm:$0xff]
        %v4342 = vld [vmem:[%s4338 + $0x18] sm:$0xff]
        %v4343 = vld [vmem:[%s4338 + $0x20] sm:$0xff]
        %v4344 = vld [vmem:[%s4338 + $0x28] sm:$0xff]
        %v4345 = vld [vmem:[%s4338 + $0x30] sm:$0xff]
        %v4346 = vld [vmem:[%s4338 + $0x38] sm:$0xff]
        %v4347 = vld [vmem:[%s4338 + $0x40] sm:$0xff]
        %v4348 = vld [vmem:[%s4338 + $0x48] sm:$0xff]
        %v4349 = vld [vmem:[%s4338 + $0x50] sm:$0xff]
        %v4350 = vld [vmem:[%s4338 + $0x58] sm:$0xff]
        %v4351 = vld [vmem:[%s4338 + $0x60] sm:$0xff]
        %v4352 = vld [vmem:[%s4338 + $0x68] sm:$0xff]
        %v4353 = vld [vmem:[%s4338 + $0x70] sm:$0xff]
        %v4354 = vld [vmem:[%s4338 + $0x78] sm:$0xff]
        %v4355 = vld [vmem:[%s4338 + $0x80] sm:$0xff]
        %v4356 = vld [vmem:[%s4338 + $0x88] sm:$0xff]
        %v4357 = vld [vmem:[%s4338 + $0x90] sm:$0xff]
        %v4358 = vld [vmem:[%s4338 + $0x98] sm:$0xff]
        %v4359 = vld [vmem:[%s4338 + $0xa0] sm:$0xff]
        %v4360 = vld [vmem:[%s4338 + $0xa8] sm:$0xff]
        %v4361 = vld [vmem:[%s4338 + $0xb0] sm:$0xff]
        %v4362 = vld [vmem:[%s4338 + $0xb8] sm:$0xff]
        %v4363 = vld [vmem:[%s4338 + $0xc0] sm:$0xff]
        %v4364 = vld [vmem:[%s4338 + $0xc8] sm:$0xff]
        %v4365 = vld [vmem:[%s4338 + $0xd0] sm:$0xff]
        %v4366 = vld [vmem:[%s4338 + $0xd8] sm:$0xff]
        %v4367 = vld [vmem:[%s4338 + $0xe0] sm:$0xff]
        %v4368 = vld [vmem:[%s4338 + $0xe8] sm:$0xff]
        %v4369 = vld [vmem:[%s4338 + $0xf0] sm:$0xff]
        %v4370 = vld [vmem:[%s4338 + $0xf8] sm:$0xff]
        %s4371 = scalar_lea.vmem %s11, %s39
        %v4372 = vld [vmem:[%s4371] sm:$0x1]
        %v4374 = vlaneseq
        %v4375 = vshrl.u32 %v4374, 7
        %v4376 = vsub.s32 0, %v4375
        %v4377 = vrot.slane %v4372, %v4376
        %4379 = vmatprep.subr.mxu0 0.0
        %4380 = vmatpush1.msra.mxu0 %v4339
        %4381 = vmatprep.subr.mxu0 0.0
        %4382 = vmatpush1.msra.mxu0 %v4340
        %4383 = vmatprep.subr.mxu0 0.0
        %4384 = vmatpush1.msra.mxu0 %v4341
        %4385 = vmatprep.subr.mxu0 0.0
        %4386 = vmatpush1.msra.mxu0 %v4342
        %4387 = vmatprep.subr.mxu0 0.0
        %4388 = vmatpush1.msra.mxu0 %v4343
        %4389 = vmatprep.subr.mxu0 0.0
        %4390 = vmatpush1.msra.mxu0 %v4344
        %4391 = vmatprep.subr.mxu0 0.0
        %4392 = vmatpush1.msra.mxu0 %v4345
        %4393 = vmatprep.subr.mxu0 0.0
        %4394 = vmatpush1.msra.mxu0 %v4346
        %4395 = vmatprep.subr.mxu0 0.0
        %4396 = vmatpush1.msra.mxu0 %v4347
        %4397 = vmatprep.subr.mxu0 0.0
        %4398 = vmatpush1.msra.mxu0 %v4348
        %4399 = vmatprep.subr.mxu0 0.0
        %4400 = vmatpush1.msra.mxu0 %v4349
        %4401 = vmatprep.subr.mxu0 0.0
        %4402 = vmatpush1.msra.mxu0 %v4350
        %4403 = vmatprep.subr.mxu0 0.0
        %4404 = vmatpush1.msra.mxu0 %v4351
        %4405 = vmatprep.subr.mxu0 0.0
        %4406 = vmatpush1.msra.mxu0 %v4352
        %4407 = vmatprep.subr.mxu0 0.0
        %4408 = vmatpush1.msra.mxu0 %v4353
        %4409 = vmatprep.subr.mxu0 0.0
        %4410 = vmatpush1.msra.mxu0 %v4354
        %4411 = vmatprep.subr.mxu0 0.0
        %4412 = vmatpush1.msra.mxu0 %v4355
        %4413 = vmatprep.subr.mxu0 0.0
        %4414 = vmatpush1.msra.mxu0 %v4356
        %4415 = vmatprep.subr.mxu0 0.0
        %4416 = vmatpush1.msra.mxu0 %v4357
        %4417 = vmatprep.subr.mxu0 0.0
        %4418 = vmatpush1.msra.mxu0 %v4358
        %4419 = vmatprep.subr.mxu0 0.0
        %4420 = vmatpush1.msra.mxu0 %v4359
        %4421 = vmatprep.subr.mxu0 0.0
        %4422 = vmatpush1.msra.mxu0 %v4360
        %4423 = vmatprep.subr.mxu0 0.0
        %4424 = vmatpush1.msra.mxu0 %v4361
        %4425 = vmatprep.subr.mxu0 0.0
        %4426 = vmatpush1.msra.mxu0 %v4362
        %4427 = vmatprep.subr.mxu0 0.0
        %4428 = vmatpush1.msra.mxu0 %v4363
        %4429 = vmatprep.subr.mxu0 0.0
        %4430 = vmatpush1.msra.mxu0 %v4364
        %4431 = vmatprep.subr.mxu0 0.0
        %4432 = vmatpush1.msra.mxu0 %v4365
        %4433 = vmatprep.subr.mxu0 0.0
        %4434 = vmatpush1.msra.mxu0 %v4366
        %4435 = vmatprep.subr.mxu0 0.0
        %4436 = vmatpush1.msra.mxu0 %v4367
        %4437 = vmatprep.subr.mxu0 0.0
        %4438 = vmatpush1.msra.mxu0 %v4368
        %4439 = vmatprep.subr.mxu0 0.0
        %4440 = vmatpush1.msra.mxu0 %v4369
        %4441 = vmatprep.subr.mxu0 0.0
        %4442 = vmatpush1.msra.mxu0 %v4370
        %4443 = vmatprep.mubr.f32.mxu0 %v4306
        %4444 = vmatmul.mubr.f32.gmra.mrb[0].mxu0 %v4305
        %v4445 = vpop.f32.mrb[0].mxu0
        %v4446 = vadd.f32 %v4377, %v4445
        %v4447 = vpop.f32.mrb[0].mxu0
        %4448 = vmatprep.mubr.f32.mxu0 %v4308
        %4449 = vmatmul.mubr.f32.gmra.mrb[0].mxu0 %v4307
        %v4450 = vpop.f32.mrb[0].mxu0
        %v4451 = vadd.f32 %v4377, %v4450
        %v4452 = vpop.f32.mrb[0].mxu0
        %4453 = vmatprep.mubr.f32.mxu0 %v4310
        %4454 = vmatmul.mubr.f32.gmra.mrb[0].mxu0 %v4309
        %v4455 = vpop.f32.mrb[0].mxu0
        %v4456 = vadd.f32 %v4377, %v4455
        %v4457 = vpop.f32.mrb[0].mxu0
        %4458 = vmatprep.mubr.f32.mxu0 %v4312
        %4459 = vmatmul.mubr.f32.gmra.mrb[0].mxu0 %v4311
        %v4460 = vpop.f32.mrb[0].mxu0
        %v4461 = vadd.f32 %v4377, %v4460
        %v4462 = vpop.f32.mrb[0].mxu0
        %4463 = vmatprep.mubr.f32.mxu0 %v4314
        %4464 = vmatmul.mubr.f32.gmra.mrb[0].mxu0 %v4313
        %v4465 = vpop.f32.mrb[0].mxu0
        %v4466 = vadd.f32 %v4377, %v4465
        %v4467 = vpop.f32.mrb[0].mxu0
        %4468 = vmatprep.mubr.f32.mxu0 %v4316
        %4469 = vmatmul.mubr.f32.gmra.mrb[0].mxu0 %v4315
        %v4470 = vpop.f32.mrb[0].mxu0
        %v4471 = vadd.f32 %v4377, %v4470
        %v4472 = vpop.f32.mrb[0].mxu0
        %4473 = vmatprep.mubr.f32.mxu0 %v4318
        %4474 = vmatmul.mubr.f32.gmra.mrb[0].mxu0 %v4317
        %v4475 = vpop.f32.mrb[0].mxu0
        %v4476 = vadd.f32 %v4377, %v4475
        %v4477 = vpop.f32.mrb[0].mxu0
        %4478 = vmatprep.mubr.f32.mxu0 %v4320
        %4479 = vmatmul.mubr.f32.gmra.mrb[0].mxu0 %v4319
        %v4480 = vpop.f32.mrb[0].mxu0
        %v4481 = vadd.f32 %v4377, %v4480
        %v4482 = vpop.f32.mrb[0].mxu0
        %4483 = vmatprep.mubr.f32.mxu0 %v4322
        %4484 = vmatmul.mubr.f32.gmra.mrb[0].mxu0 %v4321
        %v4485 = vpop.f32.mrb[0].mxu0
        %v4486 = vadd.f32 %v4377, %v4485
        %v4487 = vpop.f32.mrb[0].mxu0
        %4488 = vmatprep.mubr.f32.mxu0 %v4324
        %4489 = vmatmul.mubr.f32.gmra.mrb[0].mxu0 %v4323
        %v4490 = vpop.f32.mrb[0].mxu0
        %v4491 = vadd.f32 %v4377, %v4490
        %v4492 = vpop.f32.mrb[0].mxu0
        %4493 = vmatprep.mubr.f32.mxu0 %v4326
        %4494 = vmatmul.mubr.f32.gmra.mrb[0].mxu0 %v4325
        %v4495 = vpop.f32.mrb[0].mxu0
        %v4496 = vadd.f32 %v4377, %v4495
        %v4497 = vpop.f32.mrb[0].mxu0
        %4498 = vmatprep.mubr.f32.mxu0 %v4328
        %4499 = vmatmul.mubr.f32.gmra.mrb[0].mxu0 %v4327
        %v4500 = vpop.f32.mrb[0].mxu0
        %v4501 = vadd.f32 %v4377, %v4500
        %v4502 = vpop.f32.mrb[0].mxu0
        %4503 = vmatprep.mubr.f32.mxu0 %v4330
        %4504 = vmatmul.mubr.f32.gmra.mrb[0].mxu0 %v4329
        %v4505 = vpop.f32.mrb[0].mxu0
        %v4506 = vadd.f32 %v4377, %v4505
        %v4507 = vpop.f32.mrb[0].mxu0
        %4508 = vmatprep.mubr.f32.mxu0 %v4332
        %4509 = vmatmul.mubr.f32.gmra.mrb[0].mxu0 %v4331
        %v4510 = vpop.f32.mrb[0].mxu0
        %v4511 = vadd.f32 %v4377, %v4510
        %v4512 = vpop.f32.mrb[0].mxu0
        %4513 = vmatprep.mubr.f32.mxu0 %v4334
        %4514 = vmatmul.mubr.f32.gmra.mrb[0].mxu0 %v4333
        %v4515 = vpop.f32.mrb[0].mxu0
        %v4516 = vadd.f32 %v4377, %v4515
        %v4517 = vpop.f32.mrb[0].mxu0
        %4518 = vmatprep.mubr.f32.mxu0 %v4336
        %4519 = vmatmul.mubr.f32.gmra.mrb[0].mxu0 %v4335
        %v4520 = vpop.f32.mrb[0].mxu0
        %v4521 = vadd.f32 %v4377, %v4520
        %v4522 = vpop.f32.mrb[0].mxu0
        %4523 = vdwg.mxu0
        %v4524 = vadd.f32 %v4079, %v4446
        %v4525 = vadd.f32 %v4080, %v4451
        %v4526 = vadd.f32 %v4081, %v4456
        %v4527 = vadd.f32 %v4082, %v4461
        %v4528 = vadd.f32 %v4083, %v4466
        %v4529 = vadd.f32 %v4084, %v4471
        %v4530 = vadd.f32 %v4085, %v4476
        %v4531 = vadd.f32 %v4086, %v4481
        %v4532 = vadd.f32 %v4087, %v4486
        %v4533 = vadd.f32 %v4088, %v4491
        %v4534 = vadd.f32 %v4089, %v4496
        %v4535 = vadd.f32 %v4090, %v4501
        %v4536 = vadd.f32 %v4091, %v4506
        %v4537 = vadd.f32 %v4092, %v4511
        %v4538 = vadd.f32 %v4093, %v4516
        %v4539 = vadd.f32 %v4094, %v4521
        %s4540 = scalar_lea.vmem %s12, %s39
        %v4541 = vld [vmem:[%s4540] sm:$0x1]
        %s4542 = scalar_lea.vmem %s13, %s39
        %v4543 = vld [vmem:[%s4542] sm:$0x1]
        %4544 = vadd.xlane.f32.xlu0 %v4524
        %v4545 = vpop.xlane.xlu0 %4544
        %4546 = vadd.xlane.f32.xlu0 %v4525
        %v4547 = vpop.xlane.xlu0 %4546
        %4548 = vadd.xlane.f32.xlu0 %v4526
        %v4549 = vpop.xlane.xlu0 %4548
        %4550 = vadd.xlane.f32.xlu0 %v4527
        %v4551 = vpop.xlane.xlu0 %4550
        %4552 = vadd.xlane.f32.xlu0 %v4528
        %v4553 = vpop.xlane.xlu0 %4552
        %4554 = vadd.xlane.f32.xlu0 %v4529
        %v4555 = vpop.xlane.xlu0 %4554
        %4556 = vadd.xlane.f32.xlu0 %v4530
        %v4557 = vpop.xlane.xlu0 %4556
        %4558 = vadd.xlane.f32.xlu0 %v4531
        %v4559 = vpop.xlane.xlu0 %4558
        %4560 = vadd.xlane.f32.xlu0 %v4532
        %v4561 = vpop.xlane.xlu0 %4560
        %4562 = vadd.xlane.f32.xlu0 %v4533
        %v4563 = vpop.xlane.xlu0 %4562
        %4564 = vadd.xlane.f32.xlu0 %v4534
        %v4565 = vpop.xlane.xlu0 %4564
        %4566 = vadd.xlane.f32.xlu0 %v4535
        %v4567 = vpop.xlane.xlu0 %4566
        %4568 = vadd.xlane.f32.xlu0 %v4536
        %v4569 = vpop.xlane.xlu0 %4568
        %4570 = vadd.xlane.f32.xlu0 %v4537
        %v4571 = vpop.xlane.xlu0 %4570
        %4572 = vadd.xlane.f32.xlu0 %v4538
        %v4573 = vpop.xlane.xlu0 %4572
        %4574 = vadd.xlane.f32.xlu0 %v4539
        %v4575 = vpop.xlane.xlu0 %4574
        %v4576 = vmul.f32 %v4545, %v3906
        %v4577 = vmul.f32 %v4547, %v3906
        %v4578 = vmul.f32 %v4549, %v3906
        %v4579 = vmul.f32 %v4551, %v3906
        %v4580 = vmul.f32 %v4553, %v3906
        %v4581 = vmul.f32 %v4555, %v3906
        %v4582 = vmul.f32 %v4557, %v3906
        %v4583 = vmul.f32 %v4559, %v3906
        %v4584 = vmul.f32 %v4561, %v3906
        %v4585 = vmul.f32 %v4563, %v3906
        %v4586 = vmul.f32 %v4565, %v3906
        %v4587 = vmul.f32 %v4567, %v3906
        %v4588 = vmul.f32 %v4569, %v3906
        %v4589 = vmul.f32 %v4571, %v3906
        %v4590 = vmul.f32 %v4573, %v3906
        %v4591 = vmul.f32 %v4575, %v3906
        %v4592 = vsub.f32 %v4524, %v4576
        %v4593 = vsub.f32 %v4525, %v4577
        %v4594 = vsub.f32 %v4526, %v4578
        %v4595 = vsub.f32 %v4527, %v4579
        %v4596 = vsub.f32 %v4528, %v4580
        %v4597 = vsub.f32 %v4529, %v4581
        %v4598 = vsub.f32 %v4530, %v4582
        %v4599 = vsub.f32 %v4531, %v4583
        %v4600 = vsub.f32 %v4532, %v4584
        %v4601 = vsub.f32 %v4533, %v4585
        %v4602 = vsub.f32 %v4534, %v4586
        %v4603 = vsub.f32 %v4535, %v4587
        %v4604 = vsub.f32 %v4536, %v4588
        %v4605 = vsub.f32 %v4537, %v4589
        %v4606 = vsub.f32 %v4538, %v4590
        %v4607 = vsub.f32 %v4539, %v4591
        %v4608 = vmul.f32 %v4592, %v4592
        %v4609 = vmul.f32 %v4593, %v4593
        %v4610 = vmul.f32 %v4594, %v4594
        %v4611 = vmul.f32 %v4595, %v4595
        %v4612 = vmul.f32 %v4596, %v4596
        %v4613 = vmul.f32 %v4597, %v4597
        %v4614 = vmul.f32 %v4598, %v4598
        %v4615 = vmul.f32 %v4599, %v4599
        %v4616 = vmul.f32 %v4600, %v4600
        %v4617 = vmul.f32 %v4601, %v4601
        %v4618 = vmul.f32 %v4602, %v4602
        %v4619 = vmul.f32 %v4603, %v4603
        %v4620 = vmul.f32 %v4604, %v4604
        %v4621 = vmul.f32 %v4605, %v4605
        %v4622 = vmul.f32 %v4606, %v4606
        %v4623 = vmul.f32 %v4607, %v4607
        %4624 = vadd.xlane.f32.xlu0 %v4608
        %v4625 = vpop.xlane.xlu0 %4624
        %4626 = vadd.xlane.f32.xlu0 %v4609
        %v4627 = vpop.xlane.xlu0 %4626
        %4628 = vadd.xlane.f32.xlu0 %v4610
        %v4629 = vpop.xlane.xlu0 %4628
        %4630 = vadd.xlane.f32.xlu0 %v4611
        %v4631 = vpop.xlane.xlu0 %4630
        %4632 = vadd.xlane.f32.xlu0 %v4612
        %v4633 = vpop.xlane.xlu0 %4632
        %4634 = vadd.xlane.f32.xlu0 %v4613
        %v4635 = vpop.xlane.xlu0 %4634
        %4636 = vadd.xlane.f32.xlu0 %v4614
        %v4637 = vpop.xlane.xlu0 %4636
        %4638 = vadd.xlane.f32.xlu0 %v4615
        %v4639 = vpop.xlane.xlu0 %4638
        %4640 = vadd.xlane.f32.xlu0 %v4616
        %v4641 = vpop.xlane.xlu0 %4640
        %4642 = vadd.xlane.f32.xlu0 %v4617
        %v4643 = vpop.xlane.xlu0 %4642
        %4644 = vadd.xlane.f32.xlu0 %v4618
        %v4645 = vpop.xlane.xlu0 %4644
        %4646 = vadd.xlane.f32.xlu0 %v4619
        %v4647 = vpop.xlane.xlu0 %4646
        %4648 = vadd.xlane.f32.xlu0 %v4620
        %v4649 = vpop.xlane.xlu0 %4648
        %4650 = vadd.xlane.f32.xlu0 %v4621
        %v4651 = vpop.xlane.xlu0 %4650
        %4652 = vadd.xlane.f32.xlu0 %v4622
        %v4653 = vpop.xlane.xlu0 %4652
        %4654 = vadd.xlane.f32.xlu0 %v4623
        %v4655 = vpop.xlane.xlu0 %4654
        %v4656 = vmul.f32 %v4625, %v3906
        %v4657 = vmul.f32 %v4627, %v3906
        %v4658 = vmul.f32 %v4629, %v3906
        %v4659 = vmul.f32 %v4631, %v3906
        %v4660 = vmul.f32 %v4633, %v3906
        %v4661 = vmul.f32 %v4635, %v3906
        %v4662 = vmul.f32 %v4637, %v3906
        %v4663 = vmul.f32 %v4639, %v3906
        %v4664 = vmul.f32 %v4641, %v3906
        %v4665 = vmul.f32 %v4643, %v3906
        %v4666 = vmul.f32 %v4645, %v3906
        %v4667 = vmul.f32 %v4647, %v3906
        %v4668 = vmul.f32 %v4649, %v3906
        %v4669 = vmul.f32 %v4651, %v3906
        %v4670 = vmul.f32 %v4653, %v3906
        %v4671 = vmul.f32 %v4655, %v3906
        %v4672 = vadd.f32 %v4656, 1e-05
        %v4673 = vadd.f32 %v4657, 1e-05
        %v4674 = vadd.f32 %v4658, 1e-05
        %v4675 = vadd.f32 %v4659, 1e-05
        %v4676 = vadd.f32 %v4660, 1e-05
        %v4677 = vadd.f32 %v4661, 1e-05
        %v4678 = vadd.f32 %v4662, 1e-05
        %v4679 = vadd.f32 %v4663, 1e-05
        %v4680 = vadd.f32 %v4664, 1e-05
        %v4681 = vadd.f32 %v4665, 1e-05
        %v4682 = vadd.f32 %v4666, 1e-05
        %v4683 = vadd.f32 %v4667, 1e-05
        %v4684 = vadd.f32 %v4668, 1e-05
        %v4685 = vadd.f32 %v4669, 1e-05
        %v4686 = vadd.f32 %v4670, 1e-05
        %v4687 = vadd.f32 %v4671, 1e-05
        %v4688 = vrsqrt.pop %v4672
        %v4689 = vrsqrt.pop %v4673
        %v4690 = vrsqrt.pop %v4674
        %v4691 = vrsqrt.pop %v4675
        %v4692 = vrsqrt.pop %v4676
        %v4693 = vrsqrt.pop %v4677
        %v4694 = vrsqrt.pop %v4678
        %v4695 = vrsqrt.pop %v4679
        %v4696 = vrsqrt.pop %v4680
        %v4697 = vrsqrt.pop %v4681
        %v4698 = vrsqrt.pop %v4682
        %v4699 = vrsqrt.pop %v4683
        %v4700 = vrsqrt.pop %v4684
        %v4701 = vrsqrt.pop %v4685
        %v4702 = vrsqrt.pop %v4686
        %v4703 = vrsqrt.pop %v4687
        %v4704 = vmul.f32 %v4592, %v4688
        %v4705 = vmul.f32 %v4593, %v4689
        %v4706 = vmul.f32 %v4594, %v4690
        %v4707 = vmul.f32 %v4595, %v4691
        %v4708 = vmul.f32 %v4596, %v4692
        %v4709 = vmul.f32 %v4597, %v4693
        %v4710 = vmul.f32 %v4598, %v4694
        %v4711 = vmul.f32 %v4599, %v4695
        %v4712 = vmul.f32 %v4600, %v4696
        %v4713 = vmul.f32 %v4601, %v4697
        %v4714 = vmul.f32 %v4602, %v4698
        %v4715 = vmul.f32 %v4603, %v4699
        %v4716 = vmul.f32 %v4604, %v4700
        %v4717 = vmul.f32 %v4605, %v4701
        %v4718 = vmul.f32 %v4606, %v4702
        %v4719 = vmul.f32 %v4607, %v4703
        %v4721 = vlaneseq
        %v4722 = vshrl.u32 %v4721, 7
        %v4723 = vsub.s32 0, %v4722
        %v4724 = vrot.slane %v4541, %v4723
        %v4726 = vmul.f32 %v4704, %v4724
        %v4727 = vmul.f32 %v4705, %v4724
        %v4728 = vmul.f32 %v4706, %v4724
        %v4729 = vmul.f32 %v4707, %v4724
        %v4730 = vmul.f32 %v4708, %v4724
        %v4731 = vmul.f32 %v4709, %v4724
        %v4732 = vmul.f32 %v4710, %v4724
        %v4733 = vmul.f32 %v4711, %v4724
        %v4734 = vmul.f32 %v4712, %v4724
        %v4735 = vmul.f32 %v4713, %v4724
        %v4736 = vmul.f32 %v4714, %v4724
        %v4737 = vmul.f32 %v4715, %v4724
        %v4738 = vmul.f32 %v4716, %v4724
        %v4739 = vmul.f32 %v4717, %v4724
        %v4740 = vmul.f32 %v4718, %v4724
        %v4741 = vmul.f32 %v4719, %v4724
        %v4743 = vlaneseq
        %v4744 = vshrl.u32 %v4743, 7
        %v4745 = vsub.s32 0, %v4744
        %v4746 = vrot.slane %v4543, %v4745
        %v4748 = vadd.f32 %v4726, %v4746
        %v4749 = vadd.f32 %v4727, %v4746
        %v4750 = vadd.f32 %v4728, %v4746
        %v4751 = vadd.f32 %v4729, %v4746
        %v4752 = vadd.f32 %v4730, %v4746
        %v4753 = vadd.f32 %v4731, %v4746
        %v4754 = vadd.f32 %v4732, %v4746
        %v4755 = vadd.f32 %v4733, %v4746
        %v4756 = vadd.f32 %v4734, %v4746
        %v4757 = vadd.f32 %v4735, %v4746
        %v4758 = vadd.f32 %v4736, %v4746
        %v4759 = vadd.f32 %v4737, %v4746
        %v4760 = vadd.f32 %v4738, %v4746
        %v4761 = vadd.f32 %v4739, %v4746
        %v4762 = vadd.f32 %v4740, %v4746
        %v4763 = vadd.f32 %v4741, %v4746
        %4764 = vst [vmem:[#allocation2] sm:$0xff] %v4748
        %4765 = vst [vmem:[#allocation2 + $0x8] sm:$0xff] %v4749
        %4766 = vst [vmem:[#allocation2 + $0x10] sm:$0xff] %v4750
        %4767 = vst [vmem:[#allocation2 + $0x18] sm:$0xff] %v4751
        %4768 = vst [vmem:[#allocation2 + $0x20] sm:$0xff] %v4752
        %4769 = vst [vmem:[#allocation2 + $0x28] sm:$0xff] %v4753
        %4770 = vst [vmem:[#allocation2 + $0x30] sm:$0xff] %v4754
        %4771 = vst [vmem:[#allocation2 + $0x38] sm:$0xff] %v4755
        %4772 = vst [vmem:[#allocation2 + $0x40] sm:$0xff] %v4756
        %4773 = vst [vmem:[#allocation2 + $0x48] sm:$0xff] %v4757
        %4774 = vst [vmem:[#allocation2 + $0x50] sm:$0xff] %v4758
        %4775 = vst [vmem:[#allocation2 + $0x58] sm:$0xff] %v4759
        %4776 = vst [vmem:[#allocation2 + $0x60] sm:$0xff] %v4760
        %4777 = vst [vmem:[#allocation2 + $0x68] sm:$0xff] %v4761
        %4778 = vst [vmem:[#allocation2 + $0x70] sm:$0xff] %v4762
        %4779 = vst [vmem:[#allocation2 + $0x78] sm:$0xff] %v4763
        %p4780 = scmp.eq.s32.totalorder %s39, 1
        // Predicated region
        $region105: #{tpu_custom_call.1} parent=75 // pred_check
          %p4781 = pneg %p4780
        $region106: #{tpu_custom_call.1} parent=75 // pred_check_branch
          %4783 = sbr.rel (%p4781) target = $region108
        $region107: #{tpu_custom_call.1} parent=75 // pred_region
          %4784 = vst [vmem:[%s570] sm:$0xff] %v4748
          %4785 = vst [vmem:[%s570 + $0x8] sm:$0xff] %v4749
          %4786 = vst [vmem:[%s570 + $0x10] sm:$0xff] %v4750
          %4787 = vst [vmem:[%s570 + $0x18] sm:$0xff] %v4751
          %4788 = vst [vmem:[%s570 + $0x20] sm:$0xff] %v4752
          %4789 = vst [vmem:[%s570 + $0x28] sm:$0xff] %v4753
          %4790 = vst [vmem:[%s570 + $0x30] sm:$0xff] %v4754
          %4791 = vst [vmem:[%s570 + $0x38] sm:$0xff] %v4755
          %4792 = vst [vmem:[%s570 + $0x40] sm:$0xff] %v4756
          %4793 = vst [vmem:[%s570 + $0x48] sm:$0xff] %v4757
          %4794 = vst [vmem:[%s570 + $0x50] sm:$0xff] %v4758
          %4795 = vst [vmem:[%s570 + $0x58] sm:$0xff] %v4759
          %4796 = vst [vmem:[%s570 + $0x60] sm:$0xff] %v4760
          %4797 = vst [vmem:[%s570 + $0x68] sm:$0xff] %v4761
          %4798 = vst [vmem:[%s570 + $0x70] sm:$0xff] %v4762
          %4799 = vst [vmem:[%s570 + $0x78] sm:$0xff] %v4763
        $region108: #{tpu_custom_call.1} parent=75 // pred_fallthru
          _
        %s4800 = sand.u32 %s353, 1
        %s4801 = scalar_lea.sflag [#allocation6], %s4800
        %s4802 = sand.u32 %s353, 1
        %s4803 = smul.addr %s4802, 128
        %s4804 = scalar_lea.vmem [#allocation15], %s4803
        // Predicated region
        $region109: #{tpu_custom_call.1} parent=75 // pred_check
          %p4805 = pneg %p363
        $region110: #{tpu_custom_call.1} parent=75 // pred_check_branch
          %4807 = sbr.rel (%p4805) target = $region112
        $region111: #{tpu_custom_call.1} parent=75 // pred_region
          %s4809 = ssub.s32 2048, 2048
          %4810 = vsyncadd %s4801, %s4809
          %s4811 = smul.addr %s38, 16
          %s4812 = smul.addr %s4811, 128
          %s4813 = scalar_lea.hbm %s14, %s4812
          %s4814 = sshll.u32 %s4804, 4
          %s4815 = int_to_ptr.vmem [resolvable:$true] %s4814
          %4820 = dma.vmem_to_hbm [thread:$0]  %s4815, 2048, %s4813, %s4801, 128, 128, 8
        $region112: #{tpu_custom_call.1} parent=75 // pred_fallthru
          _
      $region76: #{tpu_custom_call.1} parent=5 // pred_fallthru
        _
      %p4821 = scmp.le.s32.totalorder 2, %s29
      // Predicated region
      $region113: #{tpu_custom_call.1} parent=5 // pred_check
        %p4822 = pneg %p4821
      $region114: #{tpu_custom_call.1} parent=5 // pred_check_branch
        %4824 = sbr.rel (%p4822) target = $region116
      $region115: #{tpu_custom_call.1} parent=5 // pred_region
        %s4825 = ssub.s32 %s29, 2
        // Predicated region
        $region117: #{tpu_custom_call.1} parent=115 // pred_check
          %p4826 = pneg %p369
        $region118: #{tpu_custom_call.1} parent=115 // pred_check_branch
          %4828 = sbr.rel (%p4826) target = $region120
        $region119: #{tpu_custom_call.1} parent=115 // pred_region
          %s4829 = sand.u32 %s354, 1
          %s4830 = scalar_lea.sflag [#allocation6], %s4829
          %s4831 = sand.u32 %s354, 1
          %s4832 = smul.addr %s4831, 128
          %s4833 = scalar_lea.vmem [#allocation15], %s4832
          %4834 = dma.done %s4830, 2048
        $region120: #{tpu_custom_call.1} parent=115 // pred_fallthru
          _
      $region116: #{tpu_custom_call.1} parent=5 // pred_fallthru
        _
    $region6: #{tpu_custom_call.1} parent=1 // loop_footer
      %s33 = sadd.s32 1, %s29
    $region7: #{tpu_custom_call.1} parent=1 // loop_footer_branch
      %28 = sbr.rel target = $region3
    $region8: #{tpu_custom_call.1} parent=1 // loop_exit
      _
    %4835 = vsyncpa [#allocation5], 1
    %s4836 = scalar_lea.sflag [#allocation5], 1
    %4837 = vsyncpa %s4836, 1
    %4838 = vsyncpa [#allocation8], 1
    %4839 = vsyncpa [#allocation11], 1
    %4840 = vsyncpa [#allocation14], 1
    %4841 = vsyncpa [#allocation6], 1
    %s4842 = scalar_lea.sflag [#allocation6], 1
    %4843 = vsyncpa %s4842, 1

</llo_original>
